<compile_context>
chip_gen: v7x
topology: tpu7x:2x2x1
jax: 0.10.0
libtpu: 0.0.40
codegen_flags: <defaults>
</compile_context>

<pallas_src>
import functools

import jax
import jax.numpy as jnp
from jax.experimental import pallas as pl
from jax.experimental.pallas import tpu as pltpu


# ----------------------------------------------------------------------------
# Shape-arithmetic helpers copied from GeneralConv (__init__-time logic).
# ----------------------------------------------------------------------------
def conv_len_out(lin, pad, ks, s):
    def compute(lin, pad, ks, s):
        v = lin + 2 * pad - (ks - 1) - 1
        if v % s != 0:
            v = v + v % s
            lout = v / s + 1
            pad = v + 1 + (ks - 1) - lin
            if pad % 2 != 0:
                pad += pad % 2
            return lout, pad, True
        else:
            lout = v / s + 1
            return lout, pad, False

    lout, pad, pad_modified = compute(lin, pad, ks, s)
    while pad_modified:
        lout, pad, pad_modified = compute(lin, pad, ks, s)
    return int(lout), int(pad)


def get_kernel_size(ks, seq_len, rev=1):
    if seq_len % 2 != 0:
        if ks % 2 != 0:
            ks += 1 * rev
    elif ks % 2 == 0:
        ks += 1 * rev
    return int(ks)


# ----------------------------------------------------------------------------
# Fused kernel: enc conv1 -> enc conv2 -> tanh -> Linear -> Linear -> LeakyReLU
# -> Linear -> fused Linear [main|act|phy] -> tanh -> (softmax head, phy head,
# decoder ConvTranspose x2), all resident in VMEM for one batch tile.
# ----------------------------------------------------------------------------
def fused_kernel(x_ref, oth_ref,
                 c1w_ref, c1b_ref, c2w_ref, c2b_ref,
                 e1m_ref, e1x_ref, e1b_ref, e2w_ref, e2b_ref,
                 g1w_ref, g1b_ref, g2w_ref, g2b_ref,
                 t2w_ref, t2b_ref, t1w_ref, t1b_ref,
                 y_ref, a_ref, p_ref,
                 *, bt, cin, lin, c_out, k0, k1, p0, p1, lout1, lout2,
                 n_act, n_phy):
    c2 = 2 * c_out
    d_main = lout2 * c2
    bf16 = jnp.bfloat16
    f32 = jnp.float32

    def pad_rows(x2, pad):
        """Zero-pad a (L, C) value by `pad` rows on each side (static)."""
        if pad == 0:
            return x2
        z = jnp.zeros((pad, x2.shape[1]), x2.dtype)
        return jnp.concatenate([z, x2, z], axis=0)

    def conv_im2col(x2, w_ref, b_ref, K, lout):
        """Stride-1 'valid' conv as one matmul (narrow-channel case).
        x2: (Lpad, Cin) bf16; w_ref: (K*Cin, Cout) bf16; b_ref: (1, Cout) f32."""
        patch = jnp.concatenate([x2[k:k + lout, :] for k in range(K)], axis=1)
        return jnp.dot(patch, w_ref[...], preferred_element_type=f32) + b_ref[...]

    def conv_tapsum(x2, w_ref, b_ref, K, lout):
        """Stride-1 'valid' conv as a K-tap sum of lane-aligned matmuls.
        x2: (Lpad, Cin) bf16; w_ref: (K, Cin, Cout) bf16; b_ref: (1, Cout) f32."""
        acc = jnp.dot(x2[0:lout, :], w_ref[0], preferred_element_type=f32)
        for k in range(1, K):
            acc = acc + jnp.dot(x2[k:k + lout, :], w_ref[k],
                                preferred_element_type=f32)
        return acc + b_ref[...]

    # ---------------- encoder convs (channels-last, bf16 before layout work) -------------
    feats = []
    for b in range(bt):
        xb = pad_rows(x_ref[b].astype(bf16), p0)                  # (lin+2*p0, cin)
        h1 = conv_im2col(xb, c1w_ref, c1b_ref, k0, lout1)         # (lout1, c_out)  f32
        h1 = pad_rows(h1.astype(bf16), p1)                        # (lout1+2*p1, c_out)
        h2 = conv_tapsum(h1, c2w_ref, c2b_ref, k1, lout2)         # (lout2, 2*c_out) f32
        t = jnp.tanh(h2).astype(bf16)                             # set_same_scale
        # flatten (lout2, c2) -> (1, lout2*c2): aligned row slices + one lane concat
        feats.append(jnp.concatenate([t[l:l + 1, :] for l in range(lout2)], axis=1))
    feat = feats[0] if bt == 1 else jnp.concatenate(feats, axis=0)  # (bt, lout2*c2) bf16

    # ---------------- bottleneck MLP (batched, M = bt, lane-dense weights) ---------------
    # tanh is elementwise, so tanh(cat(conv_flat, others)) == cat(tanh(.), tanh(.)).
    oth = (oth_ref[0] if bt == 1
           else jnp.concatenate([oth_ref[b] for b in range(bt)], axis=0))  # (bt, n_extra)
    oth_t = jnp.tanh(oth).astype(bf16)
    z = (jnp.dot(feat, e1m_ref[...], preferred_element_type=f32)
         + jnp.dot(oth_t, e1x_ref[...], preferred_element_type=f32)
         + e1b_ref[...])                                          # (bt, 128)
    h = jnp.dot(z.astype(bf16), e2w_ref[...], preferred_element_type=f32) + e2b_ref[...]
    h = jnp.where(h > 0, h, 0.01 * h)                             # LeakyReLU(0.01)
    h = jnp.dot(h.astype(bf16), g1w_ref[...], preferred_element_type=f32) + g1b_ref[...]
    # dec Linear 2: ONE lane-dense matmul over [main | act | phy] columns, one tanh.
    g2 = jnp.tanh(jnp.dot(h.astype(bf16), g2w_ref[...], preferred_element_type=f32)
                  + g2b_ref[...])                                 # (bt, d_main+n_act+n_phy)

    # ---------------- heads: softmax(act), identity(phy) ---------------------------------
    a_log = g2[:, d_main:d_main + n_act]
    a_log = a_log - jnp.max(a_log, axis=1, keepdims=True)
    ea = jnp.exp(a_log)
    a_soft = ea / jnp.sum(ea, axis=1, keepdims=True)              # (bt, n_act)
    p_val = g2[:, d_main + n_act:d_main + n_act + n_phy]          # (bt, n_phy)
    for b in range(bt):
        a_ref[b] = a_soft[b:b + 1, :].astype(a_ref.dtype)
        p_ref[b] = p_val[b:b + 1, :].astype(p_ref.dtype)

    # ---------------- decoder: ConvTranspose1d == zero-pad by (K-1-pad) + correlate ------
    off1 = k1 - 1 - p1
    off0 = k0 - 1 - p0
    y_main = g2[:, :d_main].astype(bf16)                          # (bt, lout2*c2)
    zpad1 = jnp.zeros((off1, c2), bf16) if off1 > 0 else None
    for b in range(bt):
        rowb = y_main[b:b + 1, :]
        rows = [rowb[:, l * c2:(l + 1) * c2] for l in range(lout2)]   # aligned 128-lane slices
        if off1 > 0:
            rows = [zpad1] + rows + [zpad1]
        y3 = jnp.concatenate(rows, axis=0)                        # (lout2+2*off1, 2*c_out)
        d2 = conv_tapsum(y3, t2w_ref, t2b_ref, k1, lout1)         # (lout1, c_out)  dec_second
        d2 = pad_rows(d2.astype(bf16), off0)
        d1 = conv_tapsum(d2, t1w_ref, t1b_ref, k0, lin)           # (lin, cin)      dec_first
        y_ref[b] = d1.astype(y_ref.dtype)


# ----------------------------------------------------------------------------
# Forward wrapper: one pallas_call with a batch-tile grid; only layout
# transposes / squeezes happen outside the kernel.
# ----------------------------------------------------------------------------
def sanitizer_forward(x, others, params, cfg, batch_tile=None):
    B, cin, lin = x.shape
    k0, k1 = cfg["kernel_sizes"]
    p0, p1 = cfg["conv_paddings"]
    lout1, lout2 = cfg["lout"], cfg["lout2"]
    c_out = cfg["cOut"]
    n_act, n_phy = cfg["actNodes"], cfg["phyNodes"]
    n_extra = others.shape[1]

    # TODO(synk): strides > 1 not implemented (module defaults strides=[1, 1]).
    # TODO(synk): actNodes==0 / phyNodes==0 identity cat/uncat branches not implemented.
    assert n_act > 0 and n_phy > 0
    assert lin + 2 * p0 - k0 + 1 == lout1                     # enc_first length
    assert lout1 + 2 * p1 - k1 + 1 == lout2                   # enc_second length
    assert k1 - 1 - p1 >= 0 and k0 - 1 - p0 >= 0              # ConvT emulation needs K-1-pad >= 0
    assert lout2 + 2 * (k1 - 1 - p1) - k1 + 1 == lout1        # dec_second length
    assert lout1 + 2 * (k0 - 1 - p0) - k0 + 1 == lin          # dec_first length

    bt = B if batch_tile is None else int(batch_tile)
    assert B % bt == 0
    grid = (B // bt,)

    kern = functools.partial(
        fused_kernel, bt=bt, cin=cin, lin=lin, c_out=c_out,
        k0=k0, k1=k1, p0=p0, p1=p1, lout1=lout1, lout2=lout2,
        n_act=n_act, n_phy=n_phy)

    def full_spec(shape):
        nd = len(shape)

        def imap(i):
            return (0,) * nd

        return pl.BlockSpec(shape, imap)

    weight_order = ("c1_w", "c1_b", "c2_w", "c2_b",
                    "e1m_w", "e1x_w", "e1_b", "e2_w", "e2_b",
                    "g1_w", "g1_b", "g2_w", "g2_b",
                    "t2_w", "t2_b", "t1_w", "t1_b")
    weights = [params[k] for k in weight_order]

    in_specs = ([pl.BlockSpec((bt, lin, cin), lambda i: (i, 0, 0)),
                 pl.BlockSpec((bt, 1, n_extra), lambda i: (i, 0, 0))]
                + [full_spec(tuple(w.shape)) for w in weights])
    out_specs = (pl.BlockSpec((bt, lin, cin), lambda i: (i, 0, 0)),
                 pl.BlockSpec((bt, 1, n_act), lambda i: (i, 0, 0)),
                 pl.BlockSpec((bt, 1, n_phy), lambda i: (i, 0, 0)))

    x_nlc = jnp.transpose(x, (0, 2, 1))                       # NCL -> NLC (channels on lanes)
    others3 = others[:, None, :]                              # (B, 1, n_extra)

    y_nlc, a_soft, p_out = pl.pallas_call(
        kern,
        grid=grid,
        in_specs=in_specs,
        out_specs=out_specs,
        out_shape=(jax.ShapeDtypeStruct((B, lin, cin), jnp.float32),
                   jax.ShapeDtypeStruct((B, 1, n_act), jnp.float32),
                   jax.ShapeDtypeStruct((B, 1, n_phy), jnp.float32)),
        compiler_params=pltpu.CompilerParams(
            dimension_semantics=("parallel",)),               # v7x: shard batch across TCs
    )(x_nlc, others3, *weights)

    return (jnp.transpose(y_nlc, (0, 2, 1)),
            jnp.squeeze(a_soft, axis=1),
            jnp.squeeze(p_out, axis=1))


# ----------------------------------------------------------------------------
# Deterministic parameter init (PyTorch default-like uniform(+-1/sqrt(fan_in))),
# re-laid-out for the kernel: weights bf16, biases f32.
# ----------------------------------------------------------------------------
def init_params(key, cfg):
    cin, c_out = cfg["input_channels"], cfg["cOut"]
    k0, k1 = cfg["kernel_sizes"]
    lout2 = cfg["lout2"]
    phy, act, noise = cfg["phyNodes"], cfg["actNodes"], cfg["noiseNodes"]
    c2 = 2 * c_out
    n_extra = phy + act + noise
    d_in = lout2 * c2 + n_extra
    h1, h2 = 128, 64

    keys = jax.random.split(key, 24)

    def unif(k, shape, fan_in):
        bound = 1.0 / (fan_in ** 0.5)
        return jax.random.uniform(k, shape, jnp.float32, -bound, bound)

    # conv / transposed-conv weights in torch layout first
    c1_w = unif(keys[0], (c_out, cin, k0), cin * k0)          # Conv1d   (Cout,Cin,K)
    c1_b = unif(keys[1], (1, c_out), cin * k0)
    c2_w = unif(keys[2], (c2, c_out, k1), c_out * k1)
    c2_b = unif(keys[3], (1, c2), c_out * k1)
    t2_w = unif(keys[4], (c2, c_out, k1), c2 * k1)            # ConvT    (Cin,Cout,K)
    t2_b = unif(keys[5], (1, c_out), c2 * k1)
    t1_w = unif(keys[6], (c_out, cin, k0), c_out * k0)
    t1_b = unif(keys[7], (1, cin), c_out * k0)

    # linears stored (in, out); conv-feature rows/cols use position-major (l, c) ordering
    # (a fixed permutation of torch's (C, L) flatten of freshly-initialised weights).
    e1m_w = unif(keys[8], (lout2 * c2, h1), d_in)
    e1x_w = unif(keys[9], (n_extra, h1), d_in)
    e1_b = unif(keys[10], (1, h1), d_in)
    e2_w = unif(keys[11], (h1, h2), h1)
    e2_b = unif(keys[12], (1, h2), h1)
    g1_w = unif(keys[13], (h2, h1), h2)
    g1_b = unif(keys[14], (1, h1), h2)
    # dec Linear 2, pre-fused column blocks [main | act | phy]
    g2_main = unif(keys[15], (h1, lout2 * c2), h1)
    g2_act = unif(keys[16], (h1, act), h1)
    g2_phy = unif(keys[17], (h1, phy), h1)
    g2_bm = unif(keys[18], (1, lout2 * c2), h1)
    g2_ba = unif(keys[19], (1, act), h1)
    g2_bp = unif(keys[20], (1, phy), h1)
    g2_w = jnp.concatenate([g2_main, g2_act, g2_phy], axis=1)
    g2_b = jnp.concatenate([g2_bm, g2_ba, g2_bp], axis=1)

    def conv_flat(w):       # torch Conv1d (Cout,Cin,K) -> (K*Cin, Cout)   [im2col]
        co, ci, k = w.shape
        return jnp.transpose(w, (2, 1, 0)).reshape(k * ci, co)

    def conv_taps(w):       # torch Conv1d (Cout,Cin,K) -> (K, Cin, Cout)  [tap-sum]
        return jnp.transpose(w, (2, 1, 0))

    def convT_taps(w):      # torch ConvT (Cin,Cout,K) -> (K, Cin, Cout), K flipped
        return jnp.transpose(jnp.flip(w, axis=2), (2, 0, 1))

    bf = lambda a: a.astype(jnp.bfloat16)
    return {
        "c1_w": bf(conv_flat(c1_w)), "c1_b": c1_b,
        "c2_w": bf(conv_taps(c2_w)), "c2_b": c2_b,
        "e1m_w": bf(e1m_w), "e1x_w": bf(e1x_w), "e1_b": e1_b,
        "e2_w": bf(e2_w), "e2_b": e2_b,
        "g1_w": bf(g1_w), "g1_b": g1_b,
        "g2_w": bf(g2_w), "g2_b": g2_b,
        "t2_w": bf(convT_taps(t2_w)), "t2_b": t2_b,
        "t1_w": bf(convT_taps(t1_w)), "t1_b": t1_b,
    }


if __name__ == "__main__":
    # Small config consistent with the module (defaults scaled down; act/phy nodes > 0 so
    # the uncat/softmax branches of the forward are exercised).
    input_channels, seq_len = 4, 16
    kernel_sizes, strides, conv_paddings = [5, 5], [1, 1], [0, 0]
    phyNodes, actNodes, noiseNodes = 2, 3, 2
    cOut = 64

    kernel_sizes[0] = get_kernel_size(kernel_sizes[0], seq_len, rev=1)
    lout, conv_paddings[0] = conv_len_out(seq_len, conv_paddings[0], kernel_sizes[0], strides[0])
    kernel_sizes[1] = get_kernel_size(kernel_sizes[1], lout)
    lout2, conv_paddings[1] = conv_len_out(lout, conv_paddings[1], kernel_sizes[1], strides[1])

    cfg = dict(input_channels=input_channels, seq_len=seq_len, cOut=cOut,
               kernel_sizes=kernel_sizes, conv_paddings=conv_paddings,
               lout=lout, lout2=lout2,
               phyNodes=phyNodes, actNodes=actNodes, noiseNodes=noiseNodes)

    key = jax.random.PRNGKey(0)
    kp, kx, ko = jax.random.split(key, 3)
    params = init_params(kp, cfg)

    B = 2
    x = jax.random.normal(kx, (B, input_channels, seq_len), jnp.float32)
    others = jax.random.normal(ko, (B, phyNodes + actNodes + noiseNodes), jnp.float32)

    # Default: whole batch in one grid step (best on v5e/v6e, single TensorCore).
    fwd = jax.jit(lambda xx, oo, pp: sanitizer_forward(xx, oo, pp, cfg))
    x_out, a_out, p_out = fwd(x, others, params)
    jax.block_until_ready((x_out, a_out, p_out))

    # Batch-tiled path (what you would use on v7x with batch_tile=B//2 for both TCs).
    fwd_tiled = jax.jit(lambda xx, oo, pp: sanitizer_forward(xx, oo, pp, cfg, batch_tile=1))
    x_t, a_t, p_t = fwd_tiled(x, others, params)
    jax.block_until_ready((x_t, a_t, p_t))

    assert x_out.shape == (B, input_channels, seq_len), x_out.shape
    assert a_out.shape == (B, actNodes), a_out.shape
    assert p_out.shape == (B, phyNodes), p_out.shape
    assert bool(jnp.all(jnp.isfinite(x_out)))
    assert bool(jnp.all(jnp.isfinite(a_out)))
    assert bool(jnp.all(jnp.isfinite(p_out)))
    # softmax rows sum to 1
    assert bool(jnp.all(jnp.abs(jnp.sum(a_out, axis=1) - 1.0) < 1e-5))
    # tiled and untiled grids compute the same forward
    assert bool(jnp.allclose(x_out, x_t, atol=1e-4, rtol=1e-4))
    assert bool(jnp.allclose(a_out, a_t, atol=1e-4, rtol=1e-4))
    assert bool(jnp.allclose(p_out, p_t, atol=1e-4, rtol=1e-4))

    print("KERNEL_OK")
</pallas_src>

<mosaic_0001>
module attributes {stable_mosaic.version = 11 : i64} {
  func.func @fused_kernel(%arg0: i32, %arg1: memref<2x16x4xf32, #tpu.memory_space<vmem>>, %arg2: memref<2x1x7xf32, #tpu.memory_space<vmem>>, %arg3: memref<20x64xbf16, #tpu.memory_space<vmem>>, %arg4: memref<1x64xf32, #tpu.memory_space<vmem>>, %arg5: memref<5x64x128xbf16, #tpu.memory_space<vmem>>, %arg6: memref<1x128xf32, #tpu.memory_space<vmem>>, %arg7: memref<1024x128xbf16, #tpu.memory_space<vmem>>, %arg8: memref<7x128xbf16, #tpu.memory_space<vmem>>, %arg9: memref<1x128xf32, #tpu.memory_space<vmem>>, %arg10: memref<128x64xbf16, #tpu.memory_space<vmem>>, %arg11: memref<1x64xf32, #tpu.memory_space<vmem>>, %arg12: memref<64x128xbf16, #tpu.memory_space<vmem>>, %arg13: memref<1x128xf32, #tpu.memory_space<vmem>>, %arg14: memref<128x1029xbf16, #tpu.memory_space<vmem>>, %arg15: memref<1x1029xf32, #tpu.memory_space<vmem>>, %arg16: memref<5x128x64xbf16, #tpu.memory_space<vmem>>, %arg17: memref<1x64xf32, #tpu.memory_space<vmem>>, %arg18: memref<5x64x4xbf16, #tpu.memory_space<vmem>>, %arg19: memref<1x4xf32, #tpu.memory_space<vmem>>, %arg20: memref<2x16x4xf32, #tpu.memory_space<vmem>>, %arg21: memref<2x1x3xf32, #tpu.memory_space<vmem>>, %arg22: memref<2x1x2xf32, #tpu.memory_space<vmem>>) attributes {dimension_semantics = [#tpu.dimension_semantics<parallel>], iteration_bounds = array<i64: 1>, scalar_prefetch = 0 : i64, scratch_operands = 0 : i64, tpu.core_type = #tpu.core_type<tc>, window_params = [{transform_indices = @transform_0, window_bounds = array<i64: 2, 16, 4>}, {transform_indices = @transform_1, window_bounds = array<i64: 2, 1, 7>}, {pipeline_mode = #tpu.pipeline_mode<synchronous>, transform_indices = @transform_2, window_bounds = array<i64: 20, 64>}, {pipeline_mode = #tpu.pipeline_mode<synchronous>, transform_indices = @transform_3, window_bounds = array<i64: 1, 64>}, {pipeline_mode = #tpu.pipeline_mode<synchronous>, transform_indices = @transform_4, window_bounds = array<i64: 5, 64, 128>}, {pipeline_mode = #tpu.pipeline_mode<synchronous>, transform_indices = @transform_5, window_bounds = array<i64: 1, 128>}, {pipeline_mode = #tpu.pipeline_mode<synchronous>, transform_indices = @transform_6, window_bounds = array<i64: 1024, 128>}, {pipeline_mode = #tpu.pipeline_mode<synchronous>, transform_indices = @transform_7, window_bounds = array<i64: 7, 128>}, {pipeline_mode = #tpu.pipeline_mode<synchronous>, transform_indices = @transform_8, window_bounds = array<i64: 1, 128>}, {pipeline_mode = #tpu.pipeline_mode<synchronous>, transform_indices = @transform_9, window_bounds = array<i64: 128, 64>}, {pipeline_mode = #tpu.pipeline_mode<synchronous>, transform_indices = @transform_10, window_bounds = array<i64: 1, 64>}, {pipeline_mode = #tpu.pipeline_mode<synchronous>, transform_indices = @transform_11, window_bounds = array<i64: 64, 128>}, {pipeline_mode = #tpu.pipeline_mode<synchronous>, transform_indices = @transform_12, window_bounds = array<i64: 1, 128>}, {pipeline_mode = #tpu.pipeline_mode<synchronous>, transform_indices = @transform_13, window_bounds = array<i64: 128, 1029>}, {pipeline_mode = #tpu.pipeline_mode<synchronous>, transform_indices = @transform_14, window_bounds = array<i64: 1, 1029>}, {pipeline_mode = #tpu.pipeline_mode<synchronous>, transform_indices = @transform_15, window_bounds = array<i64: 5, 128, 64>}, {pipeline_mode = #tpu.pipeline_mode<synchronous>, transform_indices = @transform_16, window_bounds = array<i64: 1, 64>}, {pipeline_mode = #tpu.pipeline_mode<synchronous>, transform_indices = @transform_17, window_bounds = array<i64: 5, 64, 4>}, {pipeline_mode = #tpu.pipeline_mode<synchronous>, transform_indices = @transform_18, window_bounds = array<i64: 1, 4>}, {transform_indices = @transform_19, window_bounds = array<i64: 2, 16, 4>}, {transform_indices = @transform_20, window_bounds = array<i64: 2, 1, 3>}, {transform_indices = @transform_21, window_bounds = array<i64: 2, 1, 2>}]} {
    %c0 = arith.constant 0 : index
    %c0_0 = arith.constant 0 : index
    %c0_1 = arith.constant 0 : index
    %0 = vector.load %arg1[%c0, %c0_0, %c0_1] : memref<2x16x4xf32, #tpu.memory_space<vmem>>, vector<1x16x4xf32>
    %1 = vector.shape_cast %0 : vector<1x16x4xf32> to vector<16x4xf32>
    %2 = arith.truncf %1 : vector<16x4xf32> to vector<16x4xbf16>
    %3 = vector.extract_strided_slice %2 {offsets = [0, 0], sizes = [12, 4], strides = [1, 1]} : vector<16x4xbf16> to vector<12x4xbf16>
    %4 = vector.extract_strided_slice %2 {offsets = [1, 0], sizes = [12, 4], strides = [1, 1]} : vector<16x4xbf16> to vector<12x4xbf16>
    %5 = vector.extract_strided_slice %2 {offsets = [2, 0], sizes = [12, 4], strides = [1, 1]} : vector<16x4xbf16> to vector<12x4xbf16>
    %6 = vector.extract_strided_slice %2 {offsets = [3, 0], sizes = [12, 4], strides = [1, 1]} : vector<16x4xbf16> to vector<12x4xbf16>
    %7 = vector.extract_strided_slice %2 {offsets = [4, 0], sizes = [12, 4], strides = [1, 1]} : vector<16x4xbf16> to vector<12x4xbf16>
    %8 = tpu.concatenate %3, %4, %5, %6, %7 in 1 : vector<12x4xbf16>, vector<12x4xbf16>, vector<12x4xbf16>, vector<12x4xbf16>, vector<12x4xbf16> -> vector<12x20xbf16>
    %c0_2 = arith.constant 0 : index
    %c0_3 = arith.constant 0 : index
    %9 = vector.load %arg3[%c0_2, %c0_3] : memref<20x64xbf16, #tpu.memory_space<vmem>>, vector<20x64xbf16>
    %cst = arith.constant dense<0.000000e+00> : vector<12x64xf32>
    %10 = tpu.matmul %8, %9, %cst {dimension_numbers = #tpu.dot_dimension_numbers<[1], [0], [0], [1], [0, 0, 1, 1], [], []>} : vector<12x20xbf16>, vector<20x64xbf16>, vector<12x64xf32> -> vector<12x64xf32>
    %c0_4 = arith.constant 0 : index
    %c0_5 = arith.constant 0 : index
    %11 = vector.load %arg4[%c0_4, %c0_5] : memref<1x64xf32, #tpu.memory_space<vmem>>, vector<1x64xf32>
    %12 = vector.broadcast %11 : vector<1x64xf32> to vector<12x64xf32>
    %13 = arith.addf %10, %12 : vector<12x64xf32>
    %14 = arith.truncf %13 : vector<12x64xf32> to vector<12x64xbf16>
    %15 = vector.extract_strided_slice %14 {offsets = [0, 0], sizes = [8, 64], strides = [1, 1]} : vector<12x64xbf16> to vector<8x64xbf16>
    %c0_6 = arith.constant 0 : index
    %c0_7 = arith.constant 0 : index
    %c0_8 = arith.constant 0 : index
    %16 = vector.load %arg5[%c0_6, %c0_7, %c0_8] : memref<5x64x128xbf16, #tpu.memory_space<vmem>>, vector<1x64x128xbf16>
    %17 = vector.shape_cast %16 : vector<1x64x128xbf16> to vector<64x128xbf16>
    %cst_9 = arith.constant dense<0.000000e+00> : vector<8x128xf32>
    %18 = tpu.matmul %15, %17, %cst_9 {dimension_numbers = #tpu.dot_dimension_numbers<[1], [0], [0], [1], [0, 0, 1, 1], [], []>} : vector<8x64xbf16>, vector<64x128xbf16>, vector<8x128xf32> -> vector<8x128xf32>
    %19 = vector.extract_strided_slice %14 {offsets = [1, 0], sizes = [8, 64], strides = [1, 1]} : vector<12x64xbf16> to vector<8x64xbf16>
    %c1 = arith.constant 1 : index
    %c0_10 = arith.constant 0 : index
    %c0_11 = arith.constant 0 : index
    %20 = vector.load %arg5[%c1, %c0_10, %c0_11] : memref<5x64x128xbf16, #tpu.memory_space<vmem>>, vector<1x64x128xbf16>
    %21 = vector.shape_cast %20 : vector<1x64x128xbf16> to vector<64x128xbf16>
    %cst_12 = arith.constant dense<0.000000e+00> : vector<8x128xf32>
    %22 = tpu.matmul %19, %21, %cst_12 {dimension_numbers = #tpu.dot_dimension_numbers<[1], [0], [0], [1], [0, 0, 1, 1], [], []>} : vector<8x64xbf16>, vector<64x128xbf16>, vector<8x128xf32> -> vector<8x128xf32>
    %23 = arith.addf %18, %22 : vector<8x128xf32>
    %24 = vector.extract_strided_slice %14 {offsets = [2, 0], sizes = [8, 64], strides = [1, 1]} : vector<12x64xbf16> to vector<8x64xbf16>
    %c2 = arith.constant 2 : index
    %c0_13 = arith.constant 0 : index
    %c0_14 = arith.constant 0 : index
    %25 = vector.load %arg5[%c2, %c0_13, %c0_14] : memref<5x64x128xbf16, #tpu.memory_space<vmem>>, vector<1x64x128xbf16>
    %26 = vector.shape_cast %25 : vector<1x64x128xbf16> to vector<64x128xbf16>
    %cst_15 = arith.constant dense<0.000000e+00> : vector<8x128xf32>
    %27 = tpu.matmul %24, %26, %cst_15 {dimension_numbers = #tpu.dot_dimension_numbers<[1], [0], [0], [1], [0, 0, 1, 1], [], []>} : vector<8x64xbf16>, vector<64x128xbf16>, vector<8x128xf32> -> vector<8x128xf32>
    %28 = arith.addf %23, %27 : vector<8x128xf32>
    %29 = vector.extract_strided_slice %14 {offsets = [3, 0], sizes = [8, 64], strides = [1, 1]} : vector<12x64xbf16> to vector<8x64xbf16>
    %c3 = arith.constant 3 : index
    %c0_16 = arith.constant 0 : index
    %c0_17 = arith.constant 0 : index
    %30 = vector.load %arg5[%c3, %c0_16, %c0_17] : memref<5x64x128xbf16, #tpu.memory_space<vmem>>, vector<1x64x128xbf16>
    %31 = vector.shape_cast %30 : vector<1x64x128xbf16> to vector<64x128xbf16>
    %cst_18 = arith.constant dense<0.000000e+00> : vector<8x128xf32>
    %32 = tpu.matmul %29, %31, %cst_18 {dimension_numbers = #tpu.dot_dimension_numbers<[1], [0], [0], [1], [0, 0, 1, 1], [], []>} : vector<8x64xbf16>, vector<64x128xbf16>, vector<8x128xf32> -> vector<8x128xf32>
    %33 = arith.addf %28, %32 : vector<8x128xf32>
    %34 = vector.extract_strided_slice %14 {offsets = [4, 0], sizes = [8, 64], strides = [1, 1]} : vector<12x64xbf16> to vector<8x64xbf16>
    %c4 = arith.constant 4 : index
    %c0_19 = arith.constant 0 : index
    %c0_20 = arith.constant 0 : index
    %35 = vector.load %arg5[%c4, %c0_19, %c0_20] : memref<5x64x128xbf16, #tpu.memory_space<vmem>>, vector<1x64x128xbf16>
    %36 = vector.shape_cast %35 : vector<1x64x128xbf16> to vector<64x128xbf16>
    %cst_21 = arith.constant dense<0.000000e+00> : vector<8x128xf32>
    %37 = tpu.matmul %34, %36, %cst_21 {dimension_numbers = #tpu.dot_dimension_numbers<[1], [0], [0], [1], [0, 0, 1, 1], [], []>} : vector<8x64xbf16>, vector<64x128xbf16>, vector<8x128xf32> -> vector<8x128xf32>
    %38 = arith.addf %33, %37 : vector<8x128xf32>
    %c0_22 = arith.constant 0 : index
    %c0_23 = arith.constant 0 : index
    %39 = vector.load %arg6[%c0_22, %c0_23] : memref<1x128xf32, #tpu.memory_space<vmem>>, vector<1x128xf32>
    %40 = vector.broadcast %39 : vector<1x128xf32> to vector<8x128xf32>
    %41 = arith.addf %38, %40 : vector<8x128xf32>
    %42 = math.tanh %41 : vector<8x128xf32>
    %43 = arith.truncf %42 : vector<8x128xf32> to vector<8x128xbf16>
    %44 = vector.extract_strided_slice %43 {offsets = [0, 0], sizes = [1, 128], strides = [1, 1]} : vector<8x128xbf16> to vector<1x128xbf16>
    %45 = vector.extract_strided_slice %43 {offsets = [1, 0], sizes = [1, 128], strides = [1, 1]} : vector<8x128xbf16> to vector<1x128xbf16>
    %46 = vector.extract_strided_slice %43 {offsets = [2, 0], sizes = [1, 128], strides = [1, 1]} : vector<8x128xbf16> to vector<1x128xbf16>
    %47 = vector.extract_strided_slice %43 {offsets = [3, 0], sizes = [1, 128], strides = [1, 1]} : vector<8x128xbf16> to vector<1x128xbf16>
    %48 = vector.extract_strided_slice %43 {offsets = [4, 0], sizes = [1, 128], strides = [1, 1]} : vector<8x128xbf16> to vector<1x128xbf16>
    %49 = vector.extract_strided_slice %43 {offsets = [5, 0], sizes = [1, 128], strides = [1, 1]} : vector<8x128xbf16> to vector<1x128xbf16>
    %50 = vector.extract_strided_slice %43 {offsets = [6, 0], sizes = [1, 128], strides = [1, 1]} : vector<8x128xbf16> to vector<1x128xbf16>
    %51 = vector.extract_strided_slice %43 {offsets = [7, 0], sizes = [1, 128], strides = [1, 1]} : vector<8x128xbf16> to vector<1x128xbf16>
    %52 = tpu.concatenate %44, %45, %46, %47, %48, %49, %50, %51 in 1 : vector<1x128xbf16>, vector<1x128xbf16>, vector<1x128xbf16>, vector<1x128xbf16>, vector<1x128xbf16>, vector<1x128xbf16>, vector<1x128xbf16>, vector<1x128xbf16> -> vector<1x1024xbf16>
    %c1_24 = arith.constant 1 : index
    %c0_25 = arith.constant 0 : index
    %c0_26 = arith.constant 0 : index
    %53 = vector.load %arg1[%c1_24, %c0_25, %c0_26] : memref<2x16x4xf32, #tpu.memory_space<vmem>>, vector<1x16x4xf32>
    %54 = vector.shape_cast %53 : vector<1x16x4xf32> to vector<16x4xf32>
    %55 = arith.truncf %54 : vector<16x4xf32> to vector<16x4xbf16>
    %56 = vector.extract_strided_slice %55 {offsets = [0, 0], sizes = [12, 4], strides = [1, 1]} : vector<16x4xbf16> to vector<12x4xbf16>
    %57 = vector.extract_strided_slice %55 {offsets = [1, 0], sizes = [12, 4], strides = [1, 1]} : vector<16x4xbf16> to vector<12x4xbf16>
    %58 = vector.extract_strided_slice %55 {offsets = [2, 0], sizes = [12, 4], strides = [1, 1]} : vector<16x4xbf16> to vector<12x4xbf16>
    %59 = vector.extract_strided_slice %55 {offsets = [3, 0], sizes = [12, 4], strides = [1, 1]} : vector<16x4xbf16> to vector<12x4xbf16>
    %60 = vector.extract_strided_slice %55 {offsets = [4, 0], sizes = [12, 4], strides = [1, 1]} : vector<16x4xbf16> to vector<12x4xbf16>
    %61 = tpu.concatenate %56, %57, %58, %59, %60 in 1 : vector<12x4xbf16>, vector<12x4xbf16>, vector<12x4xbf16>, vector<12x4xbf16>, vector<12x4xbf16> -> vector<12x20xbf16>
    %c0_27 = arith.constant 0 : index
    %c0_28 = arith.constant 0 : index
    %62 = vector.load %arg3[%c0_27, %c0_28] : memref<20x64xbf16, #tpu.memory_space<vmem>>, vector<20x64xbf16>
    %cst_29 = arith.constant dense<0.000000e+00> : vector<12x64xf32>
    %63 = tpu.matmul %61, %62, %cst_29 {dimension_numbers = #tpu.dot_dimension_numbers<[1], [0], [0], [1], [0, 0, 1, 1], [], []>} : vector<12x20xbf16>, vector<20x64xbf16>, vector<12x64xf32> -> vector<12x64xf32>
    %c0_30 = arith.constant 0 : index
    %c0_31 = arith.constant 0 : index
    %64 = vector.load %arg4[%c0_30, %c0_31] : memref<1x64xf32, #tpu.memory_space<vmem>>, vector<1x64xf32>
    %65 = vector.broadcast %64 : vector<1x64xf32> to vector<12x64xf32>
    %66 = arith.addf %63, %65 : vector<12x64xf32>
    %67 = arith.truncf %66 : vector<12x64xf32> to vector<12x64xbf16>
    %68 = vector.extract_strided_slice %67 {offsets = [0, 0], sizes = [8, 64], strides = [1, 1]} : vector<12x64xbf16> to vector<8x64xbf16>
    %c0_32 = arith.constant 0 : index
    %c0_33 = arith.constant 0 : index
    %c0_34 = arith.constant 0 : index
    %69 = vector.load %arg5[%c0_32, %c0_33, %c0_34] : memref<5x64x128xbf16, #tpu.memory_space<vmem>>, vector<1x64x128xbf16>
    %70 = vector.shape_cast %69 : vector<1x64x128xbf16> to vector<64x128xbf16>
    %cst_35 = arith.constant dense<0.000000e+00> : vector<8x128xf32>
    %71 = tpu.matmul %68, %70, %cst_35 {dimension_numbers = #tpu.dot_dimension_numbers<[1], [0], [0], [1], [0, 0, 1, 1], [], []>} : vector<8x64xbf16>, vector<64x128xbf16>, vector<8x128xf32> -> vector<8x128xf32>
    %72 = vector.extract_strided_slice %67 {offsets = [1, 0], sizes = [8, 64], strides = [1, 1]} : vector<12x64xbf16> to vector<8x64xbf16>
    %c1_36 = arith.constant 1 : index
    %c0_37 = arith.constant 0 : index
    %c0_38 = arith.constant 0 : index
    %73 = vector.load %arg5[%c1_36, %c0_37, %c0_38] : memref<5x64x128xbf16, #tpu.memory_space<vmem>>, vector<1x64x128xbf16>
    %74 = vector.shape_cast %73 : vector<1x64x128xbf16> to vector<64x128xbf16>
    %cst_39 = arith.constant dense<0.000000e+00> : vector<8x128xf32>
    %75 = tpu.matmul %72, %74, %cst_39 {dimension_numbers = #tpu.dot_dimension_numbers<[1], [0], [0], [1], [0, 0, 1, 1], [], []>} : vector<8x64xbf16>, vector<64x128xbf16>, vector<8x128xf32> -> vector<8x128xf32>
    %76 = arith.addf %71, %75 : vector<8x128xf32>
    %77 = vector.extract_strided_slice %67 {offsets = [2, 0], sizes = [8, 64], strides = [1, 1]} : vector<12x64xbf16> to vector<8x64xbf16>
    %c2_40 = arith.constant 2 : index
    %c0_41 = arith.constant 0 : index
    %c0_42 = arith.constant 0 : index
    %78 = vector.load %arg5[%c2_40, %c0_41, %c0_42] : memref<5x64x128xbf16, #tpu.memory_space<vmem>>, vector<1x64x128xbf16>
    %79 = vector.shape_cast %78 : vector<1x64x128xbf16> to vector<64x128xbf16>
    %cst_43 = arith.constant dense<0.000000e+00> : vector<8x128xf32>
    %80 = tpu.matmul %77, %79, %cst_43 {dimension_numbers = #tpu.dot_dimension_numbers<[1], [0], [0], [1], [0, 0, 1, 1], [], []>} : vector<8x64xbf16>, vector<64x128xbf16>, vector<8x128xf32> -> vector<8x128xf32>
    %81 = arith.addf %76, %80 : vector<8x128xf32>
    %82 = vector.extract_strided_slice %67 {offsets = [3, 0], sizes = [8, 64], strides = [1, 1]} : vector<12x64xbf16> to vector<8x64xbf16>
    %c3_44 = arith.constant 3 : index
    %c0_45 = arith.constant 0 : index
    %c0_46 = arith.constant 0 : index
    %83 = vector.load %arg5[%c3_44, %c0_45, %c0_46] : memref<5x64x128xbf16, #tpu.memory_space<vmem>>, vector<1x64x128xbf16>
    %84 = vector.shape_cast %83 : vector<1x64x128xbf16> to vector<64x128xbf16>
    %cst_47 = arith.constant dense<0.000000e+00> : vector<8x128xf32>
    %85 = tpu.matmul %82, %84, %cst_47 {dimension_numbers = #tpu.dot_dimension_numbers<[1], [0], [0], [1], [0, 0, 1, 1], [], []>} : vector<8x64xbf16>, vector<64x128xbf16>, vector<8x128xf32> -> vector<8x128xf32>
    %86 = arith.addf %81, %85 : vector<8x128xf32>
    %87 = vector.extract_strided_slice %67 {offsets = [4, 0], sizes = [8, 64], strides = [1, 1]} : vector<12x64xbf16> to vector<8x64xbf16>
    %c4_48 = arith.constant 4 : index
    %c0_49 = arith.constant 0 : index
    %c0_50 = arith.constant 0 : index
    %88 = vector.load %arg5[%c4_48, %c0_49, %c0_50] : memref<5x64x128xbf16, #tpu.memory_space<vmem>>, vector<1x64x128xbf16>
    %89 = vector.shape_cast %88 : vector<1x64x128xbf16> to vector<64x128xbf16>
    %cst_51 = arith.constant dense<0.000000e+00> : vector<8x128xf32>
    %90 = tpu.matmul %87, %89, %cst_51 {dimension_numbers = #tpu.dot_dimension_numbers<[1], [0], [0], [1], [0, 0, 1, 1], [], []>} : vector<8x64xbf16>, vector<64x128xbf16>, vector<8x128xf32> -> vector<8x128xf32>
    %91 = arith.addf %86, %90 : vector<8x128xf32>
    %c0_52 = arith.constant 0 : index
    %c0_53 = arith.constant 0 : index
    %92 = vector.load %arg6[%c0_52, %c0_53] : memref<1x128xf32, #tpu.memory_space<vmem>>, vector<1x128xf32>
    %93 = vector.broadcast %92 : vector<1x128xf32> to vector<8x128xf32>
    %94 = arith.addf %91, %93 : vector<8x128xf32>
    %95 = math.tanh %94 : vector<8x128xf32>
    %96 = arith.truncf %95 : vector<8x128xf32> to vector<8x128xbf16>
    %97 = vector.extract_strided_slice %96 {offsets = [0, 0], sizes = [1, 128], strides = [1, 1]} : vector<8x128xbf16> to vector<1x128xbf16>
    %98 = vector.extract_strided_slice %96 {offsets = [1, 0], sizes = [1, 128], strides = [1, 1]} : vector<8x128xbf16> to vector<1x128xbf16>
    %99 = vector.extract_strided_slice %96 {offsets = [2, 0], sizes = [1, 128], strides = [1, 1]} : vector<8x128xbf16> to vector<1x128xbf16>
    %100 = vector.extract_strided_slice %96 {offsets = [3, 0], sizes = [1, 128], strides = [1, 1]} : vector<8x128xbf16> to vector<1x128xbf16>
    %101 = vector.extract_strided_slice %96 {offsets = [4, 0], sizes = [1, 128], strides = [1, 1]} : vector<8x128xbf16> to vector<1x128xbf16>
    %102 = vector.extract_strided_slice %96 {offsets = [5, 0], sizes = [1, 128], strides = [1, 1]} : vector<8x128xbf16> to vector<1x128xbf16>
    %103 = vector.extract_strided_slice %96 {offsets = [6, 0], sizes = [1, 128], strides = [1, 1]} : vector<8x128xbf16> to vector<1x128xbf16>
    %104 = vector.extract_strided_slice %96 {offsets = [7, 0], sizes = [1, 128], strides = [1, 1]} : vector<8x128xbf16> to vector<1x128xbf16>
    %105 = tpu.concatenate %97, %98, %99, %100, %101, %102, %103, %104 in 1 : vector<1x128xbf16>, vector<1x128xbf16>, vector<1x128xbf16>, vector<1x128xbf16>, vector<1x128xbf16>, vector<1x128xbf16>, vector<1x128xbf16>, vector<1x128xbf16> -> vector<1x1024xbf16>
    %106 = tpu.concatenate %52, %105 in 0 : vector<1x1024xbf16>, vector<1x1024xbf16> -> vector<2x1024xbf16>
    %c0_54 = arith.constant 0 : index
    %c0_55 = arith.constant 0 : index
    %c0_56 = arith.constant 0 : index
    %107 = vector.load %arg2[%c0_54, %c0_55, %c0_56] : memref<2x1x7xf32, #tpu.memory_space<vmem>>, vector<1x1x7xf32>
    %108 = vector.shape_cast %107 : vector<1x1x7xf32> to vector<1x7xf32>
    %c1_57 = arith.constant 1 : index
    %c0_58 = arith.constant 0 : index
    %c0_59 = arith.constant 0 : index
    %109 = vector.load %arg2[%c1_57, %c0_58, %c0_59] : memref<2x1x7xf32, #tpu.memory_space<vmem>>, vector<1x1x7xf32>
    %110 = vector.shape_cast %109 : vector<1x1x7xf32> to vector<1x7xf32>
    %111 = tpu.concatenate %108, %110 in 0 : vector<1x7xf32>, vector<1x7xf32> -> vector<2x7xf32>
    %112 = math.tanh %111 : vector<2x7xf32>
    %113 = arith.truncf %112 : vector<2x7xf32> to vector<2x7xbf16>
    %c0_60 = arith.constant 0 : index
    %c0_61 = arith.constant 0 : index
    %114 = vector.load %arg7[%c0_60, %c0_61] : memref<1024x128xbf16, #tpu.memory_space<vmem>>, vector<1024x128xbf16>
    %cst_62 = arith.constant dense<0.000000e+00> : vector<2x128xf32>
    %115 = tpu.matmul %106, %114, %cst_62 {dimension_numbers = #tpu.dot_dimension_numbers<[1], [0], [0], [1], [0, 0, 1, 1], [], []>} : vector<2x1024xbf16>, vector<1024x128xbf16>, vector<2x128xf32> -> vector<2x128xf32>
    %c0_63 = arith.constant 0 : index
    %c0_64 = arith.constant 0 : index
    %116 = vector.load %arg8[%c0_63, %c0_64] : memref<7x128xbf16, #tpu.memory_space<vmem>>, vector<7x128xbf16>
    %cst_65 = arith.constant dense<0.000000e+00> : vector<2x128xf32>
    %117 = tpu.matmul %113, %116, %cst_65 {dimension_numbers = #tpu.dot_dimension_numbers<[1], [0], [0], [1], [0, 0, 1, 1], [], []>} : vector<2x7xbf16>, vector<7x128xbf16>, vector<2x128xf32> -> vector<2x128xf32>
    %118 = arith.addf %115, %117 : vector<2x128xf32>
    %c0_66 = arith.constant 0 : index
    %c0_67 = arith.constant 0 : index
    %119 = vector.load %arg9[%c0_66, %c0_67] : memref<1x128xf32, #tpu.memory_space<vmem>>, vector<1x128xf32>
    %120 = vector.broadcast %119 : vector<1x128xf32> to vector<2x128xf32>
    %121 = arith.addf %118, %120 : vector<2x128xf32>
    %122 = arith.truncf %121 : vector<2x128xf32> to vector<2x128xbf16>
    %c0_68 = arith.constant 0 : index
    %c0_69 = arith.constant 0 : index
    %123 = vector.load %arg10[%c0_68, %c0_69] : memref<128x64xbf16, #tpu.memory_space<vmem>>, vector<128x64xbf16>
    %cst_70 = arith.constant dense<0.000000e+00> : vector<2x64xf32>
    %124 = tpu.matmul %122, %123, %cst_70 {dimension_numbers = #tpu.dot_dimension_numbers<[1], [0], [0], [1], [0, 0, 1, 1], [], []>} : vector<2x128xbf16>, vector<128x64xbf16>, vector<2x64xf32> -> vector<2x64xf32>
    %c0_71 = arith.constant 0 : index
    %c0_72 = arith.constant 0 : index
    %125 = vector.load %arg11[%c0_71, %c0_72] : memref<1x64xf32, #tpu.memory_space<vmem>>, vector<1x64xf32>
    %126 = vector.broadcast %125 : vector<1x64xf32> to vector<2x64xf32>
    %127 = arith.addf %124, %126 : vector<2x64xf32>
    %cst_73 = arith.constant 0.000000e+00 : f32
    %128 = vector.broadcast %cst_73 : f32 to vector<2x64xf32>
    %129 = arith.cmpf ogt, %127, %128 : vector<2x64xf32>
    %cst_74 = arith.constant 0.00999999977 : f32
    %130 = vector.broadcast %cst_74 : f32 to vector<2x64xf32>
    %131 = arith.mulf %130, %127 : vector<2x64xf32>
    %132 = arith.select %129, %127, %131 : vector<2x64xi1>, vector<2x64xf32>
    %133 = arith.truncf %132 : vector<2x64xf32> to vector<2x64xbf16>
    %c0_75 = arith.constant 0 : index
    %c0_76 = arith.constant 0 : index
    %134 = vector.load %arg12[%c0_75, %c0_76] : memref<64x128xbf16, #tpu.memory_space<vmem>>, vector<64x128xbf16>
    %cst_77 = arith.constant dense<0.000000e+00> : vector<2x128xf32>
    %135 = tpu.matmul %133, %134, %cst_77 {dimension_numbers = #tpu.dot_dimension_numbers<[1], [0], [0], [1], [0, 0, 1, 1], [], []>} : vector<2x64xbf16>, vector<64x128xbf16>, vector<2x128xf32> -> vector<2x128xf32>
    %c0_78 = arith.constant 0 : index
    %c0_79 = arith.constant 0 : index
    %136 = vector.load %arg13[%c0_78, %c0_79] : memref<1x128xf32, #tpu.memory_space<vmem>>, vector<1x128xf32>
    %137 = vector.broadcast %136 : vector<1x128xf32> to vector<2x128xf32>
    %138 = arith.addf %135, %137 : vector<2x128xf32>
    %139 = arith.truncf %138 : vector<2x128xf32> to vector<2x128xbf16>
    %c0_80 = arith.constant 0 : index
    %c0_81 = arith.constant 0 : index
    %140 = vector.load %arg14[%c0_80, %c0_81] : memref<128x1029xbf16, #tpu.memory_space<vmem>>, vector<128x1029xbf16>
    %cst_82 = arith.constant dense<0.000000e+00> : vector<2x1029xf32>
    %141 = tpu.matmul %139, %140, %cst_82 {dimension_numbers = #tpu.dot_dimension_numbers<[1], [0], [0], [1], [0, 0, 1, 1], [], []>} : vector<2x128xbf16>, vector<128x1029xbf16>, vector<2x1029xf32> -> vector<2x1029xf32>
    %c0_83 = arith.constant 0 : index
    %c0_84 = arith.constant 0 : index
    %142 = vector.load %arg15[%c0_83, %c0_84] : memref<1x1029xf32, #tpu.memory_space<vmem>>, vector<1x1029xf32>
    %143 = vector.broadcast %142 : vector<1x1029xf32> to vector<2x1029xf32>
    %144 = arith.addf %141, %143 : vector<2x1029xf32>
    %145 = math.tanh %144 : vector<2x1029xf32>
    %146 = vector.extract_strided_slice %145 {offsets = [0, 1024], sizes = [2, 3], strides = [1, 1]} : vector<2x1029xf32> to vector<2x3xf32>
    %cst_85 = arith.constant dense<0xFF800000> : vector<2xf32>
    %147 = vector.multi_reduction <maximumf>, %146, %cst_85 [1] : vector<2x3xf32> to vector<2xf32>
    %148 = vector.shape_cast %147 : vector<2xf32> to vector<2x1xf32>
    %149 = vector.broadcast %148 : vector<2x1xf32> to vector<2x3xf32>
    %150 = arith.subf %146, %149 : vector<2x3xf32>
    %151 = math.exp %150 : vector<2x3xf32>
    %cst_86 = arith.constant dense<0.000000e+00> : vector<2xf32>
    %152 = vector.multi_reduction <add>, %151, %cst_86 [1] : vector<2x3xf32> to vector<2xf32>
    %153 = vector.shape_cast %152 : vector<2xf32> to vector<2x1xf32>
    %154 = vector.broadcast %153 : vector<2x1xf32> to vector<2x3xf32>
    %155 = arith.divf %151, %154 : vector<2x3xf32>
    %156 = vector.extract_strided_slice %145 {offsets = [0, 1027], sizes = [2, 2], strides = [1, 1]} : vector<2x1029xf32> to vector<2x2xf32>
    %157 = vector.extract_strided_slice %155 {offsets = [0, 0], sizes = [1, 3], strides = [1, 1]} : vector<2x3xf32> to vector<1x3xf32>
    %c0_87 = arith.constant 0 : index
    %c0_88 = arith.constant 0 : index
    %c0_89 = arith.constant 0 : index
    %158 = vector.load %arg21[%c0_87, %c0_88, %c0_89] : memref<2x1x3xf32, #tpu.memory_space<vmem>>, vector<1x1x3xf32>
    %159 = vector.shape_cast %158 : vector<1x1x3xf32> to vector<1x3xf32>
    %160 = vector.shape_cast %157 : vector<1x3xf32> to vector<1x1x3xf32>
    tpu.vector_store %arg21[%c0_87, %c0_88, %c0_89], %160 {strides = array<i32>} : memref<2x1x3xf32, #tpu.memory_space<vmem>>, vector<1x1x3xf32>,
    %161 = vector.extract_strided_slice %156 {offsets = [0, 0], sizes = [1, 2], strides = [1, 1]} : vector<2x2xf32> to vector<1x2xf32>
    %c0_90 = arith.constant 0 : index
    %c0_91 = arith.constant 0 : index
    %c0_92 = arith.constant 0 : index
    %162 = vector.load %arg22[%c0_90, %c0_91, %c0_92] : memref<2x1x2xf32, #tpu.memory_space<vmem>>, vector<1x1x2xf32>
    %163 = vector.shape_cast %162 : vector<1x1x2xf32> to vector<1x2xf32>
    %164 = vector.shape_cast %161 : vector<1x2xf32> to vector<1x1x2xf32>
    tpu.vector_store %arg22[%c0_90, %c0_91, %c0_92], %164 {strides = array<i32>} : memref<2x1x2xf32, #tpu.memory_space<vmem>>, vector<1x1x2xf32>,
    %165 = vector.extract_strided_slice %155 {offsets = [1, 0], sizes = [1, 3], strides = [1, 1]} : vector<2x3xf32> to vector<1x3xf32>
    %c1_93 = arith.constant 1 : index
    %c0_94 = arith.constant 0 : index
    %c0_95 = arith.constant 0 : index
    %166 = vector.load %arg21[%c1_93, %c0_94, %c0_95] : memref<2x1x3xf32, #tpu.memory_space<vmem>>, vector<1x1x3xf32>
    %167 = vector.shape_cast %166 : vector<1x1x3xf32> to vector<1x3xf32>
    %168 = vector.shape_cast %165 : vector<1x3xf32> to vector<1x1x3xf32>
    tpu.vector_store %arg21[%c1_93, %c0_94, %c0_95], %168 {strides = array<i32>} : memref<2x1x3xf32, #tpu.memory_space<vmem>>, vector<1x1x3xf32>,
    %169 = vector.extract_strided_slice %156 {offsets = [1, 0], sizes = [1, 2], strides = [1, 1]} : vector<2x2xf32> to vector<1x2xf32>
    %c1_96 = arith.constant 1 : index
    %c0_97 = arith.constant 0 : index
    %c0_98 = arith.constant 0 : index
    %170 = vector.load %arg22[%c1_96, %c0_97, %c0_98] : memref<2x1x2xf32, #tpu.memory_space<vmem>>, vector<1x1x2xf32>
    %171 = vector.shape_cast %170 : vector<1x1x2xf32> to vector<1x2xf32>
    %172 = vector.shape_cast %169 : vector<1x2xf32> to vector<1x1x2xf32>
    tpu.vector_store %arg22[%c1_96, %c0_97, %c0_98], %172 {strides = array<i32>} : memref<2x1x2xf32, #tpu.memory_space<vmem>>, vector<1x1x2xf32>,
    %173 = vector.extract_strided_slice %145 {offsets = [0, 0], sizes = [2, 1024], strides = [1, 1]} : vector<2x1029xf32> to vector<2x1024xf32>
    %174 = arith.truncf %173 : vector<2x1024xf32> to vector<2x1024xbf16>
    %cst_99 = arith.constant 0.000000e+00 : bf16
    %175 = vector.broadcast %cst_99 : bf16 to vector<4x128xbf16>
    %176 = vector.extract_strided_slice %174 {offsets = [0, 0], sizes = [1, 1024], strides = [1, 1]} : vector<2x1024xbf16> to vector<1x1024xbf16>
    %177 = vector.extract_strided_slice %176 {offsets = [0, 0], sizes = [1, 128], strides = [1, 1]} : vector<1x1024xbf16> to vector<1x128xbf16>
    %178 = vector.extract_strided_slice %176 {offsets = [0, 128], sizes = [1, 128], strides = [1, 1]} : vector<1x1024xbf16> to vector<1x128xbf16>
    %179 = vector.extract_strided_slice %176 {offsets = [0, 256], sizes = [1, 128], strides = [1, 1]} : vector<1x1024xbf16> to vector<1x128xbf16>
    %180 = vector.extract_strided_slice %176 {offsets = [0, 384], sizes = [1, 128], strides = [1, 1]} : vector<1x1024xbf16> to vector<1x128xbf16>
    %181 = vector.extract_strided_slice %176 {offsets = [0, 512], sizes = [1, 128], strides = [1, 1]} : vector<1x1024xbf16> to vector<1x128xbf16>
    %182 = vector.extract_strided_slice %176 {offsets = [0, 640], sizes = [1, 128], strides = [1, 1]} : vector<1x1024xbf16> to vector<1x128xbf16>
    %183 = vector.extract_strided_slice %176 {offsets = [0, 768], sizes = [1, 128], strides = [1, 1]} : vector<1x1024xbf16> to vector<1x128xbf16>
    %184 = vector.extract_strided_slice %176 {offsets = [0, 896], sizes = [1, 128], strides = [1, 1]} : vector<1x1024xbf16> to vector<1x128xbf16>
    %185 = tpu.concatenate %175, %177, %178, %179, %180, %181, %182, %183, %184, %175 in 0 : vector<4x128xbf16>, vector<1x128xbf16>, vector<1x128xbf16>, vector<1x128xbf16>, vector<1x128xbf16>, vector<1x128xbf16>, vector<1x128xbf16>, vector<1x128xbf16>, vector<1x128xbf16>, vector<4x128xbf16> -> vector<16x128xbf16>
    %186 = vector.extract_strided_slice %185 {offsets = [0, 0], sizes = [12, 128], strides = [1, 1]} : vector<16x128xbf16> to vector<12x128xbf16>
    %c0_100 = arith.constant 0 : index
    %c0_101 = arith.constant 0 : index
    %c0_102 = arith.constant 0 : index
    %187 = vector.load %arg16[%c0_100, %c0_101, %c0_102] : memref<5x128x64xbf16, #tpu.memory_space<vmem>>, vector<1x128x64xbf16>
    %188 = vector.shape_cast %187 : vector<1x128x64xbf16> to vector<128x64xbf16>
    %cst_103 = arith.constant dense<0.000000e+00> : vector<12x64xf32>
    %189 = tpu.matmul %186, %188, %cst_103 {dimension_numbers = #tpu.dot_dimension_numbers<[1], [0], [0], [1], [0, 0, 1, 1], [], []>} : vector<12x128xbf16>, vector<128x64xbf16>, vector<12x64xf32> -> vector<12x64xf32>
    %190 = vector.extract_strided_slice %185 {offsets = [1, 0], sizes = [12, 128], strides = [1, 1]} : vector<16x128xbf16> to vector<12x128xbf16>
    %c1_104 = arith.constant 1 : index
    %c0_105 = arith.constant 0 : index
    %c0_106 = arith.constant 0 : index
    %191 = vector.load %arg16[%c1_104, %c0_105, %c0_106] : memref<5x128x64xbf16, #tpu.memory_space<vmem>>, vector<1x128x64xbf16>
    %192 = vector.shape_cast %191 : vector<1x128x64xbf16> to vector<128x64xbf16>
    %cst_107 = arith.constant dense<0.000000e+00> : vector<12x64xf32>
    %193 = tpu.matmul %190, %192, %cst_107 {dimension_numbers = #tpu.dot_dimension_numbers<[1], [0], [0], [1], [0, 0, 1, 1], [], []>} : vector<12x128xbf16>, vector<128x64xbf16>, vector<12x64xf32> -> vector<12x64xf32>
    %194 = arith.addf %189, %193 : vector<12x64xf32>
    %195 = vector.extract_strided_slice %185 {offsets = [2, 0], sizes = [12, 128], strides = [1, 1]} : vector<16x128xbf16> to vector<12x128xbf16>
    %c2_108 = arith.constant 2 : index
    %c0_109 = arith.constant 0 : index
    %c0_110 = arith.constant 0 : index
    %196 = vector.load %arg16[%c2_108, %c0_109, %c0_110] : memref<5x128x64xbf16, #tpu.memory_space<vmem>>, vector<1x128x64xbf16>
    %197 = vector.shape_cast %196 : vector<1x128x64xbf16> to vector<128x64xbf16>
    %cst_111 = arith.constant dense<0.000000e+00> : vector<12x64xf32>
    %198 = tpu.matmul %195, %197, %cst_111 {dimension_numbers = #tpu.dot_dimension_numbers<[1], [0], [0], [1], [0, 0, 1, 1], [], []>} : vector<12x128xbf16>, vector<128x64xbf16>, vector<12x64xf32> -> vector<12x64xf32>
    %199 = arith.addf %194, %198 : vector<12x64xf32>
    %200 = vector.extract_strided_slice %185 {offsets = [3, 0], sizes = [12, 128], strides = [1, 1]} : vector<16x128xbf16> to vector<12x128xbf16>
    %c3_112 = arith.constant 3 : index
    %c0_113 = arith.constant 0 : index
    %c0_114 = arith.constant 0 : index
    %201 = vector.load %arg16[%c3_112, %c0_113, %c0_114] : memref<5x128x64xbf16, #tpu.memory_space<vmem>>, vector<1x128x64xbf16>
    %202 = vector.shape_cast %201 : vector<1x128x64xbf16> to vector<128x64xbf16>
    %cst_115 = arith.constant dense<0.000000e+00> : vector<12x64xf32>
    %203 = tpu.matmul %200, %202, %cst_115 {dimension_numbers = #tpu.dot_dimension_numbers<[1], [0], [0], [1], [0, 0, 1, 1], [], []>} : vector<12x128xbf16>, vector<128x64xbf16>, vector<12x64xf32> -> vector<12x64xf32>
    %204 = arith.addf %199, %203 : vector<12x64xf32>
    %205 = vector.extract_strided_slice %185 {offsets = [4, 0], sizes = [12, 128], strides = [1, 1]} : vector<16x128xbf16> to vector<12x128xbf16>
    %c4_116 = arith.constant 4 : index
    %c0_117 = arith.constant 0 : index
    %c0_118 = arith.constant 0 : index
    %206 = vector.load %arg16[%c4_116, %c0_117, %c0_118] : memref<5x128x64xbf16, #tpu.memory_space<vmem>>, vector<1x128x64xbf16>
    %207 = vector.shape_cast %206 : vector<1x128x64xbf16> to vector<128x64xbf16>
    %cst_119 = arith.constant dense<0.000000e+00> : vector<12x64xf32>
    %208 = tpu.matmul %205, %207, %cst_119 {dimension_numbers = #tpu.dot_dimension_numbers<[1], [0], [0], [1], [0, 0, 1, 1], [], []>} : vector<12x128xbf16>, vector<128x64xbf16>, vector<12x64xf32> -> vector<12x64xf32>
    %209 = arith.addf %204, %208 : vector<12x64xf32>
    %c0_120 = arith.constant 0 : index
    %c0_121 = arith.constant 0 : index
    %210 = vector.load %arg17[%c0_120, %c0_121] : memref<1x64xf32, #tpu.memory_space<vmem>>, vector<1x64xf32>
    %211 = vector.broadcast %210 : vector<1x64xf32> to vector<12x64xf32>
    %212 = arith.addf %209, %211 : vector<12x64xf32>
    %213 = arith.truncf %212 : vector<12x64xf32> to vector<12x64xbf16>
    %cst_122 = arith.constant 0.000000e+00 : bf16
    %214 = vector.broadcast %cst_122 : bf16 to vector<4x64xbf16>
    %215 = tpu.concatenate %214, %213, %214 in 0 : vector<4x64xbf16>, vector<12x64xbf16>, vector<4x64xbf16> -> vector<20x64xbf16>
    %216 = vector.extract_strided_slice %215 {offsets = [0, 0], sizes = [16, 64], strides = [1, 1]} : vector<20x64xbf16> to vector<16x64xbf16>
    %c0_123 = arith.constant 0 : index
    %c0_124 = arith.constant 0 : index
    %c0_125 = arith.constant 0 : index
    %217 = vector.load %arg18[%c0_123, %c0_124, %c0_125] : memref<5x64x4xbf16, #tpu.memory_space<vmem>>, vector<1x64x4xbf16>
    %218 = vector.shape_cast %217 : vector<1x64x4xbf16> to vector<64x4xbf16>
    %cst_126 = arith.constant dense<0.000000e+00> : vector<16x4xf32>
    %219 = tpu.matmul %216, %218, %cst_126 {dimension_numbers = #tpu.dot_dimension_numbers<[1], [0], [0], [1], [0, 0, 1, 1], [], []>} : vector<16x64xbf16>, vector<64x4xbf16>, vector<16x4xf32> -> vector<16x4xf32>
    %220 = vector.extract_strided_slice %215 {offsets = [1, 0], sizes = [16, 64], strides = [1, 1]} : vector<20x64xbf16> to vector<16x64xbf16>
    %c1_127 = arith.constant 1 : index
    %c0_128 = arith.constant 0 : index
    %c0_129 = arith.constant 0 : index
    %221 = vector.load %arg18[%c1_127, %c0_128, %c0_129] : memref<5x64x4xbf16, #tpu.memory_space<vmem>>, vector<1x64x4xbf16>
    %222 = vector.shape_cast %221 : vector<1x64x4xbf16> to vector<64x4xbf16>
    %cst_130 = arith.constant dense<0.000000e+00> : vector<16x4xf32>
    %223 = tpu.matmul %220, %222, %cst_130 {dimension_numbers = #tpu.dot_dimension_numbers<[1], [0], [0], [1], [0, 0, 1, 1], [], []>} : vector<16x64xbf16>, vector<64x4xbf16>, vector<16x4xf32> -> vector<16x4xf32>
    %224 = arith.addf %219, %223 : vector<16x4xf32>
    %225 = vector.extract_strided_slice %215 {offsets = [2, 0], sizes = [16, 64], strides = [1, 1]} : vector<20x64xbf16> to vector<16x64xbf16>
    %c2_131 = arith.constant 2 : index
    %c0_132 = arith.constant 0 : index
    %c0_133 = arith.constant 0 : index
    %226 = vector.load %arg18[%c2_131, %c0_132, %c0_133] : memref<5x64x4xbf16, #tpu.memory_space<vmem>>, vector<1x64x4xbf16>
    %227 = vector.shape_cast %226 : vector<1x64x4xbf16> to vector<64x4xbf16>
    %cst_134 = arith.constant dense<0.000000e+00> : vector<16x4xf32>
    %228 = tpu.matmul %225, %227, %cst_134 {dimension_numbers = #tpu.dot_dimension_numbers<[1], [0], [0], [1], [0, 0, 1, 1], [], []>} : vector<16x64xbf16>, vector<64x4xbf16>, vector<16x4xf32> -> vector<16x4xf32>
    %229 = arith.addf %224, %228 : vector<16x4xf32>
    %230 = vector.extract_strided_slice %215 {offsets = [3, 0], sizes = [16, 64], strides = [1, 1]} : vector<20x64xbf16> to vector<16x64xbf16>
    %c3_135 = arith.constant 3 : index
    %c0_136 = arith.constant 0 : index
    %c0_137 = arith.constant 0 : index
    %231 = vector.load %arg18[%c3_135, %c0_136, %c0_137] : memref<5x64x4xbf16, #tpu.memory_space<vmem>>, vector<1x64x4xbf16>
    %232 = vector.shape_cast %231 : vector<1x64x4xbf16> to vector<64x4xbf16>
    %cst_138 = arith.constant dense<0.000000e+00> : vector<16x4xf32>
    %233 = tpu.matmul %230, %232, %cst_138 {dimension_numbers = #tpu.dot_dimension_numbers<[1], [0], [0], [1], [0, 0, 1, 1], [], []>} : vector<16x64xbf16>, vector<64x4xbf16>, vector<16x4xf32> -> vector<16x4xf32>
    %234 = arith.addf %229, %233 : vector<16x4xf32>
    %235 = vector.extract_strided_slice %215 {offsets = [4, 0], sizes = [16, 64], strides = [1, 1]} : vector<20x64xbf16> to vector<16x64xbf16>
    %c4_139 = arith.constant 4 : index
    %c0_140 = arith.constant 0 : index
    %c0_141 = arith.constant 0 : index
    %236 = vector.load %arg18[%c4_139, %c0_140, %c0_141] : memref<5x64x4xbf16, #tpu.memory_space<vmem>>, vector<1x64x4xbf16>
    %237 = vector.shape_cast %236 : vector<1x64x4xbf16> to vector<64x4xbf16>
    %cst_142 = arith.constant dense<0.000000e+00> : vector<16x4xf32>
    %238 = tpu.matmul %235, %237, %cst_142 {dimension_numbers = #tpu.dot_dimension_numbers<[1], [0], [0], [1], [0, 0, 1, 1], [], []>} : vector<16x64xbf16>, vector<64x4xbf16>, vector<16x4xf32> -> vector<16x4xf32>
    %239 = arith.addf %234, %238 : vector<16x4xf32>
    %c0_143 = arith.constant 0 : index
    %c0_144 = arith.constant 0 : index
    %240 = vector.load %arg19[%c0_143, %c0_144] : memref<1x4xf32, #tpu.memory_space<vmem>>, vector<1x4xf32>
    %241 = vector.broadcast %240 : vector<1x4xf32> to vector<16x4xf32>
    %242 = arith.addf %239, %241 : vector<16x4xf32>
    %c0_145 = arith.constant 0 : index
    %c0_146 = arith.constant 0 : index
    %c0_147 = arith.constant 0 : index
    %243 = vector.load %arg20[%c0_145, %c0_146, %c0_147] : memref<2x16x4xf32, #tpu.memory_space<vmem>>, vector<1x16x4xf32>
    %244 = vector.shape_cast %243 : vector<1x16x4xf32> to vector<16x4xf32>
    %245 = vector.shape_cast %242 : vector<16x4xf32> to vector<1x16x4xf32>
    tpu.vector_store %arg20[%c0_145, %c0_146, %c0_147], %245 {strides = array<i32>} : memref<2x16x4xf32, #tpu.memory_space<vmem>>, vector<1x16x4xf32>,
    %246 = vector.extract_strided_slice %174 {offsets = [1, 0], sizes = [1, 1024], strides = [1, 1]} : vector<2x1024xbf16> to vector<1x1024xbf16>
    %247 = vector.extract_strided_slice %246 {offsets = [0, 0], sizes = [1, 128], strides = [1, 1]} : vector<1x1024xbf16> to vector<1x128xbf16>
    %248 = vector.extract_strided_slice %246 {offsets = [0, 128], sizes = [1, 128], strides = [1, 1]} : vector<1x1024xbf16> to vector<1x128xbf16>
    %249 = vector.extract_strided_slice %246 {offsets = [0, 256], sizes = [1, 128], strides = [1, 1]} : vector<1x1024xbf16> to vector<1x128xbf16>
    %250 = vector.extract_strided_slice %246 {offsets = [0, 384], sizes = [1, 128], strides = [1, 1]} : vector<1x1024xbf16> to vector<1x128xbf16>
    %251 = vector.extract_strided_slice %246 {offsets = [0, 512], sizes = [1, 128], strides = [1, 1]} : vector<1x1024xbf16> to vector<1x128xbf16>
    %252 = vector.extract_strided_slice %246 {offsets = [0, 640], sizes = [1, 128], strides = [1, 1]} : vector<1x1024xbf16> to vector<1x128xbf16>
    %253 = vector.extract_strided_slice %246 {offsets = [0, 768], sizes = [1, 128], strides = [1, 1]} : vector<1x1024xbf16> to vector<1x128xbf16>
    %254 = vector.extract_strided_slice %246 {offsets = [0, 896], sizes = [1, 128], strides = [1, 1]} : vector<1x1024xbf16> to vector<1x128xbf16>
    %255 = tpu.concatenate %175, %247, %248, %249, %250, %251, %252, %253, %254, %175 in 0 : vector<4x128xbf16>, vector<1x128xbf16>, vector<1x128xbf16>, vector<1x128xbf16>, vector<1x128xbf16>, vector<1x128xbf16>, vector<1x128xbf16>, vector<1x128xbf16>, vector<1x128xbf16>, vector<4x128xbf16> -> vector<16x128xbf16>
    %256 = vector.extract_strided_slice %255 {offsets = [0, 0], sizes = [12, 128], strides = [1, 1]} : vector<16x128xbf16> to vector<12x128xbf16>
    %c0_148 = arith.constant 0 : index
    %c0_149 = arith.constant 0 : index
    %c0_150 = arith.constant 0 : index
    %257 = vector.load %arg16[%c0_148, %c0_149, %c0_150] : memref<5x128x64xbf16, #tpu.memory_space<vmem>>, vector<1x128x64xbf16>
    %258 = vector.shape_cast %257 : vector<1x128x64xbf16> to vector<128x64xbf16>
    %cst_151 = arith.constant dense<0.000000e+00> : vector<12x64xf32>
    %259 = tpu.matmul %256, %258, %cst_151 {dimension_numbers = #tpu.dot_dimension_numbers<[1], [0], [0], [1], [0, 0, 1, 1], [], []>} : vector<12x128xbf16>, vector<128x64xbf16>, vector<12x64xf32> -> vector<12x64xf32>
    %260 = vector.extract_strided_slice %255 {offsets = [1, 0], sizes = [12, 128], strides = [1, 1]} : vector<16x128xbf16> to vector<12x128xbf16>
    %c1_152 = arith.constant 1 : index
    %c0_153 = arith.constant 0 : index
    %c0_154 = arith.constant 0 : index
    %261 = vector.load %arg16[%c1_152, %c0_153, %c0_154] : memref<5x128x64xbf16, #tpu.memory_space<vmem>>, vector<1x128x64xbf16>
    %262 = vector.shape_cast %261 : vector<1x128x64xbf16> to vector<128x64xbf16>
    %cst_155 = arith.constant dense<0.000000e+00> : vector<12x64xf32>
    %263 = tpu.matmul %260, %262, %cst_155 {dimension_numbers = #tpu.dot_dimension_numbers<[1], [0], [0], [1], [0, 0, 1, 1], [], []>} : vector<12x128xbf16>, vector<128x64xbf16>, vector<12x64xf32> -> vector<12x64xf32>
    %264 = arith.addf %259, %263 : vector<12x64xf32>
    %265 = vector.extract_strided_slice %255 {offsets = [2, 0], sizes = [12, 128], strides = [1, 1]} : vector<16x128xbf16> to vector<12x128xbf16>
    %c2_156 = arith.constant 2 : index
    %c0_157 = arith.constant 0 : index
    %c0_158 = arith.constant 0 : index
    %266 = vector.load %arg16[%c2_156, %c0_157, %c0_158] : memref<5x128x64xbf16, #tpu.memory_space<vmem>>, vector<1x128x64xbf16>
    %267 = vector.shape_cast %266 : vector<1x128x64xbf16> to vector<128x64xbf16>
    %cst_159 = arith.constant dense<0.000000e+00> : vector<12x64xf32>
    %268 = tpu.matmul %265, %267, %cst_159 {dimension_numbers = #tpu.dot_dimension_numbers<[1], [0], [0], [1], [0, 0, 1, 1], [], []>} : vector<12x128xbf16>, vector<128x64xbf16>, vector<12x64xf32> -> vector<12x64xf32>
    %269 = arith.addf %264, %268 : vector<12x64xf32>
    %270 = vector.extract_strided_slice %255 {offsets = [3, 0], sizes = [12, 128], strides = [1, 1]} : vector<16x128xbf16> to vector<12x128xbf16>
    %c3_160 = arith.constant 3 : index
    %c0_161 = arith.constant 0 : index
    %c0_162 = arith.constant 0 : index
    %271 = vector.load %arg16[%c3_160, %c0_161, %c0_162] : memref<5x128x64xbf16, #tpu.memory_space<vmem>>, vector<1x128x64xbf16>
    %272 = vector.shape_cast %271 : vector<1x128x64xbf16> to vector<128x64xbf16>
    %cst_163 = arith.constant dense<0.000000e+00> : vector<12x64xf32>
    %273 = tpu.matmul %270, %272, %cst_163 {dimension_numbers = #tpu.dot_dimension_numbers<[1], [0], [0], [1], [0, 0, 1, 1], [], []>} : vector<12x128xbf16>, vector<128x64xbf16>, vector<12x64xf32> -> vector<12x64xf32>
    %274 = arith.addf %269, %273 : vector<12x64xf32>
    %275 = vector.extract_strided_slice %255 {offsets = [4, 0], sizes = [12, 128], strides = [1, 1]} : vector<16x128xbf16> to vector<12x128xbf16>
    %c4_164 = arith.constant 4 : index
    %c0_165 = arith.constant 0 : index
    %c0_166 = arith.constant 0 : index
    %276 = vector.load %arg16[%c4_164, %c0_165, %c0_166] : memref<5x128x64xbf16, #tpu.memory_space<vmem>>, vector<1x128x64xbf16>
    %277 = vector.shape_cast %276 : vector<1x128x64xbf16> to vector<128x64xbf16>
    %cst_167 = arith.constant dense<0.000000e+00> : vector<12x64xf32>
    %278 = tpu.matmul %275, %277, %cst_167 {dimension_numbers = #tpu.dot_dimension_numbers<[1], [0], [0], [1], [0, 0, 1, 1], [], []>} : vector<12x128xbf16>, vector<128x64xbf16>, vector<12x64xf32> -> vector<12x64xf32>
    %279 = arith.addf %274, %278 : vector<12x64xf32>
    %c0_168 = arith.constant 0 : index
    %c0_169 = arith.constant 0 : index
    %280 = vector.load %arg17[%c0_168, %c0_169] : memref<1x64xf32, #tpu.memory_space<vmem>>, vector<1x64xf32>
    %281 = vector.broadcast %280 : vector<1x64xf32> to vector<12x64xf32>
    %282 = arith.addf %279, %281 : vector<12x64xf32>
    %283 = arith.truncf %282 : vector<12x64xf32> to vector<12x64xbf16>
    %cst_170 = arith.constant 0.000000e+00 : bf16
    %284 = vector.broadcast %cst_170 : bf16 to vector<4x64xbf16>
    %285 = tpu.concatenate %284, %283, %284 in 0 : vector<4x64xbf16>, vector<12x64xbf16>, vector<4x64xbf16> -> vector<20x64xbf16>
    %286 = vector.extract_strided_slice %285 {offsets = [0, 0], sizes = [16, 64], strides = [1, 1]} : vector<20x64xbf16> to vector<16x64xbf16>
    %c0_171 = arith.constant 0 : index
    %c0_172 = arith.constant 0 : index
    %c0_173 = arith.constant 0 : index
    %287 = vector.load %arg18[%c0_171, %c0_172, %c0_173] : memref<5x64x4xbf16, #tpu.memory_space<vmem>>, vector<1x64x4xbf16>
    %288 = vector.shape_cast %287 : vector<1x64x4xbf16> to vector<64x4xbf16>
    %cst_174 = arith.constant dense<0.000000e+00> : vector<16x4xf32>
    %289 = tpu.matmul %286, %288, %cst_174 {dimension_numbers = #tpu.dot_dimension_numbers<[1], [0], [0], [1], [0, 0, 1, 1], [], []>} : vector<16x64xbf16>, vector<64x4xbf16>, vector<16x4xf32> -> vector<16x4xf32>
    %290 = vector.extract_strided_slice %285 {offsets = [1, 0], sizes = [16, 64], strides = [1, 1]} : vector<20x64xbf16> to vector<16x64xbf16>
    %c1_175 = arith.constant 1 : index
    %c0_176 = arith.constant 0 : index
    %c0_177 = arith.constant 0 : index
    %291 = vector.load %arg18[%c1_175, %c0_176, %c0_177] : memref<5x64x4xbf16, #tpu.memory_space<vmem>>, vector<1x64x4xbf16>
    %292 = vector.shape_cast %291 : vector<1x64x4xbf16> to vector<64x4xbf16>
    %cst_178 = arith.constant dense<0.000000e+00> : vector<16x4xf32>
    %293 = tpu.matmul %290, %292, %cst_178 {dimension_numbers = #tpu.dot_dimension_numbers<[1], [0], [0], [1], [0, 0, 1, 1], [], []>} : vector<16x64xbf16>, vector<64x4xbf16>, vector<16x4xf32> -> vector<16x4xf32>
    %294 = arith.addf %289, %293 : vector<16x4xf32>
    %295 = vector.extract_strided_slice %285 {offsets = [2, 0], sizes = [16, 64], strides = [1, 1]} : vector<20x64xbf16> to vector<16x64xbf16>
    %c2_179 = arith.constant 2 : index
    %c0_180 = arith.constant 0 : index
    %c0_181 = arith.constant 0 : index
    %296 = vector.load %arg18[%c2_179, %c0_180, %c0_181] : memref<5x64x4xbf16, #tpu.memory_space<vmem>>, vector<1x64x4xbf16>
    %297 = vector.shape_cast %296 : vector<1x64x4xbf16> to vector<64x4xbf16>
    %cst_182 = arith.constant dense<0.000000e+00> : vector<16x4xf32>
    %298 = tpu.matmul %295, %297, %cst_182 {dimension_numbers = #tpu.dot_dimension_numbers<[1], [0], [0], [1], [0, 0, 1, 1], [], []>} : vector<16x64xbf16>, vector<64x4xbf16>, vector<16x4xf32> -> vector<16x4xf32>
    %299 = arith.addf %294, %298 : vector<16x4xf32>
    %300 = vector.extract_strided_slice %285 {offsets = [3, 0], sizes = [16, 64], strides = [1, 1]} : vector<20x64xbf16> to vector<16x64xbf16>
    %c3_183 = arith.constant 3 : index
    %c0_184 = arith.constant 0 : index
    %c0_185 = arith.constant 0 : index
    %301 = vector.load %arg18[%c3_183, %c0_184, %c0_185] : memref<5x64x4xbf16, #tpu.memory_space<vmem>>, vector<1x64x4xbf16>
    %302 = vector.shape_cast %301 : vector<1x64x4xbf16> to vector<64x4xbf16>
    %cst_186 = arith.constant dense<0.000000e+00> : vector<16x4xf32>
    %303 = tpu.matmul %300, %302, %cst_186 {dimension_numbers = #tpu.dot_dimension_numbers<[1], [0], [0], [1], [0, 0, 1, 1], [], []>} : vector<16x64xbf16>, vector<64x4xbf16>, vector<16x4xf32> -> vector<16x4xf32>
    %304 = arith.addf %299, %303 : vector<16x4xf32>
    %305 = vector.extract_strided_slice %285 {offsets = [4, 0], sizes = [16, 64], strides = [1, 1]} : vector<20x64xbf16> to vector<16x64xbf16>
    %c4_187 = arith.constant 4 : index
    %c0_188 = arith.constant 0 : index
    %c0_189 = arith.constant 0 : index
    %306 = vector.load %arg18[%c4_187, %c0_188, %c0_189] : memref<5x64x4xbf16, #tpu.memory_space<vmem>>, vector<1x64x4xbf16>
    %307 = vector.shape_cast %306 : vector<1x64x4xbf16> to vector<64x4xbf16>
    %cst_190 = arith.constant dense<0.000000e+00> : vector<16x4xf32>
    %308 = tpu.matmul %305, %307, %cst_190 {dimension_numbers = #tpu.dot_dimension_numbers<[1], [0], [0], [1], [0, 0, 1, 1], [], []>} : vector<16x64xbf16>, vector<64x4xbf16>, vector<16x4xf32> -> vector<16x4xf32>
    %309 = arith.addf %304, %308 : vector<16x4xf32>
    %c0_191 = arith.constant 0 : index
    %c0_192 = arith.constant 0 : index
    %310 = vector.load %arg19[%c0_191, %c0_192] : memref<1x4xf32, #tpu.memory_space<vmem>>, vector<1x4xf32>
    %311 = vector.broadcast %310 : vector<1x4xf32> to vector<16x4xf32>
    %312 = arith.addf %309, %311 : vector<16x4xf32>
    %c1_193 = arith.constant 1 : index
    %c0_194 = arith.constant 0 : index
    %c0_195 = arith.constant 0 : index
    %313 = vector.load %arg20[%c1_193, %c0_194, %c0_195] : memref<2x16x4xf32, #tpu.memory_space<vmem>>, vector<1x16x4xf32>
    %314 = vector.shape_cast %313 : vector<1x16x4xf32> to vector<16x4xf32>
    %315 = vector.shape_cast %312 : vector<16x4xf32> to vector<1x16x4xf32>
    tpu.vector_store %arg20[%c1_193, %c0_194, %c0_195], %315 {strides = array<i32>} : memref<2x16x4xf32, #tpu.memory_space<vmem>>, vector<1x16x4xf32>,
    return
  }
  func.func @transform_0(%arg0: i32) -> (i32, i32, i32) {
    %c0_i32 = arith.constant 0 : i32
    %c0_i32_0 = arith.constant 0 : i32
    %c0_i32_1 = arith.constant 0 : i32
    return %arg0, %c0_i32, %c0_i32_0 : i32, i32, i32
  }
  func.func @transform_1(%arg0: i32) -> (i32, i32, i32) {
    %c0_i32 = arith.constant 0 : i32
    %c0_i32_0 = arith.constant 0 : i32
    %c0_i32_1 = arith.constant 0 : i32
    return %arg0, %c0_i32, %c0_i32_0 : i32, i32, i32
  }
  func.func @transform_2(%arg0: i32) -> (i32, i32) {
    %c0_i32 = arith.constant 0 : i32
    %c0_i32_0 = arith.constant 0 : i32
    %c0_i32_1 = arith.constant 0 : i32
    return %c0_i32, %c0_i32_0 : i32, i32
  }
  func.func @transform_3(%arg0: i32) -> (i32, i32) {
    %c0_i32 = arith.constant 0 : i32
    %c0_i32_0 = arith.constant 0 : i32
    %c0_i32_1 = arith.constant 0 : i32
    return %c0_i32, %c0_i32_0 : i32, i32
  }
  func.func @transform_4(%arg0: i32) -> (i32, i32, i32) {
    %c0_i32 = arith.constant 0 : i32
    %c0_i32_0 = arith.constant 0 : i32
    %c0_i32_1 = arith.constant 0 : i32
    %c0_i32_2 = arith.constant 0 : i32
    return %c0_i32, %c0_i32_0, %c0_i32_1 : i32, i32, i32
  }
  func.func @transform_5(%arg0: i32) -> (i32, i32) {
    %c0_i32 = arith.constant 0 : i32
    %c0_i32_0 = arith.constant 0 : i32
    %c0_i32_1 = arith.constant 0 : i32
    return %c0_i32, %c0_i32_0 : i32, i32
  }
  func.func @transform_6(%arg0: i32) -> (i32, i32) {
    %c0_i32 = arith.constant 0 : i32
    %c0_i32_0 = arith.constant 0 : i32
    %c0_i32_1 = arith.constant 0 : i32
    return %c0_i32, %c0_i32_0 : i32, i32
  }
  func.func @transform_7(%arg0: i32) -> (i32, i32) {
    %c0_i32 = arith.constant 0 : i32
    %c0_i32_0 = arith.constant 0 : i32
    %c0_i32_1 = arith.constant 0 : i32
    return %c0_i32, %c0_i32_0 : i32, i32
  }
  func.func @transform_8(%arg0: i32) -> (i32, i32) {
    %c0_i32 = arith.constant 0 : i32
    %c0_i32_0 = arith.constant 0 : i32
    %c0_i32_1 = arith.constant 0 : i32
    return %c0_i32, %c0_i32_0 : i32, i32
  }
  func.func @transform_9(%arg0: i32) -> (i32, i32) {
    %c0_i32 = arith.constant 0 : i32
    %c0_i32_0 = arith.constant 0 : i32
    %c0_i32_1 = arith.constant 0 : i32
    return %c0_i32, %c0_i32_0 : i32, i32
  }
  func.func @transform_10(%arg0: i32) -> (i32, i32) {
    %c0_i32 = arith.constant 0 : i32
    %c0_i32_0 = arith.constant 0 : i32
    %c0_i32_1 = arith.constant 0 : i32
    return %c0_i32, %c0_i32_0 : i32, i32
  }
  func.func @transform_11(%arg0: i32) -> (i32, i32) {
    %c0_i32 = arith.constant 0 : i32
    %c0_i32_0 = arith.constant 0 : i32
    %c0_i32_1 = arith.constant 0 : i32
    return %c0_i32, %c0_i32_0 : i32, i32
  }
  func.func @transform_12(%arg0: i32) -> (i32, i32) {
    %c0_i32 = arith.constant 0 : i32
    %c0_i32_0 = arith.constant 0 : i32
    %c0_i32_1 = arith.constant 0 : i32
    return %c0_i32, %c0_i32_0 : i32, i32
  }
  func.func @transform_13(%arg0: i32) -> (i32, i32) {
    %c0_i32 = arith.constant 0 : i32
    %c0_i32_0 = arith.constant 0 : i32
    %c0_i32_1 = arith.constant 0 : i32
    return %c0_i32, %c0_i32_0 : i32, i32
  }
  func.func @transform_14(%arg0: i32) -> (i32, i32) {
    %c0_i32 = arith.constant 0 : i32
    %c0_i32_0 = arith.constant 0 : i32
    %c0_i32_1 = arith.constant 0 : i32
    return %c0_i32, %c0_i32_0 : i32, i32
  }
  func.func @transform_15(%arg0: i32) -> (i32, i32, i32) {
    %c0_i32 = arith.constant 0 : i32
    %c0_i32_0 = arith.constant 0 : i32
    %c0_i32_1 = arith.constant 0 : i32
    %c0_i32_2 = arith.constant 0 : i32
    return %c0_i32, %c0_i32_0, %c0_i32_1 : i32, i32, i32
  }
  func.func @transform_16(%arg0: i32) -> (i32, i32) {
    %c0_i32 = arith.constant 0 : i32
    %c0_i32_0 = arith.constant 0 : i32
    %c0_i32_1 = arith.constant 0 : i32
    return %c0_i32, %c0_i32_0 : i32, i32
  }
  func.func @transform_17(%arg0: i32) -> (i32, i32, i32) {
    %c0_i32 = arith.constant 0 : i32
    %c0_i32_0 = arith.constant 0 : i32
    %c0_i32_1 = arith.constant 0 : i32
    %c0_i32_2 = arith.constant 0 : i32
    return %c0_i32, %c0_i32_0, %c0_i32_1 : i32, i32, i32
  }
  func.func @transform_18(%arg0: i32) -> (i32, i32) {
    %c0_i32 = arith.constant 0 : i32
    %c0_i32_0 = arith.constant 0 : i32
    %c0_i32_1 = arith.constant 0 : i32
    return %c0_i32, %c0_i32_0 : i32, i32
  }
  func.func @transform_19(%arg0: i32) -> (i32, i32, i32) {
    %c0_i32 = arith.constant 0 : i32
    %c0_i32_0 = arith.constant 0 : i32
    %c0_i32_1 = arith.constant 0 : i32
    return %arg0, %c0_i32, %c0_i32_0 : i32, i32, i32
  }
  func.func @transform_20(%arg0: i32) -> (i32, i32, i32) {
    %c0_i32 = arith.constant 0 : i32
    %c0_i32_0 = arith.constant 0 : i32
    %c0_i32_1 = arith.constant 0 : i32
    return %arg0, %c0_i32, %c0_i32_0 : i32, i32, i32
  }
  func.func @transform_21(%arg0: i32) -> (i32, i32, i32) {
    %c0_i32 = arith.constant 0 : i32
    %c0_i32_0 = arith.constant 0 : i32
    %c0_i32_1 = arith.constant 0 : i32
    return %arg0, %c0_i32, %c0_i32_0 : i32, i32, i32
  }
}

</mosaic_0001>

<llo_original>
// kernel: _lambda_.1
$region0: #{_lambda_.1}
  #allocation0 [shape = 'u32[]', space=smem, size = 0x4, offset = 0x4, fixed_abs, tag = 'smem constant byte address 0x4 - core index']
  #allocation1 [shape = 'u32[144,128]{1,0:T(1,128)}', space=vmem, size = 0x12000, scoped, tag = 'internal scratch']
  %s0 = inlined_call_operand.vmem [shape: f32[2,16,4], index: 0, kind: input, shape index: {}]
  %s1 = inlined_call_operand.vmem [shape: f32[2,1,7], index: 1, kind: input, shape index: {}]
  %s2 = inlined_call_operand.vmem [shape: bf16[20,64], index: 2, kind: input, shape index: {}]
  %s3 = inlined_call_operand.vmem [shape: f32[1,64], index: 3, kind: input, shape index: {}]
  %s4 = inlined_call_operand.vmem [shape: bf16[5,64,128], index: 4, kind: input, shape index: {}]
  %s5 = inlined_call_operand.vmem [shape: f32[1,128], index: 5, kind: input, shape index: {}]
  %s6 = inlined_call_operand.vmem [shape: bf16[1024,128], index: 6, kind: input, shape index: {}]
  %s7 = inlined_call_operand.vmem [shape: bf16[7,128], index: 7, kind: input, shape index: {}]
  %s8 = inlined_call_operand.vmem [shape: f32[1,128], index: 8, kind: input, shape index: {}]
  %s9 = inlined_call_operand.vmem [shape: bf16[128,64], index: 9, kind: input, shape index: {}]
  %s10 = inlined_call_operand.vmem [shape: f32[1,64], index: 10, kind: input, shape index: {}]
  %s11 = inlined_call_operand.vmem [shape: bf16[64,128], index: 11, kind: input, shape index: {}]
  %s12 = inlined_call_operand.vmem [shape: f32[1,128], index: 12, kind: input, shape index: {}]
  %s13 = inlined_call_operand.vmem [shape: bf16[128,1029], index: 13, kind: input, shape index: {}]
  %s14 = inlined_call_operand.vmem [shape: f32[1,1029], index: 14, kind: input, shape index: {}]
  %s15 = inlined_call_operand.vmem [shape: bf16[5,128,64], index: 15, kind: input, shape index: {}]
  %s16 = inlined_call_operand.vmem [shape: f32[1,64], index: 16, kind: input, shape index: {}]
  %s17 = inlined_call_operand.vmem [shape: bf16[5,64,4], index: 17, kind: input, shape index: {}]
  %s18 = inlined_call_operand.vmem [shape: f32[1,4], index: 18, kind: input, shape index: {}]
  %s19 = inlined_call_operand.vmem [shape: f32[2,16,4], index: 19, kind: output, shape index: {0}]
  %s20 = inlined_call_operand.hbm [shape: f32[2,1,3], index: 20, kind: output, shape index: {1}]
  %s21 = inlined_call_operand.hbm [shape: f32[2,1,2], index: 21, kind: output, shape index: {2}]
  %22 = xla_tuple %s19, %s20, %s21
  %s23 = sld [smem:[#allocation0]]
  $region102: #{_lambda_.1} parent=0
    _
  %s25 = ssub.s32 1, %s23
  %s26 = scalar_select 0, %s25, %s23
  $region1: #{_lambda_.1} parent=0
    #allocation2 [shape = 'u8[1024]{0}', space=vmem, size = 0x400, scoped, tag = 'output window, operand 1, single buffered']
    #allocation3 [shape = 's32[1]{0}', space=sflag, size = 0x4, scoped, tag = 'scoped memory for _lambda_.1']
    #allocation4 [shape = 'u8[1024]{0}', space=vmem, size = 0x400, scoped, tag = 'output window, operand 2, single buffered']
    #allocation5 [shape = 's32[1]{0}', space=sflag, size = 0x4, scoped, tag = 'scoped memory for _lambda_.1']
    %27 = vsyncpa [#allocation3], 0
    %28 = vsyncpa [#allocation5], 0
    // Predicated region
    $region2: #{_lambda_.1} parent=1 // pred_check
      _
    $region3: #{_lambda_.1} parent=1 // pred_check_branch
      %30 = sbr.rel (0) target = $region5
    $region4: #{_lambda_.1} parent=1 // pred_region
      _
    $region5: #{_lambda_.1} parent=1 // pred_fallthru
      _
    // Predicated region
    $region6: #{_lambda_.1} parent=1 // pred_check
      _
    $region7: #{_lambda_.1} parent=1 // pred_check_branch
      %32 = sbr.rel (0) target = $region9
    $region8: #{_lambda_.1} parent=1 // pred_region
      _
    $region9: #{_lambda_.1} parent=1 // pred_fallthru
      _
    // Predicated region
    $region10: #{_lambda_.1} parent=1 // pred_check
      _
    $region11: #{_lambda_.1} parent=1 // pred_check_branch
      %34 = sbr.rel (0) target = $region13
    $region12: #{_lambda_.1} parent=1 // pred_region
      _
    $region13: #{_lambda_.1} parent=1 // pred_fallthru
      _
    // Predicated region
    $region14: #{_lambda_.1} parent=1 // pred_check
      _
    $region15: #{_lambda_.1} parent=1 // pred_check_branch
      %36 = sbr.rel (0) target = $region17
    $region16: #{_lambda_.1} parent=1 // pred_region
      _
    $region17: #{_lambda_.1} parent=1 // pred_fallthru
      _
    // Predicated region
    $region18: #{_lambda_.1} parent=1 // pred_check
      _
    $region19: #{_lambda_.1} parent=1 // pred_check_branch
      %38 = sbr.rel (0) target = $region21
    $region20: #{_lambda_.1} parent=1 // pred_region
      _
    $region21: #{_lambda_.1} parent=1 // pred_fallthru
      _
    // Predicated region
    $region22: #{_lambda_.1} parent=1 // pred_check
      _
    $region23: #{_lambda_.1} parent=1 // pred_check_branch
      %40 = sbr.rel (0) target = $region25
    $region24: #{_lambda_.1} parent=1 // pred_region
      _
    $region25: #{_lambda_.1} parent=1 // pred_fallthru
      _
    // Predicated region
    $region26: #{_lambda_.1} parent=1 // pred_check
      _
    $region27: #{_lambda_.1} parent=1 // pred_check_branch
      %42 = sbr.rel (0) target = $region29
    $region28: #{_lambda_.1} parent=1 // pred_region
      _
    $region29: #{_lambda_.1} parent=1 // pred_fallthru
      _
    // Predicated region
    $region30: #{_lambda_.1} parent=1 // pred_check
      _
    $region31: #{_lambda_.1} parent=1 // pred_check_branch
      %44 = sbr.rel (0) target = $region33
    $region32: #{_lambda_.1} parent=1 // pred_region
      _
    $region33: #{_lambda_.1} parent=1 // pred_fallthru
      _
    // Predicated region
    $region34: #{_lambda_.1} parent=1 // pred_check
      _
    $region35: #{_lambda_.1} parent=1 // pred_check_branch
      %46 = sbr.rel (0) target = $region37
    $region36: #{_lambda_.1} parent=1 // pred_region
      _
    $region37: #{_lambda_.1} parent=1 // pred_fallthru
      _
    // Predicated region
    $region38: #{_lambda_.1} parent=1 // pred_check
      _
    $region39: #{_lambda_.1} parent=1 // pred_check_branch
      %48 = sbr.rel (0) target = $region41
    $region40: #{_lambda_.1} parent=1 // pred_region
      _
    $region41: #{_lambda_.1} parent=1 // pred_fallthru
      _
    // Predicated region
    $region42: #{_lambda_.1} parent=1 // pred_check
      _
    $region43: #{_lambda_.1} parent=1 // pred_check_branch
      %50 = sbr.rel (0) target = $region45
    $region44: #{_lambda_.1} parent=1 // pred_region
      _
    $region45: #{_lambda_.1} parent=1 // pred_fallthru
      _
    // Predicated region
    $region46: #{_lambda_.1} parent=1 // pred_check
      _
    $region47: #{_lambda_.1} parent=1 // pred_check_branch
      %52 = sbr.rel (0) target = $region49
    $region48: #{_lambda_.1} parent=1 // pred_region
      _
    $region49: #{_lambda_.1} parent=1 // pred_fallthru
      _
    // Predicated region
    $region50: #{_lambda_.1} parent=1 // pred_check
      _
    $region51: #{_lambda_.1} parent=1 // pred_check_branch
      %54 = sbr.rel (0) target = $region53
    $region52: #{_lambda_.1} parent=1 // pred_region
      _
    $region53: #{_lambda_.1} parent=1 // pred_fallthru
      _
    // Predicated region
    $region54: #{_lambda_.1} parent=1 // pred_check
      _
    $region55: #{_lambda_.1} parent=1 // pred_check_branch
      %56 = sbr.rel (0) target = $region57
    $region56: #{_lambda_.1} parent=1 // pred_region
      _
    $region57: #{_lambda_.1} parent=1 // pred_fallthru
      _
    // Predicated region
    $region58: #{_lambda_.1} parent=1 // pred_check
      _
    $region59: #{_lambda_.1} parent=1 // pred_check_branch
      %58 = sbr.rel (0) target = $region61
    $region60: #{_lambda_.1} parent=1 // pred_region
      _
    $region61: #{_lambda_.1} parent=1 // pred_fallthru
      _
    // Predicated region
    $region62: #{_lambda_.1} parent=1 // pred_check
      _
    $region63: #{_lambda_.1} parent=1 // pred_check_branch
      %60 = sbr.rel (0) target = $region65
    $region64: #{_lambda_.1} parent=1 // pred_region
      _
    $region65: #{_lambda_.1} parent=1 // pred_fallthru
      _
    // Predicated region
    $region66: #{_lambda_.1} parent=1 // pred_check
      _
    $region67: #{_lambda_.1} parent=1 // pred_check_branch
      %62 = sbr.rel (0) target = $region69
    $region68: #{_lambda_.1} parent=1 // pred_region
      _
    $region69: #{_lambda_.1} parent=1 // pred_fallthru
      _
    // Predicated region
    $region70: #{_lambda_.1} parent=1 // pred_check
      _
    $region71: #{_lambda_.1} parent=1 // pred_check_branch
      %64 = sbr.rel (0) target = $region73
    $region72: #{_lambda_.1} parent=1 // pred_region
      _
    $region73: #{_lambda_.1} parent=1 // pred_fallthru
      _
    // Predicated region
    $region74: #{_lambda_.1} parent=1 // pred_check
      _
    $region75: #{_lambda_.1} parent=1 // pred_check_branch
      %66 = sbr.rel (0) target = $region77
    $region76: #{_lambda_.1} parent=1 // pred_region
      _
    $region77: #{_lambda_.1} parent=1 // pred_fallthru
      _
    %v68 = vld [vmem:[%s0] sm:$0xff]
    %v69 = vld [vmem:[%s0 + $0x8] sm:$0xff]
    %v70 = vpack.c.bf16 %v69, %v68
    %v72 = vshrl.u32 %v70, 16
    %v74 = vshll.u32 %v70, 16
    %v76 = vrot.slane %v74, 1
    %v77 = vor.u32 %v72, %v76
    %78 = vrot.lane.b32.xlu0 %v77, 4
    %v79 = vpop.permute.xlu0 %78
    %v81 = vrot.slane %v70, 1
    %82 = vrot.lane.b32.xlu0 %v81, 8
    %v83 = vpop.permute.xlu0 %82
    %v84 = vrot.slane %v72, 1
    %v85 = vrot.slane %v74, 2
    %v86 = vor.u32 %v84, %v85
    %87 = vrot.lane.b32.xlu0 %v86, 12
    %v88 = vpop.permute.xlu0 %87
    %v89 = vrot.slane %v70, 2
    %90 = vrot.lane.b32.xlu0 %v89, 16
    %v91 = vpop.permute.xlu0 %90
    %vm92 = vcmask 31744
    %v94 = vsel %vm92, %v70, %v79
    %vm95 = vcmask 64512
    %v97 = vsel %vm95, %v94, %v83
    %vm98 = vcmask 97280
    %v100 = vsel %vm98, %v97, %v88
    %vm101 = vcmask 130048
    %v103 = vsel %vm101, %v100, %v91
    %v104 = vld [vmem:[%s2] sm:$0xf]
    %v105 = vld [vmem:[%s2 + $0x4] sm:$0xf]
    %v106 = vld [vmem:[%s2 + $0x8] sm:$0x3]
    %v107 = vld [vmem:[%s3] sm:$0x1]
    %v109 = vlaneseq
    %v110 = vshrl.u32 %v109, 7
    %v111 = vsub.s32 0, %v110
    %v112 = vrot.slane %v107, %v111
    %v117 = vunpack.c.l.b16 %v104
    %v118 = vunpack.c.l.b16 %v105
    %v119 = vunpack.c.l.b16 %v106
    %v120 = vpack.c.b16 %v118, %v117
    %v121 = vpack.c.b16 %v119, %v119
    %vm123 = vcmask 162816
    %v124 = vsel %vm123, %v103, 0
    %vm126 = vcmask 1041408
    %v128 = vsel %vm126, %v121, 0
    %130 = vmatprep.subr.bf16.mxu0 0
    %131 = vmatpush1.bf16.msra.mxu0 %v120
    %132 = vmatprep.subr.bf16.mxu0 0
    %133 = vmatpush1.bf16.msra.mxu0 %v128
    %134 = vmatprep.subr.bf16.mxu0 0
    %135 = vmatpush1.bf16.msra.mxu0 0
    %136 = vmatprep.subr.bf16.mxu0 0
    %137 = vmatpush1.bf16.msra.mxu0 0
    %138 = vmatprep.subr.bf16.mxu0 0
    %139 = vmatpush1.bf16.msra.mxu0 0
    %140 = vmatprep.subr.bf16.mxu0 0
    %141 = vmatpush1.bf16.msra.mxu0 0
    %142 = vmatprep.subr.bf16.mxu0 0
    %143 = vmatpush1.bf16.msra.mxu0 0
    %144 = vmatprep.subr.bf16.mxu0 0
    %145 = vmatpush1.bf16.msra.mxu0 0
    %146 = vmatprep.subr.bf16.mxu0 0
    %147 = vmatpush1.bf16.msra.mxu0 0
    %148 = vmatprep.subr.bf16.mxu0 0
    %149 = vmatpush1.bf16.msra.mxu0 0
    %150 = vmatprep.subr.bf16.mxu0 0
    %151 = vmatpush1.bf16.msra.mxu0 0
    %152 = vmatprep.subr.bf16.mxu0 0
    %153 = vmatpush1.bf16.msra.mxu0 0
    %154 = vmatprep.subr.bf16.mxu0 0
    %155 = vmatpush1.bf16.msra.mxu0 0
    %156 = vmatprep.subr.bf16.mxu0 0
    %157 = vmatpush1.bf16.msra.mxu0 0
    %158 = vmatprep.subr.bf16.mxu0 0
    %159 = vmatpush1.bf16.msra.mxu0 0
    %160 = vmatprep.subr.bf16.mxu0 0
    %161 = vmatpush1.bf16.msra.mxu0 0
    %162 = vmatprep.mubr.bf16.mxu0 0
    %163 = vmatmul.mubr.bf16.gmra.mrb[0].mxu0 %v124
    %v164 = vpop.f32.mrb[0].mxu0
    %v165 = vadd.f32 %v112, %v164
    %v166 = vpop.f32.mrb[0].mxu0
    %v167 = vpop.f32.mrb[0].mxu0
    %v168 = vadd.f32 %v112, %v167
    %v169 = vpop.f32.mrb[0].mxu0
    %170 = vdwg.mxu0
    %v171 = vpack.c.bf16 %v168, %v165
    %v172 = vld [vmem:[%s4] sm:$0xf]
    %v173 = vld [vmem:[%s4 + $0x4] sm:$0xf]
    %v174 = vld [vmem:[%s4 + $0x8] sm:$0xf]
    %v175 = vld [vmem:[%s4 + $0xc] sm:$0xf]
    %v176 = vld [vmem:[%s4 + $0x10] sm:$0xf]
    %v177 = vld [vmem:[%s4 + $0x14] sm:$0xf]
    %v178 = vld [vmem:[%s4 + $0x18] sm:$0xf]
    %v179 = vld [vmem:[%s4 + $0x1c] sm:$0xf]
    %s180 = scalar_lea.vmem %s4, 32
    %v181 = vld [vmem:[%s180] sm:$0xf]
    %v182 = vld [vmem:[%s180 + $0x4] sm:$0xf]
    %v183 = vld [vmem:[%s180 + $0x8] sm:$0xf]
    %v184 = vld [vmem:[%s180 + $0xc] sm:$0xf]
    %v185 = vld [vmem:[%s180 + $0x10] sm:$0xf]
    %v186 = vld [vmem:[%s180 + $0x14] sm:$0xf]
    %v187 = vld [vmem:[%s180 + $0x18] sm:$0xf]
    %v188 = vld [vmem:[%s180 + $0x1c] sm:$0xf]
    %v190 = vshrl.u32 %v171, 16
    %v192 = vshll.u32 %v171, 16
    %v194 = vrot.slane %v192, 1
    %v195 = vor.u32 %v190, %v194
    %v204 = vunpack.c.l.b16 %v181
    %v205 = vunpack.c.l.b16 %v182
    %v206 = vunpack.c.l.b16 %v183
    %v207 = vunpack.c.l.b16 %v184
    %v208 = vunpack.c.l.b16 %v185
    %v209 = vunpack.c.l.b16 %v186
    %v210 = vunpack.c.l.b16 %v187
    %v211 = vunpack.c.l.b16 %v188
    %v212 = vpack.c.b16 %v205, %v204
    %v213 = vpack.c.b16 %v207, %v206
    %v214 = vpack.c.b16 %v209, %v208
    %v215 = vpack.c.b16 %v211, %v210
    %vm220 = vcmask 523264
    %v222 = vsel %vm220, %v195, 0
    %224 = vmatprep.subr.bf16.mxu0 0
    %225 = vmatpush1.bf16.msra.mxu0 %v212
    %226 = vmatprep.subr.bf16.mxu0 0
    %227 = vmatpush1.bf16.msra.mxu0 %v213
    %228 = vmatprep.subr.bf16.mxu0 0
    %229 = vmatpush1.bf16.msra.mxu0 %v214
    %230 = vmatprep.subr.bf16.mxu0 0
    %231 = vmatpush1.bf16.msra.mxu0 %v215
    %232 = vmatprep.subr.bf16.mxu0 0
    %233 = vmatpush1.bf16.msra.mxu0 0
    %234 = vmatprep.subr.bf16.mxu0 0
    %235 = vmatpush1.bf16.msra.mxu0 0
    %236 = vmatprep.subr.bf16.mxu0 0
    %237 = vmatpush1.bf16.msra.mxu0 0
    %238 = vmatprep.subr.bf16.mxu0 0
    %239 = vmatpush1.bf16.msra.mxu0 0
    %240 = vmatprep.subr.bf16.mxu0 0
    %241 = vmatpush1.bf16.msra.mxu0 0
    %242 = vmatprep.subr.bf16.mxu0 0
    %243 = vmatpush1.bf16.msra.mxu0 0
    %244 = vmatprep.subr.bf16.mxu0 0
    %245 = vmatpush1.bf16.msra.mxu0 0
    %246 = vmatprep.subr.bf16.mxu0 0
    %247 = vmatpush1.bf16.msra.mxu0 0
    %248 = vmatprep.subr.bf16.mxu0 0
    %249 = vmatpush1.bf16.msra.mxu0 0
    %250 = vmatprep.subr.bf16.mxu0 0
    %251 = vmatpush1.bf16.msra.mxu0 0
    %252 = vmatprep.subr.bf16.mxu0 0
    %253 = vmatpush1.bf16.msra.mxu0 0
    %254 = vmatprep.subr.bf16.mxu0 0
    %255 = vmatpush1.bf16.msra.mxu0 0
    %256 = vmatprep.mubr.bf16.mxu0 0
    %257 = vmatmul.mubr.bf16.gmra.mrb[0].mxu0 %v222
    %v258 = vpop.f32.mrb[0].mxu0
    %v259 = vadd.f32 0.0, %v258
    %v260 = vpop.f32.mrb[0].mxu0
    %v261 = vpop.f32.mrb[0].mxu0
    %v262 = vpop.f32.mrb[0].mxu0
    %263 = vdwg.mxu0
    %v272 = vunpack.c.l.b16 %v172
    %v273 = vunpack.c.l.b16 %v173
    %v274 = vunpack.c.l.b16 %v174
    %v275 = vunpack.c.l.b16 %v175
    %v276 = vunpack.c.l.b16 %v176
    %v277 = vunpack.c.l.b16 %v177
    %v278 = vunpack.c.l.b16 %v178
    %v279 = vunpack.c.l.b16 %v179
    %v280 = vpack.c.b16 %v273, %v272
    %v281 = vpack.c.b16 %v275, %v274
    %v282 = vpack.c.b16 %v277, %v276
    %v283 = vpack.c.b16 %v279, %v278
    %v288 = vsel %vm220, %v171, 0
    %290 = vmatprep.subr.bf16.mxu0 0
    %291 = vmatpush1.bf16.msra.mxu0 %v280
    %292 = vmatprep.subr.bf16.mxu0 0
    %293 = vmatpush1.bf16.msra.mxu0 %v281
    %294 = vmatprep.subr.bf16.mxu0 0
    %295 = vmatpush1.bf16.msra.mxu0 %v282
    %296 = vmatprep.subr.bf16.mxu0 0
    %297 = vmatpush1.bf16.msra.mxu0 %v283
    %298 = vmatprep.subr.bf16.mxu0 0
    %299 = vmatpush1.bf16.msra.mxu0 0
    %300 = vmatprep.subr.bf16.mxu0 0
    %301 = vmatpush1.bf16.msra.mxu0 0
    %302 = vmatprep.subr.bf16.mxu0 0
    %303 = vmatpush1.bf16.msra.mxu0 0
    %304 = vmatprep.subr.bf16.mxu0 0
    %305 = vmatpush1.bf16.msra.mxu0 0
    %306 = vmatprep.subr.bf16.mxu0 0
    %307 = vmatpush1.bf16.msra.mxu0 0
    %308 = vmatprep.subr.bf16.mxu0 0
    %309 = vmatpush1.bf16.msra.mxu0 0
    %310 = vmatprep.subr.bf16.mxu0 0
    %311 = vmatpush1.bf16.msra.mxu0 0
    %312 = vmatprep.subr.bf16.mxu0 0
    %313 = vmatpush1.bf16.msra.mxu0 0
    %314 = vmatprep.subr.bf16.mxu0 0
    %315 = vmatpush1.bf16.msra.mxu0 0
    %316 = vmatprep.subr.bf16.mxu0 0
    %317 = vmatpush1.bf16.msra.mxu0 0
    %318 = vmatprep.subr.bf16.mxu0 0
    %319 = vmatpush1.bf16.msra.mxu0 0
    %320 = vmatprep.subr.bf16.mxu0 0
    %321 = vmatpush1.bf16.msra.mxu0 0
    %322 = vmatprep.mubr.bf16.mxu0 0
    %323 = vmatmul.mubr.bf16.gmra.mrb[0].mxu0 %v288
    %v324 = vpop.f32.mrb[0].mxu0
    %v325 = vadd.f32 %v259, %v324
    %v326 = vpop.f32.mrb[0].mxu0
    %v327 = vpop.f32.mrb[0].mxu0
    %v328 = vpop.f32.mrb[0].mxu0
    %329 = vdwg.mxu0
    %s330 = scalar_lea.vmem %s4, 64
    %v331 = vld [vmem:[%s330] sm:$0xf]
    %v332 = vld [vmem:[%s330 + $0x4] sm:$0xf]
    %v333 = vld [vmem:[%s330 + $0x8] sm:$0xf]
    %v334 = vld [vmem:[%s330 + $0xc] sm:$0xf]
    %v335 = vld [vmem:[%s330 + $0x10] sm:$0xf]
    %v336 = vld [vmem:[%s330 + $0x14] sm:$0xf]
    %v337 = vld [vmem:[%s330 + $0x18] sm:$0xf]
    %v338 = vld [vmem:[%s330 + $0x1c] sm:$0xf]
    %v340 = vrot.slane %v171, 1
    %v349 = vunpack.c.l.b16 %v331
    %v350 = vunpack.c.l.b16 %v332
    %v351 = vunpack.c.l.b16 %v333
    %v352 = vunpack.c.l.b16 %v334
    %v353 = vunpack.c.l.b16 %v335
    %v354 = vunpack.c.l.b16 %v336
    %v355 = vunpack.c.l.b16 %v337
    %v356 = vunpack.c.l.b16 %v338
    %v357 = vpack.c.b16 %v350, %v349
    %v358 = vpack.c.b16 %v352, %v351
    %v359 = vpack.c.b16 %v354, %v353
    %v360 = vpack.c.b16 %v356, %v355
    %v366 = vsel %vm220, %v340, 0
    %368 = vmatprep.subr.bf16.mxu0 0
    %369 = vmatpush1.bf16.msra.mxu0 %v357
    %370 = vmatprep.subr.bf16.mxu0 0
    %371 = vmatpush1.bf16.msra.mxu0 %v358
    %372 = vmatprep.subr.bf16.mxu0 0
    %373 = vmatpush1.bf16.msra.mxu0 %v359
    %374 = vmatprep.subr.bf16.mxu0 0
    %375 = vmatpush1.bf16.msra.mxu0 %v360
    %376 = vmatprep.subr.bf16.mxu0 0
    %377 = vmatpush1.bf16.msra.mxu0 0
    %378 = vmatprep.subr.bf16.mxu0 0
    %379 = vmatpush1.bf16.msra.mxu0 0
    %380 = vmatprep.subr.bf16.mxu0 0
    %381 = vmatpush1.bf16.msra.mxu0 0
    %382 = vmatprep.subr.bf16.mxu0 0
    %383 = vmatpush1.bf16.msra.mxu0 0
    %384 = vmatprep.subr.bf16.mxu0 0
    %385 = vmatpush1.bf16.msra.mxu0 0
    %386 = vmatprep.subr.bf16.mxu0 0
    %387 = vmatpush1.bf16.msra.mxu0 0
    %388 = vmatprep.subr.bf16.mxu0 0
    %389 = vmatpush1.bf16.msra.mxu0 0
    %390 = vmatprep.subr.bf16.mxu0 0
    %391 = vmatpush1.bf16.msra.mxu0 0
    %392 = vmatprep.subr.bf16.mxu0 0
    %393 = vmatpush1.bf16.msra.mxu0 0
    %394 = vmatprep.subr.bf16.mxu0 0
    %395 = vmatpush1.bf16.msra.mxu0 0
    %396 = vmatprep.subr.bf16.mxu0 0
    %397 = vmatpush1.bf16.msra.mxu0 0
    %398 = vmatprep.subr.bf16.mxu0 0
    %399 = vmatpush1.bf16.msra.mxu0 0
    %400 = vmatprep.mubr.bf16.mxu0 0
    %401 = vmatmul.mubr.bf16.gmra.mrb[0].mxu0 %v366
    %v402 = vpop.f32.mrb[0].mxu0
    %v403 = vadd.f32 0.0, %v402
    %v404 = vpop.f32.mrb[0].mxu0
    %v405 = vpop.f32.mrb[0].mxu0
    %v406 = vpop.f32.mrb[0].mxu0
    %407 = vdwg.mxu0
    %v408 = vadd.f32 %v325, %v403
    %s409 = scalar_lea.vmem %s4, 96
    %v410 = vld [vmem:[%s409] sm:$0xf]
    %v411 = vld [vmem:[%s409 + $0x4] sm:$0xf]
    %v412 = vld [vmem:[%s409 + $0x8] sm:$0xf]
    %v413 = vld [vmem:[%s409 + $0xc] sm:$0xf]
    %v414 = vld [vmem:[%s409 + $0x10] sm:$0xf]
    %v415 = vld [vmem:[%s409 + $0x14] sm:$0xf]
    %v416 = vld [vmem:[%s409 + $0x18] sm:$0xf]
    %v417 = vld [vmem:[%s409 + $0x1c] sm:$0xf]
    %v418 = vrot.slane %v190, 1
    %v419 = vrot.slane %v192, 2
    %v420 = vor.u32 %v418, %v419
    %v429 = vunpack.c.l.b16 %v410
    %v430 = vunpack.c.l.b16 %v411
    %v431 = vunpack.c.l.b16 %v412
    %v432 = vunpack.c.l.b16 %v413
    %v433 = vunpack.c.l.b16 %v414
    %v434 = vunpack.c.l.b16 %v415
    %v435 = vunpack.c.l.b16 %v416
    %v436 = vunpack.c.l.b16 %v417
    %v437 = vpack.c.b16 %v430, %v429
    %v438 = vpack.c.b16 %v432, %v431
    %v439 = vpack.c.b16 %v434, %v433
    %v440 = vpack.c.b16 %v436, %v435
    %v446 = vsel %vm220, %v420, 0
    %448 = vmatprep.subr.bf16.mxu0 0
    %449 = vmatpush1.bf16.msra.mxu0 %v437
    %450 = vmatprep.subr.bf16.mxu0 0
    %451 = vmatpush1.bf16.msra.mxu0 %v438
    %452 = vmatprep.subr.bf16.mxu0 0
    %453 = vmatpush1.bf16.msra.mxu0 %v439
    %454 = vmatprep.subr.bf16.mxu0 0
    %455 = vmatpush1.bf16.msra.mxu0 %v440
    %456 = vmatprep.subr.bf16.mxu0 0
    %457 = vmatpush1.bf16.msra.mxu0 0
    %458 = vmatprep.subr.bf16.mxu0 0
    %459 = vmatpush1.bf16.msra.mxu0 0
    %460 = vmatprep.subr.bf16.mxu0 0
    %461 = vmatpush1.bf16.msra.mxu0 0
    %462 = vmatprep.subr.bf16.mxu0 0
    %463 = vmatpush1.bf16.msra.mxu0 0
    %464 = vmatprep.subr.bf16.mxu0 0
    %465 = vmatpush1.bf16.msra.mxu0 0
    %466 = vmatprep.subr.bf16.mxu0 0
    %467 = vmatpush1.bf16.msra.mxu0 0
    %468 = vmatprep.subr.bf16.mxu0 0
    %469 = vmatpush1.bf16.msra.mxu0 0
    %470 = vmatprep.subr.bf16.mxu0 0
    %471 = vmatpush1.bf16.msra.mxu0 0
    %472 = vmatprep.subr.bf16.mxu0 0
    %473 = vmatpush1.bf16.msra.mxu0 0
    %474 = vmatprep.subr.bf16.mxu0 0
    %475 = vmatpush1.bf16.msra.mxu0 0
    %476 = vmatprep.subr.bf16.mxu0 0
    %477 = vmatpush1.bf16.msra.mxu0 0
    %478 = vmatprep.subr.bf16.mxu0 0
    %479 = vmatpush1.bf16.msra.mxu0 0
    %480 = vmatprep.mubr.bf16.mxu0 0
    %481 = vmatmul.mubr.bf16.gmra.mrb[0].mxu0 %v446
    %v482 = vpop.f32.mrb[0].mxu0
    %v483 = vadd.f32 0.0, %v482
    %v484 = vpop.f32.mrb[0].mxu0
    %v485 = vpop.f32.mrb[0].mxu0
    %v486 = vpop.f32.mrb[0].mxu0
    %487 = vdwg.mxu0
    %v488 = vadd.f32 %v408, %v483
    %s489 = scalar_lea.vmem %s4, 128
    %v490 = vld [vmem:[%s489] sm:$0xf]
    %v491 = vld [vmem:[%s489 + $0x4] sm:$0xf]
    %v492 = vld [vmem:[%s489 + $0x8] sm:$0xf]
    %v493 = vld [vmem:[%s489 + $0xc] sm:$0xf]
    %v494 = vld [vmem:[%s489 + $0x10] sm:$0xf]
    %v495 = vld [vmem:[%s489 + $0x14] sm:$0xf]
    %v496 = vld [vmem:[%s489 + $0x18] sm:$0xf]
    %v497 = vld [vmem:[%s489 + $0x1c] sm:$0xf]
    %v498 = vrot.slane %v171, 2
    %v507 = vunpack.c.l.b16 %v490
    %v508 = vunpack.c.l.b16 %v491
    %v509 = vunpack.c.l.b16 %v492
    %v510 = vunpack.c.l.b16 %v493
    %v511 = vunpack.c.l.b16 %v494
    %v512 = vunpack.c.l.b16 %v495
    %v513 = vunpack.c.l.b16 %v496
    %v514 = vunpack.c.l.b16 %v497
    %v515 = vpack.c.b16 %v508, %v507
    %v516 = vpack.c.b16 %v510, %v509
    %v517 = vpack.c.b16 %v512, %v511
    %v518 = vpack.c.b16 %v514, %v513
    %v524 = vsel %vm220, %v498, 0
    %526 = vmatprep.subr.bf16.mxu0 0
    %527 = vmatpush1.bf16.msra.mxu0 %v515
    %528 = vmatprep.subr.bf16.mxu0 0
    %529 = vmatpush1.bf16.msra.mxu0 %v516
    %530 = vmatprep.subr.bf16.mxu0 0
    %531 = vmatpush1.bf16.msra.mxu0 %v517
    %532 = vmatprep.subr.bf16.mxu0 0
    %533 = vmatpush1.bf16.msra.mxu0 %v518
    %534 = vmatprep.subr.bf16.mxu0 0
    %535 = vmatpush1.bf16.msra.mxu0 0
    %536 = vmatprep.subr.bf16.mxu0 0
    %537 = vmatpush1.bf16.msra.mxu0 0
    %538 = vmatprep.subr.bf16.mxu0 0
    %539 = vmatpush1.bf16.msra.mxu0 0
    %540 = vmatprep.subr.bf16.mxu0 0
    %541 = vmatpush1.bf16.msra.mxu0 0
    %542 = vmatprep.subr.bf16.mxu0 0
    %543 = vmatpush1.bf16.msra.mxu0 0
    %544 = vmatprep.subr.bf16.mxu0 0
    %545 = vmatpush1.bf16.msra.mxu0 0
    %546 = vmatprep.subr.bf16.mxu0 0
    %547 = vmatpush1.bf16.msra.mxu0 0
    %548 = vmatprep.subr.bf16.mxu0 0
    %549 = vmatpush1.bf16.msra.mxu0 0
    %550 = vmatprep.subr.bf16.mxu0 0
    %551 = vmatpush1.bf16.msra.mxu0 0
    %552 = vmatprep.subr.bf16.mxu0 0
    %553 = vmatpush1.bf16.msra.mxu0 0
    %554 = vmatprep.subr.bf16.mxu0 0
    %555 = vmatpush1.bf16.msra.mxu0 0
    %556 = vmatprep.subr.bf16.mxu0 0
    %557 = vmatpush1.bf16.msra.mxu0 0
    %558 = vmatprep.mubr.bf16.mxu0 0
    %559 = vmatmul.mubr.bf16.gmra.mrb[0].mxu0 %v524
    %v560 = vpop.f32.mrb[0].mxu0
    %v561 = vadd.f32 0.0, %v560
    %v562 = vpop.f32.mrb[0].mxu0
    %v563 = vpop.f32.mrb[0].mxu0
    %v564 = vpop.f32.mrb[0].mxu0
    %565 = vdwg.mxu0
    %v566 = vadd.f32 %v488, %v561
    %v567 = vld [vmem:[%s5] sm:$0x1]
    %v569 = vlaneseq
    %v570 = vshrl.u32 %v569, 7
    %v571 = vsub.s32 0, %v570
    %v572 = vrot.slane %v567, %v571
    %v574 = vadd.f32 %v566, %v572
    %v575 = vtanh.pop %v574
    %v576 = vpack.c.bf16 %v575, %v575
    %v578 = vshrl.u32 %v576, 16
    %v582 = vrot.slane %v576, 1
    %v584 = vrot.slane %v578, 1
    %v586 = vrot.slane %v576, 2
    %v588 = vrot.slane %v578, 2
    %v590 = vrot.slane %v576, 3
    %v592 = vrot.slane %v578, 3
    %s594 = scalar_lea.vmem %s0, 16
    %v595 = vld [vmem:[%s594] sm:$0xff]
    %v596 = vld [vmem:[%s594 + $0x8] sm:$0xff]
    %v597 = vpack.c.bf16 %v596, %v595
    %v599 = vshrl.u32 %v597, 16
    %v601 = vshll.u32 %v597, 16
    %v603 = vrot.slane %v601, 1
    %v604 = vor.u32 %v599, %v603
    %605 = vrot.lane.b32.xlu0 %v604, 4
    %v606 = vpop.permute.xlu0 %605
    %v608 = vrot.slane %v597, 1
    %609 = vrot.lane.b32.xlu0 %v608, 8
    %v610 = vpop.permute.xlu0 %609
    %v611 = vrot.slane %v599, 1
    %v612 = vrot.slane %v601, 2
    %v613 = vor.u32 %v611, %v612
    %614 = vrot.lane.b32.xlu0 %v613, 12
    %v615 = vpop.permute.xlu0 %614
    %v616 = vrot.slane %v597, 2
    %617 = vrot.lane.b32.xlu0 %v616, 16
    %v618 = vpop.permute.xlu0 %617
    %v620 = vsel %vm92, %v597, %v606
    %v622 = vsel %vm95, %v620, %v610
    %v624 = vsel %vm98, %v622, %v615
    %v626 = vsel %vm101, %v624, %v618
    %v627 = vsel %vm123, %v626, 0
    %629 = vmatprep.subr.bf16.mxu0 0
    %630 = vmatpush1.bf16.msra.mxu0 %v120
    %631 = vmatprep.subr.bf16.mxu0 0
    %632 = vmatpush1.bf16.msra.mxu0 %v128
    %633 = vmatprep.subr.bf16.mxu0 0
    %634 = vmatpush1.bf16.msra.mxu0 0
    %635 = vmatprep.subr.bf16.mxu0 0
    %636 = vmatpush1.bf16.msra.mxu0 0
    %637 = vmatprep.subr.bf16.mxu0 0
    %638 = vmatpush1.bf16.msra.mxu0 0
    %639 = vmatprep.subr.bf16.mxu0 0
    %640 = vmatpush1.bf16.msra.mxu0 0
    %641 = vmatprep.subr.bf16.mxu0 0
    %642 = vmatpush1.bf16.msra.mxu0 0
    %643 = vmatprep.subr.bf16.mxu0 0
    %644 = vmatpush1.bf16.msra.mxu0 0
    %645 = vmatprep.subr.bf16.mxu0 0
    %646 = vmatpush1.bf16.msra.mxu0 0
    %647 = vmatprep.subr.bf16.mxu0 0
    %648 = vmatpush1.bf16.msra.mxu0 0
    %649 = vmatprep.subr.bf16.mxu0 0
    %650 = vmatpush1.bf16.msra.mxu0 0
    %651 = vmatprep.subr.bf16.mxu0 0
    %652 = vmatpush1.bf16.msra.mxu0 0
    %653 = vmatprep.subr.bf16.mxu0 0
    %654 = vmatpush1.bf16.msra.mxu0 0
    %655 = vmatprep.subr.bf16.mxu0 0
    %656 = vmatpush1.bf16.msra.mxu0 0
    %657 = vmatprep.subr.bf16.mxu0 0
    %658 = vmatpush1.bf16.msra.mxu0 0
    %659 = vmatprep.subr.bf16.mxu0 0
    %660 = vmatpush1.bf16.msra.mxu0 0
    %661 = vmatprep.mubr.bf16.mxu0 0
    %662 = vmatmul.mubr.bf16.gmra.mrb[0].mxu0 %v627
    %v663 = vpop.f32.mrb[0].mxu0
    %v664 = vadd.f32 %v112, %v663
    %v665 = vpop.f32.mrb[0].mxu0
    %v666 = vpop.f32.mrb[0].mxu0
    %v667 = vadd.f32 %v112, %v666
    %v668 = vpop.f32.mrb[0].mxu0
    %669 = vdwg.mxu0
    %v670 = vpack.c.bf16 %v667, %v664
    %v672 = vshrl.u32 %v670, 16
    %v674 = vshll.u32 %v670, 16
    %v676 = vrot.slane %v674, 1
    %v677 = vor.u32 %v672, %v676
    %v679 = vsel %vm220, %v677, 0
    %681 = vmatprep.subr.bf16.mxu0 0
    %682 = vmatpush1.bf16.msra.mxu0 %v212
    %683 = vmatprep.subr.bf16.mxu0 0
    %684 = vmatpush1.bf16.msra.mxu0 %v213
    %685 = vmatprep.subr.bf16.mxu0 0
    %686 = vmatpush1.bf16.msra.mxu0 %v214
    %687 = vmatprep.subr.bf16.mxu0 0
    %688 = vmatpush1.bf16.msra.mxu0 %v215
    %689 = vmatprep.subr.bf16.mxu0 0
    %690 = vmatpush1.bf16.msra.mxu0 0
    %691 = vmatprep.subr.bf16.mxu0 0
    %692 = vmatpush1.bf16.msra.mxu0 0
    %693 = vmatprep.subr.bf16.mxu0 0
    %694 = vmatpush1.bf16.msra.mxu0 0
    %695 = vmatprep.subr.bf16.mxu0 0
    %696 = vmatpush1.bf16.msra.mxu0 0
    %697 = vmatprep.subr.bf16.mxu0 0
    %698 = vmatpush1.bf16.msra.mxu0 0
    %699 = vmatprep.subr.bf16.mxu0 0
    %700 = vmatpush1.bf16.msra.mxu0 0
    %701 = vmatprep.subr.bf16.mxu0 0
    %702 = vmatpush1.bf16.msra.mxu0 0
    %703 = vmatprep.subr.bf16.mxu0 0
    %704 = vmatpush1.bf16.msra.mxu0 0
    %705 = vmatprep.subr.bf16.mxu0 0
    %706 = vmatpush1.bf16.msra.mxu0 0
    %707 = vmatprep.subr.bf16.mxu0 0
    %708 = vmatpush1.bf16.msra.mxu0 0
    %709 = vmatprep.subr.bf16.mxu0 0
    %710 = vmatpush1.bf16.msra.mxu0 0
    %711 = vmatprep.subr.bf16.mxu0 0
    %712 = vmatpush1.bf16.msra.mxu0 0
    %713 = vmatprep.mubr.bf16.mxu0 0
    %714 = vmatmul.mubr.bf16.gmra.mrb[0].mxu0 %v679
    %v715 = vpop.f32.mrb[0].mxu0
    %v716 = vadd.f32 0.0, %v715
    %v717 = vpop.f32.mrb[0].mxu0
    %v718 = vpop.f32.mrb[0].mxu0
    %v719 = vpop.f32.mrb[0].mxu0
    %720 = vdwg.mxu0
    %v721 = vsel %vm220, %v670, 0
    %723 = vmatprep.subr.bf16.mxu0 0
    %724 = vmatpush1.bf16.msra.mxu0 %v280
    %725 = vmatprep.subr.bf16.mxu0 0
    %726 = vmatpush1.bf16.msra.mxu0 %v281
    %727 = vmatprep.subr.bf16.mxu0 0
    %728 = vmatpush1.bf16.msra.mxu0 %v282
    %729 = vmatprep.subr.bf16.mxu0 0
    %730 = vmatpush1.bf16.msra.mxu0 %v283
    %731 = vmatprep.subr.bf16.mxu0 0
    %732 = vmatpush1.bf16.msra.mxu0 0
    %733 = vmatprep.subr.bf16.mxu0 0
    %734 = vmatpush1.bf16.msra.mxu0 0
    %735 = vmatprep.subr.bf16.mxu0 0
    %736 = vmatpush1.bf16.msra.mxu0 0
    %737 = vmatprep.subr.bf16.mxu0 0
    %738 = vmatpush1.bf16.msra.mxu0 0
    %739 = vmatprep.subr.bf16.mxu0 0
    %740 = vmatpush1.bf16.msra.mxu0 0
    %741 = vmatprep.subr.bf16.mxu0 0
    %742 = vmatpush1.bf16.msra.mxu0 0
    %743 = vmatprep.subr.bf16.mxu0 0
    %744 = vmatpush1.bf16.msra.mxu0 0
    %745 = vmatprep.subr.bf16.mxu0 0
    %746 = vmatpush1.bf16.msra.mxu0 0
    %747 = vmatprep.subr.bf16.mxu0 0
    %748 = vmatpush1.bf16.msra.mxu0 0
    %749 = vmatprep.subr.bf16.mxu0 0
    %750 = vmatpush1.bf16.msra.mxu0 0
    %751 = vmatprep.subr.bf16.mxu0 0
    %752 = vmatpush1.bf16.msra.mxu0 0
    %753 = vmatprep.subr.bf16.mxu0 0
    %754 = vmatpush1.bf16.msra.mxu0 0
    %755 = vmatprep.mubr.bf16.mxu0 0
    %756 = vmatmul.mubr.bf16.gmra.mrb[0].mxu0 %v721
    %v757 = vpop.f32.mrb[0].mxu0
    %v758 = vadd.f32 %v716, %v757
    %v759 = vpop.f32.mrb[0].mxu0
    %v760 = vpop.f32.mrb[0].mxu0
    %v761 = vpop.f32.mrb[0].mxu0
    %762 = vdwg.mxu0
    %v764 = vrot.slane %v670, 1
    %v766 = vsel %vm220, %v764, 0
    %768 = vmatprep.subr.bf16.mxu0 0
    %769 = vmatpush1.bf16.msra.mxu0 %v357
    %770 = vmatprep.subr.bf16.mxu0 0
    %771 = vmatpush1.bf16.msra.mxu0 %v358
    %772 = vmatprep.subr.bf16.mxu0 0
    %773 = vmatpush1.bf16.msra.mxu0 %v359
    %774 = vmatprep.subr.bf16.mxu0 0
    %775 = vmatpush1.bf16.msra.mxu0 %v360
    %776 = vmatprep.subr.bf16.mxu0 0
    %777 = vmatpush1.bf16.msra.mxu0 0
    %778 = vmatprep.subr.bf16.mxu0 0
    %779 = vmatpush1.bf16.msra.mxu0 0
    %780 = vmatprep.subr.bf16.mxu0 0
    %781 = vmatpush1.bf16.msra.mxu0 0
    %782 = vmatprep.subr.bf16.mxu0 0
    %783 = vmatpush1.bf16.msra.mxu0 0
    %784 = vmatprep.subr.bf16.mxu0 0
    %785 = vmatpush1.bf16.msra.mxu0 0
    %786 = vmatprep.subr.bf16.mxu0 0
    %787 = vmatpush1.bf16.msra.mxu0 0
    %788 = vmatprep.subr.bf16.mxu0 0
    %789 = vmatpush1.bf16.msra.mxu0 0
    %790 = vmatprep.subr.bf16.mxu0 0
    %791 = vmatpush1.bf16.msra.mxu0 0
    %792 = vmatprep.subr.bf16.mxu0 0
    %793 = vmatpush1.bf16.msra.mxu0 0
    %794 = vmatprep.subr.bf16.mxu0 0
    %795 = vmatpush1.bf16.msra.mxu0 0
    %796 = vmatprep.subr.bf16.mxu0 0
    %797 = vmatpush1.bf16.msra.mxu0 0
    %798 = vmatprep.subr.bf16.mxu0 0
    %799 = vmatpush1.bf16.msra.mxu0 0
    %800 = vmatprep.mubr.bf16.mxu0 0
    %801 = vmatmul.mubr.bf16.gmra.mrb[0].mxu0 %v766
    %v802 = vpop.f32.mrb[0].mxu0
    %v803 = vadd.f32 0.0, %v802
    %v804 = vpop.f32.mrb[0].mxu0
    %v805 = vpop.f32.mrb[0].mxu0
    %v806 = vpop.f32.mrb[0].mxu0
    %807 = vdwg.mxu0
    %v808 = vadd.f32 %v758, %v803
    %v809 = vrot.slane %v672, 1
    %v810 = vrot.slane %v674, 2
    %v811 = vor.u32 %v809, %v810
    %v813 = vsel %vm220, %v811, 0
    %815 = vmatprep.subr.bf16.mxu0 0
    %816 = vmatpush1.bf16.msra.mxu0 %v437
    %817 = vmatprep.subr.bf16.mxu0 0
    %818 = vmatpush1.bf16.msra.mxu0 %v438
    %819 = vmatprep.subr.bf16.mxu0 0
    %820 = vmatpush1.bf16.msra.mxu0 %v439
    %821 = vmatprep.subr.bf16.mxu0 0
    %822 = vmatpush1.bf16.msra.mxu0 %v440
    %823 = vmatprep.subr.bf16.mxu0 0
    %824 = vmatpush1.bf16.msra.mxu0 0
    %825 = vmatprep.subr.bf16.mxu0 0
    %826 = vmatpush1.bf16.msra.mxu0 0
    %827 = vmatprep.subr.bf16.mxu0 0
    %828 = vmatpush1.bf16.msra.mxu0 0
    %829 = vmatprep.subr.bf16.mxu0 0
    %830 = vmatpush1.bf16.msra.mxu0 0
    %831 = vmatprep.subr.bf16.mxu0 0
    %832 = vmatpush1.bf16.msra.mxu0 0
    %833 = vmatprep.subr.bf16.mxu0 0
    %834 = vmatpush1.bf16.msra.mxu0 0
    %835 = vmatprep.subr.bf16.mxu0 0
    %836 = vmatpush1.bf16.msra.mxu0 0
    %837 = vmatprep.subr.bf16.mxu0 0
    %838 = vmatpush1.bf16.msra.mxu0 0
    %839 = vmatprep.subr.bf16.mxu0 0
    %840 = vmatpush1.bf16.msra.mxu0 0
    %841 = vmatprep.subr.bf16.mxu0 0
    %842 = vmatpush1.bf16.msra.mxu0 0
    %843 = vmatprep.subr.bf16.mxu0 0
    %844 = vmatpush1.bf16.msra.mxu0 0
    %845 = vmatprep.subr.bf16.mxu0 0
    %846 = vmatpush1.bf16.msra.mxu0 0
    %847 = vmatprep.mubr.bf16.mxu0 0
    %848 = vmatmul.mubr.bf16.gmra.mrb[0].mxu0 %v813
    %v849 = vpop.f32.mrb[0].mxu0
    %v850 = vadd.f32 0.0, %v849
    %v851 = vpop.f32.mrb[0].mxu0
    %v852 = vpop.f32.mrb[0].mxu0
    %v853 = vpop.f32.mrb[0].mxu0
    %854 = vdwg.mxu0
    %v855 = vadd.f32 %v808, %v850
    %v856 = vrot.slane %v670, 2
    %v858 = vsel %vm220, %v856, 0
    %860 = vmatprep.subr.bf16.mxu0 0
    %861 = vmatpush1.bf16.msra.mxu0 %v515
    %862 = vmatprep.subr.bf16.mxu0 0
    %863 = vmatpush1.bf16.msra.mxu0 %v516
    %864 = vmatprep.subr.bf16.mxu0 0
    %865 = vmatpush1.bf16.msra.mxu0 %v517
    %866 = vmatprep.subr.bf16.mxu0 0
    %867 = vmatpush1.bf16.msra.mxu0 %v518
    %868 = vmatprep.subr.bf16.mxu0 0
    %869 = vmatpush1.bf16.msra.mxu0 0
    %870 = vmatprep.subr.bf16.mxu0 0
    %871 = vmatpush1.bf16.msra.mxu0 0
    %872 = vmatprep.subr.bf16.mxu0 0
    %873 = vmatpush1.bf16.msra.mxu0 0
    %874 = vmatprep.subr.bf16.mxu0 0
    %875 = vmatpush1.bf16.msra.mxu0 0
    %876 = vmatprep.subr.bf16.mxu0 0
    %877 = vmatpush1.bf16.msra.mxu0 0
    %878 = vmatprep.subr.bf16.mxu0 0
    %879 = vmatpush1.bf16.msra.mxu0 0
    %880 = vmatprep.subr.bf16.mxu0 0
    %881 = vmatpush1.bf16.msra.mxu0 0
    %882 = vmatprep.subr.bf16.mxu0 0
    %883 = vmatpush1.bf16.msra.mxu0 0
    %884 = vmatprep.subr.bf16.mxu0 0
    %885 = vmatpush1.bf16.msra.mxu0 0
    %886 = vmatprep.subr.bf16.mxu0 0
    %887 = vmatpush1.bf16.msra.mxu0 0
    %888 = vmatprep.subr.bf16.mxu0 0
    %889 = vmatpush1.bf16.msra.mxu0 0
    %890 = vmatprep.subr.bf16.mxu0 0
    %891 = vmatpush1.bf16.msra.mxu0 0
    %892 = vmatprep.mubr.bf16.mxu0 0
    %893 = vmatmul.mubr.bf16.gmra.mrb[0].mxu0 %v858
    %v894 = vpop.f32.mrb[0].mxu0
    %v895 = vadd.f32 0.0, %v894
    %v896 = vpop.f32.mrb[0].mxu0
    %v897 = vpop.f32.mrb[0].mxu0
    %v898 = vpop.f32.mrb[0].mxu0
    %899 = vdwg.mxu0
    %v900 = vadd.f32 %v855, %v895
    %v901 = vadd.f32 %v900, %v572
    %v902 = vtanh.pop %v901
    %v903 = vpack.c.bf16 %v902, %v902
    %v905 = vshrl.u32 %v903, 16
    %v908 = vrot.slane %v903, 1
    %v909 = vrot.slane %v905, 1
    %v910 = vrot.slane %v903, 2
    %v911 = vrot.slane %v905, 2
    %v912 = vrot.slane %v903, 3
    %v913 = vrot.slane %v905, 3
    %v914 = vshll.u32 %v903, 16
    %v917 = vshll.u32 %v905, 16
    %v920 = vshll.u32 %v908, 16
    %v923 = vshll.u32 %v909, 16
    %v926 = vshll.u32 %v910, 16
    %v929 = vshll.u32 %v911, 16
    %v932 = vshll.u32 %v912, 16
    %v935 = vshll.u32 %v913, 16
    %vm945 = vcmask 1040384
    %vm946 = vsmask.f32 256
    %vm947 = vmand %vm945, %vm946
    %v948 = vsel %vm947, %v576, %v914
    %v949 = vsel %vm947, %v578, %v917
    %v950 = vsel %vm947, %v582, %v920
    %v951 = vsel %vm947, %v584, %v923
    %v952 = vsel %vm947, %v586, %v926
    %v953 = vsel %vm947, %v588, %v929
    %v954 = vsel %vm947, %v590, %v932
    %v955 = vsel %vm947, %v592, %v935
    %v956 = vld [vmem:[%s1] sm:$0x1]
    %s957 = scalar_lea.vmem %s1, 1
    %v958 = vld [vmem:[%s957] sm:$0x1]
    %v960 = vlaneseq
    %v961 = vshrl.u32 %v960, 7
    %v962 = vsub.s32 0, %v961
    %v963 = vrot.slane %v958, %v962
    %vm965 = vcmask 1040384
    %v966 = vsel %vm965, %v956, %v963
    %v967 = vtanh.pop %v966
    %v968 = vpack.c.bf16 %v967, %v967
    %v969 = vld [vmem:[%s6] sm:$0xf]
    %v970 = vld [vmem:[%s6 + $0x4] sm:$0xf]
    %v971 = vld [vmem:[%s6 + $0x8] sm:$0xf]
    %v972 = vld [vmem:[%s6 + $0xc] sm:$0xf]
    %v973 = vld [vmem:[%s6 + $0x10] sm:$0xf]
    %v974 = vld [vmem:[%s6 + $0x14] sm:$0xf]
    %v975 = vld [vmem:[%s6 + $0x18] sm:$0xf]
    %v976 = vld [vmem:[%s6 + $0x1c] sm:$0xf]
    %v977 = vld [vmem:[%s6 + $0x20] sm:$0xf]
    %v978 = vld [vmem:[%s6 + $0x24] sm:$0xf]
    %v979 = vld [vmem:[%s6 + $0x28] sm:$0xf]
    %v980 = vld [vmem:[%s6 + $0x2c] sm:$0xf]
    %v981 = vld [vmem:[%s6 + $0x30] sm:$0xf]
    %v982 = vld [vmem:[%s6 + $0x34] sm:$0xf]
    %v983 = vld [vmem:[%s6 + $0x38] sm:$0xf]
    %v984 = vld [vmem:[%s6 + $0x3c] sm:$0xf]
    %v985 = vld [vmem:[%s6 + $0x40] sm:$0xf]
    %v986 = vld [vmem:[%s6 + $0x44] sm:$0xf]
    %v987 = vld [vmem:[%s6 + $0x48] sm:$0xf]
    %v988 = vld [vmem:[%s6 + $0x4c] sm:$0xf]
    %v989 = vld [vmem:[%s6 + $0x50] sm:$0xf]
    %v990 = vld [vmem:[%s6 + $0x54] sm:$0xf]
    %v991 = vld [vmem:[%s6 + $0x58] sm:$0xf]
    %v992 = vld [vmem:[%s6 + $0x5c] sm:$0xf]
    %v993 = vld [vmem:[%s6 + $0x60] sm:$0xf]
    %v994 = vld [vmem:[%s6 + $0x64] sm:$0xf]
    %v995 = vld [vmem:[%s6 + $0x68] sm:$0xf]
    %v996 = vld [vmem:[%s6 + $0x6c] sm:$0xf]
    %v997 = vld [vmem:[%s6 + $0x70] sm:$0xf]
    %v998 = vld [vmem:[%s6 + $0x74] sm:$0xf]
    %v999 = vld [vmem:[%s6 + $0x78] sm:$0xf]
    %v1000 = vld [vmem:[%s6 + $0x7c] sm:$0xf]
    %v1001 = vld [vmem:[%s6 + $0x80] sm:$0xf]
    %v1002 = vld [vmem:[%s6 + $0x84] sm:$0xf]
    %v1003 = vld [vmem:[%s6 + $0x88] sm:$0xf]
    %v1004 = vld [vmem:[%s6 + $0x8c] sm:$0xf]
    %v1005 = vld [vmem:[%s6 + $0x90] sm:$0xf]
    %v1006 = vld [vmem:[%s6 + $0x94] sm:$0xf]
    %v1007 = vld [vmem:[%s6 + $0x98] sm:$0xf]
    %v1008 = vld [vmem:[%s6 + $0x9c] sm:$0xf]
    %v1009 = vld [vmem:[%s6 + $0xa0] sm:$0xf]
    %v1010 = vld [vmem:[%s6 + $0xa4] sm:$0xf]
    %v1011 = vld [vmem:[%s6 + $0xa8] sm:$0xf]
    %v1012 = vld [vmem:[%s6 + $0xac] sm:$0xf]
    %v1013 = vld [vmem:[%s6 + $0xb0] sm:$0xf]
    %v1014 = vld [vmem:[%s6 + $0xb4] sm:$0xf]
    %v1015 = vld [vmem:[%s6 + $0xb8] sm:$0xf]
    %v1016 = vld [vmem:[%s6 + $0xbc] sm:$0xf]
    %v1017 = vld [vmem:[%s6 + $0xc0] sm:$0xf]
    %v1018 = vld [vmem:[%s6 + $0xc4] sm:$0xf]
    %v1019 = vld [vmem:[%s6 + $0xc8] sm:$0xf]
    %v1020 = vld [vmem:[%s6 + $0xcc] sm:$0xf]
    %v1021 = vld [vmem:[%s6 + $0xd0] sm:$0xf]
    %v1022 = vld [vmem:[%s6 + $0xd4] sm:$0xf]
    %v1023 = vld [vmem:[%s6 + $0xd8] sm:$0xf]
    %v1024 = vld [vmem:[%s6 + $0xdc] sm:$0xf]
    %v1025 = vld [vmem:[%s6 + $0xe0] sm:$0xf]
    %v1026 = vld [vmem:[%s6 + $0xe4] sm:$0xf]
    %v1027 = vld [vmem:[%s6 + $0xe8] sm:$0xf]
    %v1028 = vld [vmem:[%s6 + $0xec] sm:$0xf]
    %v1029 = vld [vmem:[%s6 + $0xf0] sm:$0xf]
    %v1030 = vld [vmem:[%s6 + $0xf4] sm:$0xf]
    %v1031 = vld [vmem:[%s6 + $0xf8] sm:$0xf]
    %v1032 = vld [vmem:[%s6 + $0xfc] sm:$0xf]
    %v1033 = vld [vmem:[%s6 + $0x100] sm:$0xf]
    %v1034 = vld [vmem:[%s6 + $0x104] sm:$0xf]
    %v1035 = vld [vmem:[%s6 + $0x108] sm:$0xf]
    %v1036 = vld [vmem:[%s6 + $0x10c] sm:$0xf]
    %v1037 = vld [vmem:[%s6 + $0x110] sm:$0xf]
    %v1038 = vld [vmem:[%s6 + $0x114] sm:$0xf]
    %v1039 = vld [vmem:[%s6 + $0x118] sm:$0xf]
    %v1040 = vld [vmem:[%s6 + $0x11c] sm:$0xf]
    %v1041 = vld [vmem:[%s6 + $0x120] sm:$0xf]
    %v1042 = vld [vmem:[%s6 + $0x124] sm:$0xf]
    %v1043 = vld [vmem:[%s6 + $0x128] sm:$0xf]
    %v1044 = vld [vmem:[%s6 + $0x12c] sm:$0xf]
    %v1045 = vld [vmem:[%s6 + $0x130] sm:$0xf]
    %v1046 = vld [vmem:[%s6 + $0x134] sm:$0xf]
    %v1047 = vld [vmem:[%s6 + $0x138] sm:$0xf]
    %v1048 = vld [vmem:[%s6 + $0x13c] sm:$0xf]
    %v1049 = vld [vmem:[%s6 + $0x140] sm:$0xf]
    %v1050 = vld [vmem:[%s6 + $0x144] sm:$0xf]
    %v1051 = vld [vmem:[%s6 + $0x148] sm:$0xf]
    %v1052 = vld [vmem:[%s6 + $0x14c] sm:$0xf]
    %v1053 = vld [vmem:[%s6 + $0x150] sm:$0xf]
    %v1054 = vld [vmem:[%s6 + $0x154] sm:$0xf]
    %v1055 = vld [vmem:[%s6 + $0x158] sm:$0xf]
    %v1056 = vld [vmem:[%s6 + $0x15c] sm:$0xf]
    %v1057 = vld [vmem:[%s6 + $0x160] sm:$0xf]
    %v1058 = vld [vmem:[%s6 + $0x164] sm:$0xf]
    %v1059 = vld [vmem:[%s6 + $0x168] sm:$0xf]
    %v1060 = vld [vmem:[%s6 + $0x16c] sm:$0xf]
    %v1061 = vld [vmem:[%s6 + $0x170] sm:$0xf]
    %v1062 = vld [vmem:[%s6 + $0x174] sm:$0xf]
    %v1063 = vld [vmem:[%s6 + $0x178] sm:$0xf]
    %v1064 = vld [vmem:[%s6 + $0x17c] sm:$0xf]
    %v1065 = vld [vmem:[%s6 + $0x180] sm:$0xf]
    %v1066 = vld [vmem:[%s6 + $0x184] sm:$0xf]
    %v1067 = vld [vmem:[%s6 + $0x188] sm:$0xf]
    %v1068 = vld [vmem:[%s6 + $0x18c] sm:$0xf]
    %v1069 = vld [vmem:[%s6 + $0x190] sm:$0xf]
    %v1070 = vld [vmem:[%s6 + $0x194] sm:$0xf]
    %v1071 = vld [vmem:[%s6 + $0x198] sm:$0xf]
    %v1072 = vld [vmem:[%s6 + $0x19c] sm:$0xf]
    %v1073 = vld [vmem:[%s6 + $0x1a0] sm:$0xf]
    %v1074 = vld [vmem:[%s6 + $0x1a4] sm:$0xf]
    %v1075 = vld [vmem:[%s6 + $0x1a8] sm:$0xf]
    %v1076 = vld [vmem:[%s6 + $0x1ac] sm:$0xf]
    %v1077 = vld [vmem:[%s6 + $0x1b0] sm:$0xf]
    %v1078 = vld [vmem:[%s6 + $0x1b4] sm:$0xf]
    %v1079 = vld [vmem:[%s6 + $0x1b8] sm:$0xf]
    %v1080 = vld [vmem:[%s6 + $0x1bc] sm:$0xf]
    %v1081 = vld [vmem:[%s6 + $0x1c0] sm:$0xf]
    %v1082 = vld [vmem:[%s6 + $0x1c4] sm:$0xf]
    %v1083 = vld [vmem:[%s6 + $0x1c8] sm:$0xf]
    %v1084 = vld [vmem:[%s6 + $0x1cc] sm:$0xf]
    %v1085 = vld [vmem:[%s6 + $0x1d0] sm:$0xf]
    %v1086 = vld [vmem:[%s6 + $0x1d4] sm:$0xf]
    %v1087 = vld [vmem:[%s6 + $0x1d8] sm:$0xf]
    %v1088 = vld [vmem:[%s6 + $0x1dc] sm:$0xf]
    %v1089 = vld [vmem:[%s6 + $0x1e0] sm:$0xf]
    %v1090 = vld [vmem:[%s6 + $0x1e4] sm:$0xf]
    %v1091 = vld [vmem:[%s6 + $0x1e8] sm:$0xf]
    %v1092 = vld [vmem:[%s6 + $0x1ec] sm:$0xf]
    %v1093 = vld [vmem:[%s6 + $0x1f0] sm:$0xf]
    %v1094 = vld [vmem:[%s6 + $0x1f4] sm:$0xf]
    %v1095 = vld [vmem:[%s6 + $0x1f8] sm:$0xf]
    %v1096 = vld [vmem:[%s6 + $0x1fc] sm:$0xf]
    %v1097 = vld [vmem:[%s7] sm:$0xf]
    %vm1098 = vcmask 56320
    %v1100 = vsel %vm1098, %v968, 0
    %vm1102 = vcmask 1042432
    %vm1103 = vcmask 1043456
    %v1104 = vsel %vm1102, 4294967295, 65535
    %v1105 = vsel %vm1103, %v1104, 0
    %v1107 = vand.u32 %v1097, %v1105
    %1109 = vmatprep.subr.bf16.mxu0 0
    %1110 = vmatpush1.bf16.msra.mxu0 %v1107
    %1111 = vmatprep.subr.bf16.mxu0 0
    %1112 = vmatpush1.bf16.msra.mxu0 0
    %1113 = vmatprep.subr.bf16.mxu0 0
    %1114 = vmatpush1.bf16.msra.mxu0 0
    %1115 = vmatprep.subr.bf16.mxu0 0
    %1116 = vmatpush1.bf16.msra.mxu0 0
    %1117 = vmatprep.subr.bf16.mxu0 0
    %1118 = vmatpush1.bf16.msra.mxu0 0
    %1119 = vmatprep.subr.bf16.mxu0 0
    %1120 = vmatpush1.bf16.msra.mxu0 0
    %1121 = vmatprep.subr.bf16.mxu0 0
    %1122 = vmatpush1.bf16.msra.mxu0 0
    %1123 = vmatprep.subr.bf16.mxu0 0
    %1124 = vmatpush1.bf16.msra.mxu0 0
    %1125 = vmatprep.subr.bf16.mxu0 0
    %1126 = vmatpush1.bf16.msra.mxu0 0
    %1127 = vmatprep.subr.bf16.mxu0 0
    %1128 = vmatpush1.bf16.msra.mxu0 0
    %1129 = vmatprep.subr.bf16.mxu0 0
    %1130 = vmatpush1.bf16.msra.mxu0 0
    %1131 = vmatprep.subr.bf16.mxu0 0
    %1132 = vmatpush1.bf16.msra.mxu0 0
    %1133 = vmatprep.subr.bf16.mxu0 0
    %1134 = vmatpush1.bf16.msra.mxu0 0
    %1135 = vmatprep.subr.bf16.mxu0 0
    %1136 = vmatpush1.bf16.msra.mxu0 0
    %1137 = vmatprep.subr.bf16.mxu0 0
    %1138 = vmatpush1.bf16.msra.mxu0 0
    %1139 = vmatprep.subr.bf16.mxu0 0
    %1140 = vmatpush1.bf16.msra.mxu0 0
    %1141 = vmatprep.mubr.bf16.mxu0 0
    %1142 = vmatmul.mubr.bf16.gmra.mrb[0].mxu0 %v1100
    %v1143 = vpop.f32.mrb[0].mxu0
    %v1144 = vadd.f32 0.0, %v1143
    %v1145 = vpop.f32.mrb[0].mxu0
    %v1146 = vpop.f32.mrb[0].mxu0
    %v1147 = vpop.f32.mrb[0].mxu0
    %1148 = vdwg.mxu0
    %v1277 = vunpack.c.l.b16 %v969
    %v1278 = vunpack.c.l.b16 %v970
    %v1279 = vunpack.c.l.b16 %v971
    %v1280 = vunpack.c.l.b16 %v972
    %v1281 = vunpack.c.l.b16 %v973
    %v1282 = vunpack.c.l.b16 %v974
    %v1283 = vunpack.c.l.b16 %v975
    %v1284 = vunpack.c.l.b16 %v976
    %v1285 = vunpack.c.l.b16 %v977
    %v1286 = vunpack.c.l.b16 %v978
    %v1287 = vunpack.c.l.b16 %v979
    %v1288 = vunpack.c.l.b16 %v980
    %v1289 = vunpack.c.l.b16 %v981
    %v1290 = vunpack.c.l.b16 %v982
    %v1291 = vunpack.c.l.b16 %v983
    %v1292 = vunpack.c.l.b16 %v984
    %v1293 = vunpack.c.l.b16 %v985
    %v1294 = vunpack.c.l.b16 %v986
    %v1295 = vunpack.c.l.b16 %v987
    %v1296 = vunpack.c.l.b16 %v988
    %v1297 = vunpack.c.l.b16 %v989
    %v1298 = vunpack.c.l.b16 %v990
    %v1299 = vunpack.c.l.b16 %v991
    %v1300 = vunpack.c.l.b16 %v992
    %v1301 = vunpack.c.l.b16 %v993
    %v1302 = vunpack.c.l.b16 %v994
    %v1303 = vunpack.c.l.b16 %v995
    %v1304 = vunpack.c.l.b16 %v996
    %v1305 = vunpack.c.l.b16 %v997
    %v1306 = vunpack.c.l.b16 %v998
    %v1307 = vunpack.c.l.b16 %v999
    %v1308 = vunpack.c.l.b16 %v1000
    %v1309 = vunpack.c.l.b16 %v1001
    %v1310 = vunpack.c.l.b16 %v1002
    %v1311 = vunpack.c.l.b16 %v1003
    %v1312 = vunpack.c.l.b16 %v1004
    %v1313 = vunpack.c.l.b16 %v1005
    %v1314 = vunpack.c.l.b16 %v1006
    %v1315 = vunpack.c.l.b16 %v1007
    %v1316 = vunpack.c.l.b16 %v1008
    %v1317 = vunpack.c.l.b16 %v1009
    %v1318 = vunpack.c.l.b16 %v1010
    %v1319 = vunpack.c.l.b16 %v1011
    %v1320 = vunpack.c.l.b16 %v1012
    %v1321 = vunpack.c.l.b16 %v1013
    %v1322 = vunpack.c.l.b16 %v1014
    %v1323 = vunpack.c.l.b16 %v1015
    %v1324 = vunpack.c.l.b16 %v1016
    %v1325 = vunpack.c.l.b16 %v1017
    %v1326 = vunpack.c.l.b16 %v1018
    %v1327 = vunpack.c.l.b16 %v1019
    %v1328 = vunpack.c.l.b16 %v1020
    %v1329 = vunpack.c.l.b16 %v1021
    %v1330 = vunpack.c.l.b16 %v1022
    %v1331 = vunpack.c.l.b16 %v1023
    %v1332 = vunpack.c.l.b16 %v1024
    %v1333 = vunpack.c.l.b16 %v1025
    %v1334 = vunpack.c.l.b16 %v1026
    %v1335 = vunpack.c.l.b16 %v1027
    %v1336 = vunpack.c.l.b16 %v1028
    %v1337 = vunpack.c.l.b16 %v1029
    %v1338 = vunpack.c.l.b16 %v1030
    %v1339 = vunpack.c.l.b16 %v1031
    %v1340 = vunpack.c.l.b16 %v1032
    %v1341 = vunpack.c.l.b16 %v1033
    %v1342 = vunpack.c.l.b16 %v1034
    %v1343 = vunpack.c.l.b16 %v1035
    %v1344 = vunpack.c.l.b16 %v1036
    %v1345 = vunpack.c.l.b16 %v1037
    %v1346 = vunpack.c.l.b16 %v1038
    %v1347 = vunpack.c.l.b16 %v1039
    %v1348 = vunpack.c.l.b16 %v1040
    %v1349 = vunpack.c.l.b16 %v1041
    %v1350 = vunpack.c.l.b16 %v1042
    %v1351 = vunpack.c.l.b16 %v1043
    %v1352 = vunpack.c.l.b16 %v1044
    %v1353 = vunpack.c.l.b16 %v1045
    %v1354 = vunpack.c.l.b16 %v1046
    %v1355 = vunpack.c.l.b16 %v1047
    %v1356 = vunpack.c.l.b16 %v1048
    %v1357 = vunpack.c.l.b16 %v1049
    %v1358 = vunpack.c.l.b16 %v1050
    %v1359 = vunpack.c.l.b16 %v1051
    %v1360 = vunpack.c.l.b16 %v1052
    %v1361 = vunpack.c.l.b16 %v1053
    %v1362 = vunpack.c.l.b16 %v1054
    %v1363 = vunpack.c.l.b16 %v1055
    %v1364 = vunpack.c.l.b16 %v1056
    %v1365 = vunpack.c.l.b16 %v1057
    %v1366 = vunpack.c.l.b16 %v1058
    %v1367 = vunpack.c.l.b16 %v1059
    %v1368 = vunpack.c.l.b16 %v1060
    %v1369 = vunpack.c.l.b16 %v1061
    %v1370 = vunpack.c.l.b16 %v1062
    %v1371 = vunpack.c.l.b16 %v1063
    %v1372 = vunpack.c.l.b16 %v1064
    %v1373 = vunpack.c.l.b16 %v1065
    %v1374 = vunpack.c.l.b16 %v1066
    %v1375 = vunpack.c.l.b16 %v1067
    %v1376 = vunpack.c.l.b16 %v1068
    %v1377 = vunpack.c.l.b16 %v1069
    %v1378 = vunpack.c.l.b16 %v1070
    %v1379 = vunpack.c.l.b16 %v1071
    %v1380 = vunpack.c.l.b16 %v1072
    %v1381 = vunpack.c.l.b16 %v1073
    %v1382 = vunpack.c.l.b16 %v1074
    %v1383 = vunpack.c.l.b16 %v1075
    %v1384 = vunpack.c.l.b16 %v1076
    %v1385 = vunpack.c.l.b16 %v1077
    %v1386 = vunpack.c.l.b16 %v1078
    %v1387 = vunpack.c.l.b16 %v1079
    %v1388 = vunpack.c.l.b16 %v1080
    %v1389 = vunpack.c.l.b16 %v1081
    %v1390 = vunpack.c.l.b16 %v1082
    %v1391 = vunpack.c.l.b16 %v1083
    %v1392 = vunpack.c.l.b16 %v1084
    %v1393 = vunpack.c.l.b16 %v1085
    %v1394 = vunpack.c.l.b16 %v1086
    %v1395 = vunpack.c.l.b16 %v1087
    %v1396 = vunpack.c.l.b16 %v1088
    %v1397 = vunpack.c.l.b16 %v1089
    %v1398 = vunpack.c.l.b16 %v1090
    %v1399 = vunpack.c.l.b16 %v1091
    %v1400 = vunpack.c.l.b16 %v1092
    %v1401 = vunpack.c.l.b16 %v1093
    %v1402 = vunpack.c.l.b16 %v1094
    %v1403 = vunpack.c.l.b16 %v1095
    %v1404 = vunpack.c.l.b16 %v1096
    %v1405 = vpack.c.b16 %v1278, %v1277
    %v1406 = vpack.c.b16 %v1280, %v1279
    %v1407 = vpack.c.b16 %v1282, %v1281
    %v1408 = vpack.c.b16 %v1284, %v1283
    %v1409 = vpack.c.b16 %v1286, %v1285
    %v1410 = vpack.c.b16 %v1288, %v1287
    %v1411 = vpack.c.b16 %v1290, %v1289
    %v1412 = vpack.c.b16 %v1292, %v1291
    %v1413 = vpack.c.b16 %v1294, %v1293
    %v1414 = vpack.c.b16 %v1296, %v1295
    %v1415 = vpack.c.b16 %v1298, %v1297
    %v1416 = vpack.c.b16 %v1300, %v1299
    %v1417 = vpack.c.b16 %v1302, %v1301
    %v1418 = vpack.c.b16 %v1304, %v1303
    %v1419 = vpack.c.b16 %v1306, %v1305
    %v1420 = vpack.c.b16 %v1308, %v1307
    %v1421 = vpack.c.b16 %v1310, %v1309
    %v1422 = vpack.c.b16 %v1312, %v1311
    %v1423 = vpack.c.b16 %v1314, %v1313
    %v1424 = vpack.c.b16 %v1316, %v1315
    %v1425 = vpack.c.b16 %v1318, %v1317
    %v1426 = vpack.c.b16 %v1320, %v1319
    %v1427 = vpack.c.b16 %v1322, %v1321
    %v1428 = vpack.c.b16 %v1324, %v1323
    %v1429 = vpack.c.b16 %v1326, %v1325
    %v1430 = vpack.c.b16 %v1328, %v1327
    %v1431 = vpack.c.b16 %v1330, %v1329
    %v1432 = vpack.c.b16 %v1332, %v1331
    %v1433 = vpack.c.b16 %v1334, %v1333
    %v1434 = vpack.c.b16 %v1336, %v1335
    %v1435 = vpack.c.b16 %v1338, %v1337
    %v1436 = vpack.c.b16 %v1340, %v1339
    %v1437 = vpack.c.b16 %v1342, %v1341
    %v1438 = vpack.c.b16 %v1344, %v1343
    %v1439 = vpack.c.b16 %v1346, %v1345
    %v1440 = vpack.c.b16 %v1348, %v1347
    %v1441 = vpack.c.b16 %v1350, %v1349
    %v1442 = vpack.c.b16 %v1352, %v1351
    %v1443 = vpack.c.b16 %v1354, %v1353
    %v1444 = vpack.c.b16 %v1356, %v1355
    %v1445 = vpack.c.b16 %v1358, %v1357
    %v1446 = vpack.c.b16 %v1360, %v1359
    %v1447 = vpack.c.b16 %v1362, %v1361
    %v1448 = vpack.c.b16 %v1364, %v1363
    %v1449 = vpack.c.b16 %v1366, %v1365
    %v1450 = vpack.c.b16 %v1368, %v1367
    %v1451 = vpack.c.b16 %v1370, %v1369
    %v1452 = vpack.c.b16 %v1372, %v1371
    %v1453 = vpack.c.b16 %v1374, %v1373
    %v1454 = vpack.c.b16 %v1376, %v1375
    %v1455 = vpack.c.b16 %v1378, %v1377
    %v1456 = vpack.c.b16 %v1380, %v1379
    %v1457 = vpack.c.b16 %v1382, %v1381
    %v1458 = vpack.c.b16 %v1384, %v1383
    %v1459 = vpack.c.b16 %v1386, %v1385
    %v1460 = vpack.c.b16 %v1388, %v1387
    %v1461 = vpack.c.b16 %v1390, %v1389
    %v1462 = vpack.c.b16 %v1392, %v1391
    %v1463 = vpack.c.b16 %v1394, %v1393
    %v1464 = vpack.c.b16 %v1396, %v1395
    %v1465 = vpack.c.b16 %v1398, %v1397
    %v1466 = vpack.c.b16 %v1400, %v1399
    %v1467 = vpack.c.b16 %v1402, %v1401
    %v1468 = vpack.c.b16 %v1404, %v1403
    %1533 = vmatprep.subr.bf16.mxu0 0
    %1534 = vmatpush1.bf16.msra.mxu0 %v1405
    %1535 = vmatprep.subr.bf16.mxu0 0
    %1536 = vmatpush1.bf16.msra.mxu0 %v1406
    %1537 = vmatprep.subr.bf16.mxu0 0
    %1538 = vmatpush1.bf16.msra.mxu0 %v1407
    %1539 = vmatprep.subr.bf16.mxu0 0
    %1540 = vmatpush1.bf16.msra.mxu0 %v1408
    %1541 = vmatprep.subr.bf16.mxu0 0
    %1542 = vmatpush1.bf16.msra.mxu0 %v1409
    %1543 = vmatprep.subr.bf16.mxu0 0
    %1544 = vmatpush1.bf16.msra.mxu0 %v1410
    %1545 = vmatprep.subr.bf16.mxu0 0
    %1546 = vmatpush1.bf16.msra.mxu0 %v1411
    %1547 = vmatprep.subr.bf16.mxu0 0
    %1548 = vmatpush1.bf16.msra.mxu0 %v1412
    %1549 = vmatprep.subr.bf16.mxu0 0
    %1550 = vmatpush1.bf16.msra.mxu0 %v1413
    %1551 = vmatprep.subr.bf16.mxu0 0
    %1552 = vmatpush1.bf16.msra.mxu0 %v1414
    %1553 = vmatprep.subr.bf16.mxu0 0
    %1554 = vmatpush1.bf16.msra.mxu0 %v1415
    %1555 = vmatprep.subr.bf16.mxu0 0
    %1556 = vmatpush1.bf16.msra.mxu0 %v1416
    %1557 = vmatprep.subr.bf16.mxu0 0
    %1558 = vmatpush1.bf16.msra.mxu0 %v1417
    %1559 = vmatprep.subr.bf16.mxu0 0
    %1560 = vmatpush1.bf16.msra.mxu0 %v1418
    %1561 = vmatprep.subr.bf16.mxu0 0
    %1562 = vmatpush1.bf16.msra.mxu0 %v1419
    %1563 = vmatprep.subr.bf16.mxu0 0
    %1564 = vmatpush1.bf16.msra.mxu0 %v1420
    %1565 = vmatprep.mubr.bf16.mxu0 %v949
    %1566 = vmatmul.mubr.bf16.gmra.mrb[0].mxu0 %v948
    %v1567 = vpop.f32.mrb[0].mxu0
    %v1568 = vadd.f32 %v1144, %v1567
    %v1569 = vpop.f32.mrb[0].mxu0
    %v1570 = vpop.f32.mrb[0].mxu0
    %v1571 = vpop.f32.mrb[0].mxu0
    %1572 = vdwg.mxu0
    %1573 = vmatprep.subr.bf16.mxu0 0
    %1574 = vmatpush1.bf16.msra.mxu0 %v1421
    %1575 = vmatprep.subr.bf16.mxu0 0
    %1576 = vmatpush1.bf16.msra.mxu0 %v1422
    %1577 = vmatprep.subr.bf16.mxu0 0
    %1578 = vmatpush1.bf16.msra.mxu0 %v1423
    %1579 = vmatprep.subr.bf16.mxu0 0
    %1580 = vmatpush1.bf16.msra.mxu0 %v1424
    %1581 = vmatprep.subr.bf16.mxu0 0
    %1582 = vmatpush1.bf16.msra.mxu0 %v1425
    %1583 = vmatprep.subr.bf16.mxu0 0
    %1584 = vmatpush1.bf16.msra.mxu0 %v1426
    %1585 = vmatprep.subr.bf16.mxu0 0
    %1586 = vmatpush1.bf16.msra.mxu0 %v1427
    %1587 = vmatprep.subr.bf16.mxu0 0
    %1588 = vmatpush1.bf16.msra.mxu0 %v1428
    %1589 = vmatprep.subr.bf16.mxu0 0
    %1590 = vmatpush1.bf16.msra.mxu0 %v1429
    %1591 = vmatprep.subr.bf16.mxu0 0
    %1592 = vmatpush1.bf16.msra.mxu0 %v1430
    %1593 = vmatprep.subr.bf16.mxu0 0
    %1594 = vmatpush1.bf16.msra.mxu0 %v1431
    %1595 = vmatprep.subr.bf16.mxu0 0
    %1596 = vmatpush1.bf16.msra.mxu0 %v1432
    %1597 = vmatprep.subr.bf16.mxu0 0
    %1598 = vmatpush1.bf16.msra.mxu0 %v1433
    %1599 = vmatprep.subr.bf16.mxu0 0
    %1600 = vmatpush1.bf16.msra.mxu0 %v1434
    %1601 = vmatprep.subr.bf16.mxu0 0
    %1602 = vmatpush1.bf16.msra.mxu0 %v1435
    %1603 = vmatprep.subr.bf16.mxu0 0
    %1604 = vmatpush1.bf16.msra.mxu0 %v1436
    %1605 = vmatprep.mubr.bf16.mxu0 %v951
    %1606 = vmatmul.mubr.bf16.gmra.mrb[0].mxu0 %v950
    %v1607 = vpop.f32.mrb[0].mxu0
    %v1608 = vadd.f32 %v1568, %v1607
    %v1609 = vpop.f32.mrb[0].mxu0
    %v1610 = vpop.f32.mrb[0].mxu0
    %v1611 = vpop.f32.mrb[0].mxu0
    %1612 = vdwg.mxu0
    %1613 = vmatprep.subr.bf16.mxu0 0
    %1614 = vmatpush1.bf16.msra.mxu0 %v1437
    %1615 = vmatprep.subr.bf16.mxu0 0
    %1616 = vmatpush1.bf16.msra.mxu0 %v1438
    %1617 = vmatprep.subr.bf16.mxu0 0
    %1618 = vmatpush1.bf16.msra.mxu0 %v1439
    %1619 = vmatprep.subr.bf16.mxu0 0
    %1620 = vmatpush1.bf16.msra.mxu0 %v1440
    %1621 = vmatprep.subr.bf16.mxu0 0
    %1622 = vmatpush1.bf16.msra.mxu0 %v1441
    %1623 = vmatprep.subr.bf16.mxu0 0
    %1624 = vmatpush1.bf16.msra.mxu0 %v1442
    %1625 = vmatprep.subr.bf16.mxu0 0
    %1626 = vmatpush1.bf16.msra.mxu0 %v1443
    %1627 = vmatprep.subr.bf16.mxu0 0
    %1628 = vmatpush1.bf16.msra.mxu0 %v1444
    %1629 = vmatprep.subr.bf16.mxu0 0
    %1630 = vmatpush1.bf16.msra.mxu0 %v1445
    %1631 = vmatprep.subr.bf16.mxu0 0
    %1632 = vmatpush1.bf16.msra.mxu0 %v1446
    %1633 = vmatprep.subr.bf16.mxu0 0
    %1634 = vmatpush1.bf16.msra.mxu0 %v1447
    %1635 = vmatprep.subr.bf16.mxu0 0
    %1636 = vmatpush1.bf16.msra.mxu0 %v1448
    %1637 = vmatprep.subr.bf16.mxu0 0
    %1638 = vmatpush1.bf16.msra.mxu0 %v1449
    %1639 = vmatprep.subr.bf16.mxu0 0
    %1640 = vmatpush1.bf16.msra.mxu0 %v1450
    %1641 = vmatprep.subr.bf16.mxu0 0
    %1642 = vmatpush1.bf16.msra.mxu0 %v1451
    %1643 = vmatprep.subr.bf16.mxu0 0
    %1644 = vmatpush1.bf16.msra.mxu0 %v1452
    %1645 = vmatprep.mubr.bf16.mxu0 %v953
    %1646 = vmatmul.mubr.bf16.gmra.mrb[0].mxu0 %v952
    %v1647 = vpop.f32.mrb[0].mxu0
    %v1648 = vadd.f32 %v1608, %v1647
    %v1649 = vpop.f32.mrb[0].mxu0
    %v1650 = vpop.f32.mrb[0].mxu0
    %v1651 = vpop.f32.mrb[0].mxu0
    %1652 = vdwg.mxu0
    %1653 = vmatprep.subr.bf16.mxu0 0
    %1654 = vmatpush1.bf16.msra.mxu0 %v1453
    %1655 = vmatprep.subr.bf16.mxu0 0
    %1656 = vmatpush1.bf16.msra.mxu0 %v1454
    %1657 = vmatprep.subr.bf16.mxu0 0
    %1658 = vmatpush1.bf16.msra.mxu0 %v1455
    %1659 = vmatprep.subr.bf16.mxu0 0
    %1660 = vmatpush1.bf16.msra.mxu0 %v1456
    %1661 = vmatprep.subr.bf16.mxu0 0
    %1662 = vmatpush1.bf16.msra.mxu0 %v1457
    %1663 = vmatprep.subr.bf16.mxu0 0
    %1664 = vmatpush1.bf16.msra.mxu0 %v1458
    %1665 = vmatprep.subr.bf16.mxu0 0
    %1666 = vmatpush1.bf16.msra.mxu0 %v1459
    %1667 = vmatprep.subr.bf16.mxu0 0
    %1668 = vmatpush1.bf16.msra.mxu0 %v1460
    %1669 = vmatprep.subr.bf16.mxu0 0
    %1670 = vmatpush1.bf16.msra.mxu0 %v1461
    %1671 = vmatprep.subr.bf16.mxu0 0
    %1672 = vmatpush1.bf16.msra.mxu0 %v1462
    %1673 = vmatprep.subr.bf16.mxu0 0
    %1674 = vmatpush1.bf16.msra.mxu0 %v1463
    %1675 = vmatprep.subr.bf16.mxu0 0
    %1676 = vmatpush1.bf16.msra.mxu0 %v1464
    %1677 = vmatprep.subr.bf16.mxu0 0
    %1678 = vmatpush1.bf16.msra.mxu0 %v1465
    %1679 = vmatprep.subr.bf16.mxu0 0
    %1680 = vmatpush1.bf16.msra.mxu0 %v1466
    %1681 = vmatprep.subr.bf16.mxu0 0
    %1682 = vmatpush1.bf16.msra.mxu0 %v1467
    %1683 = vmatprep.subr.bf16.mxu0 0
    %1684 = vmatpush1.bf16.msra.mxu0 %v1468
    %1685 = vmatprep.mubr.bf16.mxu0 %v955
    %1686 = vmatmul.mubr.bf16.gmra.mrb[0].mxu0 %v954
    %v1687 = vpop.f32.mrb[0].mxu0
    %v1688 = vadd.f32 %v1648, %v1687
    %v1689 = vpop.f32.mrb[0].mxu0
    %v1690 = vpop.f32.mrb[0].mxu0
    %v1691 = vpop.f32.mrb[0].mxu0
    %1692 = vdwg.mxu0
    %v1693 = vld [vmem:[%s8] sm:$0x1]
    %v1695 = vlaneseq
    %v1696 = vshrl.u32 %v1695, 7
    %v1697 = vsub.s32 0, %v1696
    %v1698 = vrot.slane %v1693, %v1697
    %v1700 = vadd.f32 %v1688, %v1698
    %v1701 = vpack.c.bf16 %v1700, %v1700
    %v1702 = vld [vmem:[%s9] sm:$0xf]
    %v1703 = vld [vmem:[%s9 + $0x4] sm:$0xf]
    %v1704 = vld [vmem:[%s9 + $0x8] sm:$0xf]
    %v1705 = vld [vmem:[%s9 + $0xc] sm:$0xf]
    %v1706 = vld [vmem:[%s9 + $0x10] sm:$0xf]
    %v1707 = vld [vmem:[%s9 + $0x14] sm:$0xf]
    %v1708 = vld [vmem:[%s9 + $0x18] sm:$0xf]
    %v1709 = vld [vmem:[%s9 + $0x1c] sm:$0xf]
    %v1710 = vld [vmem:[%s9 + $0x20] sm:$0xf]
    %v1711 = vld [vmem:[%s9 + $0x24] sm:$0xf]
    %v1712 = vld [vmem:[%s9 + $0x28] sm:$0xf]
    %v1713 = vld [vmem:[%s9 + $0x2c] sm:$0xf]
    %v1714 = vld [vmem:[%s9 + $0x30] sm:$0xf]
    %v1715 = vld [vmem:[%s9 + $0x34] sm:$0xf]
    %v1716 = vld [vmem:[%s9 + $0x38] sm:$0xf]
    %v1717 = vld [vmem:[%s9 + $0x3c] sm:$0xf]
    %v1718 = vld [vmem:[%s10] sm:$0x1]
    %v1720 = vlaneseq
    %v1721 = vshrl.u32 %v1720, 7
    %v1722 = vsub.s32 0, %v1721
    %v1723 = vrot.slane %v1718, %v1722
    %v1741 = vunpack.c.l.b16 %v1702
    %v1742 = vunpack.c.l.b16 %v1703
    %v1743 = vunpack.c.l.b16 %v1704
    %v1744 = vunpack.c.l.b16 %v1705
    %v1745 = vunpack.c.l.b16 %v1706
    %v1746 = vunpack.c.l.b16 %v1707
    %v1747 = vunpack.c.l.b16 %v1708
    %v1748 = vunpack.c.l.b16 %v1709
    %v1749 = vunpack.c.l.b16 %v1710
    %v1750 = vunpack.c.l.b16 %v1711
    %v1751 = vunpack.c.l.b16 %v1712
    %v1752 = vunpack.c.l.b16 %v1713
    %v1753 = vunpack.c.l.b16 %v1714
    %v1754 = vunpack.c.l.b16 %v1715
    %v1755 = vunpack.c.l.b16 %v1716
    %v1756 = vunpack.c.l.b16 %v1717
    %v1757 = vpack.c.b16 %v1742, %v1741
    %v1758 = vpack.c.b16 %v1744, %v1743
    %v1759 = vpack.c.b16 %v1746, %v1745
    %v1760 = vpack.c.b16 %v1748, %v1747
    %v1761 = vpack.c.b16 %v1750, %v1749
    %v1762 = vpack.c.b16 %v1752, %v1751
    %v1763 = vpack.c.b16 %v1754, %v1753
    %v1764 = vpack.c.b16 %v1756, %v1755
    %1773 = vmatprep.subr.bf16.mxu0 0
    %1774 = vmatpush1.bf16.msra.mxu0 %v1757
    %1775 = vmatprep.subr.bf16.mxu0 0
    %1776 = vmatpush1.bf16.msra.mxu0 %v1758
    %1777 = vmatprep.subr.bf16.mxu0 0
    %1778 = vmatpush1.bf16.msra.mxu0 %v1759
    %1779 = vmatprep.subr.bf16.mxu0 0
    %1780 = vmatpush1.bf16.msra.mxu0 %v1760
    %1781 = vmatprep.subr.bf16.mxu0 0
    %1782 = vmatpush1.bf16.msra.mxu0 %v1761
    %1783 = vmatprep.subr.bf16.mxu0 0
    %1784 = vmatpush1.bf16.msra.mxu0 %v1762
    %1785 = vmatprep.subr.bf16.mxu0 0
    %1786 = vmatpush1.bf16.msra.mxu0 %v1763
    %1787 = vmatprep.subr.bf16.mxu0 0
    %1788 = vmatpush1.bf16.msra.mxu0 %v1764
    %1789 = vmatprep.subr.bf16.mxu0 0
    %1790 = vmatpush1.bf16.msra.mxu0 0
    %1791 = vmatprep.subr.bf16.mxu0 0
    %1792 = vmatpush1.bf16.msra.mxu0 0
    %1793 = vmatprep.subr.bf16.mxu0 0
    %1794 = vmatpush1.bf16.msra.mxu0 0
    %1795 = vmatprep.subr.bf16.mxu0 0
    %1796 = vmatpush1.bf16.msra.mxu0 0
    %1797 = vmatprep.subr.bf16.mxu0 0
    %1798 = vmatpush1.bf16.msra.mxu0 0
    %1799 = vmatprep.subr.bf16.mxu0 0
    %1800 = vmatpush1.bf16.msra.mxu0 0
    %1801 = vmatprep.subr.bf16.mxu0 0
    %1802 = vmatpush1.bf16.msra.mxu0 0
    %1803 = vmatprep.subr.bf16.mxu0 0
    %1804 = vmatpush1.bf16.msra.mxu0 0
    %1805 = vmatprep.mubr.bf16.mxu0 0
    %1806 = vmatmul.mubr.bf16.gmra.mrb[0].mxu0 %v1701
    %v1807 = vpop.f32.mrb[0].mxu0
    %v1808 = vadd.f32 %v1723, %v1807
    %v1809 = vpop.f32.mrb[0].mxu0
    %v1810 = vpop.f32.mrb[0].mxu0
    %v1811 = vpop.f32.mrb[0].mxu0
    %1812 = vdwg.mxu0
    %vm1813 = vcmp.gt.f32.partialorder %v1808, 0.0
    %v1814 = vmul.f32 %v1808, 0.01
    %v1815 = vsel %vm1813, %v1808, %v1814
    %v1816 = vpack.c.bf16 %v1815, %v1815
    %v1817 = vld [vmem:[%s11] sm:$0xf]
    %v1818 = vld [vmem:[%s11 + $0x4] sm:$0xf]
    %v1819 = vld [vmem:[%s11 + $0x8] sm:$0xf]
    %v1820 = vld [vmem:[%s11 + $0xc] sm:$0xf]
    %v1821 = vld [vmem:[%s11 + $0x10] sm:$0xf]
    %v1822 = vld [vmem:[%s11 + $0x14] sm:$0xf]
    %v1823 = vld [vmem:[%s11 + $0x18] sm:$0xf]
    %v1824 = vld [vmem:[%s11 + $0x1c] sm:$0xf]
    %v1825 = vld [vmem:[%s12] sm:$0x1]
    %v1827 = vlaneseq
    %v1828 = vshrl.u32 %v1827, 7
    %v1829 = vsub.s32 0, %v1828
    %v1830 = vrot.slane %v1825, %v1829
    %v1840 = vunpack.c.l.b16 %v1817
    %v1841 = vunpack.c.l.b16 %v1818
    %v1842 = vunpack.c.l.b16 %v1819
    %v1843 = vunpack.c.l.b16 %v1820
    %v1844 = vunpack.c.l.b16 %v1821
    %v1845 = vunpack.c.l.b16 %v1822
    %v1846 = vunpack.c.l.b16 %v1823
    %v1847 = vunpack.c.l.b16 %v1824
    %v1848 = vpack.c.b16 %v1841, %v1840
    %v1849 = vpack.c.b16 %v1843, %v1842
    %v1850 = vpack.c.b16 %v1845, %v1844
    %v1851 = vpack.c.b16 %v1847, %v1846
    %v1857 = vsel %vm220, %v1816, 0
    %1859 = vmatprep.subr.bf16.mxu0 0
    %1860 = vmatpush1.bf16.msra.mxu0 %v1848
    %1861 = vmatprep.subr.bf16.mxu0 0
    %1862 = vmatpush1.bf16.msra.mxu0 %v1849
    %1863 = vmatprep.subr.bf16.mxu0 0
    %1864 = vmatpush1.bf16.msra.mxu0 %v1850
    %1865 = vmatprep.subr.bf16.mxu0 0
    %1866 = vmatpush1.bf16.msra.mxu0 %v1851
    %1867 = vmatprep.subr.bf16.mxu0 0
    %1868 = vmatpush1.bf16.msra.mxu0 0
    %1869 = vmatprep.subr.bf16.mxu0 0
    %1870 = vmatpush1.bf16.msra.mxu0 0
    %1871 = vmatprep.subr.bf16.mxu0 0
    %1872 = vmatpush1.bf16.msra.mxu0 0
    %1873 = vmatprep.subr.bf16.mxu0 0
    %1874 = vmatpush1.bf16.msra.mxu0 0
    %1875 = vmatprep.subr.bf16.mxu0 0
    %1876 = vmatpush1.bf16.msra.mxu0 0
    %1877 = vmatprep.subr.bf16.mxu0 0
    %1878 = vmatpush1.bf16.msra.mxu0 0
    %1879 = vmatprep.subr.bf16.mxu0 0
    %1880 = vmatpush1.bf16.msra.mxu0 0
    %1881 = vmatprep.subr.bf16.mxu0 0
    %1882 = vmatpush1.bf16.msra.mxu0 0
    %1883 = vmatprep.subr.bf16.mxu0 0
    %1884 = vmatpush1.bf16.msra.mxu0 0
    %1885 = vmatprep.subr.bf16.mxu0 0
    %1886 = vmatpush1.bf16.msra.mxu0 0
    %1887 = vmatprep.subr.bf16.mxu0 0
    %1888 = vmatpush1.bf16.msra.mxu0 0
    %1889 = vmatprep.subr.bf16.mxu0 0
    %1890 = vmatpush1.bf16.msra.mxu0 0
    %1891 = vmatprep.mubr.bf16.mxu0 0
    %1892 = vmatmul.mubr.bf16.gmra.mrb[0].mxu0 %v1857
    %v1893 = vpop.f32.mrb[0].mxu0
    %v1894 = vadd.f32 %v1830, %v1893
    %v1895 = vpop.f32.mrb[0].mxu0
    %v1896 = vpop.f32.mrb[0].mxu0
    %v1897 = vpop.f32.mrb[0].mxu0
    %1898 = vdwg.mxu0
    %v1899 = vpack.c.bf16 %v1894, %v1894
    %v1900 = vld [vmem:[%s13] sm:$0xff]
    %v1901 = vld [vmem:[%s13 + $0x8] sm:$0xff]
    %v1902 = vld [vmem:[%s13 + $0x10] sm:$0xff]
    %v1903 = vld [vmem:[%s13 + $0x18] sm:$0xff]
    %v1904 = vld [vmem:[%s13 + $0x20] sm:$0xf]
    %v1905 = vld [vmem:[%s13 + $0x24] sm:$0xff]
    %v1906 = vld [vmem:[%s13 + $0x2c] sm:$0xff]
    %v1907 = vld [vmem:[%s13 + $0x34] sm:$0xff]
    %v1908 = vld [vmem:[%s13 + $0x3c] sm:$0xff]
    %v1909 = vld [vmem:[%s13 + $0x44] sm:$0xf]
    %v1910 = vld [vmem:[%s13 + $0x48] sm:$0xff]
    %v1911 = vld [vmem:[%s13 + $0x50] sm:$0xff]
    %v1912 = vld [vmem:[%s13 + $0x58] sm:$0xff]
    %v1913 = vld [vmem:[%s13 + $0x60] sm:$0xff]
    %v1914 = vld [vmem:[%s13 + $0x68] sm:$0xf]
    %v1915 = vld [vmem:[%s13 + $0x6c] sm:$0xff]
    %v1916 = vld [vmem:[%s13 + $0x74] sm:$0xff]
    %v1917 = vld [vmem:[%s13 + $0x7c] sm:$0xff]
    %v1918 = vld [vmem:[%s13 + $0x84] sm:$0xff]
    %v1919 = vld [vmem:[%s13 + $0x8c] sm:$0xf]
    %v1920 = vld [vmem:[%s13 + $0x90] sm:$0xff]
    %v1921 = vld [vmem:[%s13 + $0x98] sm:$0xff]
    %v1922 = vld [vmem:[%s13 + $0xa0] sm:$0xff]
    %v1923 = vld [vmem:[%s13 + $0xa8] sm:$0xff]
    %v1924 = vld [vmem:[%s13 + $0xb0] sm:$0xf]
    %v1925 = vld [vmem:[%s13 + $0xb4] sm:$0xff]
    %v1926 = vld [vmem:[%s13 + $0xbc] sm:$0xff]
    %v1927 = vld [vmem:[%s13 + $0xc4] sm:$0xff]
    %v1928 = vld [vmem:[%s13 + $0xcc] sm:$0xff]
    %v1929 = vld [vmem:[%s13 + $0xd4] sm:$0xf]
    %v1930 = vld [vmem:[%s13 + $0xd8] sm:$0xff]
    %v1931 = vld [vmem:[%s13 + $0xe0] sm:$0xff]
    %v1932 = vld [vmem:[%s13 + $0xe8] sm:$0xff]
    %v1933 = vld [vmem:[%s13 + $0xf0] sm:$0xff]
    %v1934 = vld [vmem:[%s13 + $0xf8] sm:$0xf]
    %v1935 = vld [vmem:[%s13 + $0xfc] sm:$0xff]
    %v1936 = vld [vmem:[%s13 + $0x104] sm:$0xff]
    %v1937 = vld [vmem:[%s13 + $0x10c] sm:$0xff]
    %v1938 = vld [vmem:[%s13 + $0x114] sm:$0xff]
    %v1939 = vld [vmem:[%s13 + $0x11c] sm:$0xf]
    %v1940 = vld [vmem:[%s13 + $0x120] sm:$0xff]
    %v1941 = vld [vmem:[%s13 + $0x128] sm:$0xff]
    %v1942 = vld [vmem:[%s13 + $0x130] sm:$0xff]
    %v1943 = vld [vmem:[%s13 + $0x138] sm:$0xff]
    %v1944 = vld [vmem:[%s13 + $0x140] sm:$0xf]
    %v1945 = vld [vmem:[%s13 + $0x144] sm:$0xff]
    %v1946 = vld [vmem:[%s13 + $0x14c] sm:$0xff]
    %v1947 = vld [vmem:[%s13 + $0x154] sm:$0xff]
    %v1948 = vld [vmem:[%s13 + $0x15c] sm:$0xff]
    %v1949 = vld [vmem:[%s13 + $0x164] sm:$0xf]
    %v1950 = vld [vmem:[%s13 + $0x168] sm:$0xff]
    %v1951 = vld [vmem:[%s13 + $0x170] sm:$0xff]
    %v1952 = vld [vmem:[%s13 + $0x178] sm:$0xff]
    %v1953 = vld [vmem:[%s13 + $0x180] sm:$0xff]
    %v1954 = vld [vmem:[%s13 + $0x188] sm:$0xf]
    %v1955 = vld [vmem:[%s13 + $0x18c] sm:$0xff]
    %v1956 = vld [vmem:[%s13 + $0x194] sm:$0xff]
    %v1957 = vld [vmem:[%s13 + $0x19c] sm:$0xff]
    %v1958 = vld [vmem:[%s13 + $0x1a4] sm:$0xff]
    %v1959 = vld [vmem:[%s13 + $0x1ac] sm:$0xf]
    %v1960 = vld [vmem:[%s13 + $0x1b0] sm:$0xff]
    %v1961 = vld [vmem:[%s13 + $0x1b8] sm:$0xff]
    %v1962 = vld [vmem:[%s13 + $0x1c0] sm:$0xff]
    %v1963 = vld [vmem:[%s13 + $0x1c8] sm:$0xff]
    %v1964 = vld [vmem:[%s13 + $0x1d0] sm:$0xf]
    %v1965 = vld [vmem:[%s13 + $0x1d4] sm:$0xff]
    %v1966 = vld [vmem:[%s13 + $0x1dc] sm:$0xff]
    %v1967 = vld [vmem:[%s13 + $0x1e4] sm:$0xff]
    %v1968 = vld [vmem:[%s13 + $0x1ec] sm:$0xff]
    %v1969 = vld [vmem:[%s13 + $0x1f4] sm:$0xf]
    %v1970 = vld [vmem:[%s13 + $0x1f8] sm:$0xff]
    %v1971 = vld [vmem:[%s13 + $0x200] sm:$0xff]
    %v1972 = vld [vmem:[%s13 + $0x208] sm:$0xff]
    %v1973 = vld [vmem:[%s13 + $0x210] sm:$0xff]
    %v1974 = vld [vmem:[%s13 + $0x218] sm:$0xf]
    %v1975 = vld [vmem:[%s13 + $0x21c] sm:$0xff]
    %v1976 = vld [vmem:[%s13 + $0x224] sm:$0xff]
    %v1977 = vld [vmem:[%s13 + $0x22c] sm:$0xff]
    %v1978 = vld [vmem:[%s13 + $0x234] sm:$0xff]
    %v1979 = vld [vmem:[%s13 + $0x23c] sm:$0xf]
    %v1980 = vld [vmem:[%s14] sm:$0xff]
    %v1981 = vld [vmem:[%s14 + $0x8] sm:$0x1]
    %v1984 = vlaneseq
    %v1985 = vshrl.u32 %v1984, 7
    %v1986 = vsub.s32 0, %v1985
    %v1987 = vrot.slane %v1980, %v1986
    %v1988 = vlaneseq
    %v1989 = vshrl.u32 %v1988, 7
    %v1990 = vsub.s32 1, %v1989
    %v1991 = vrot.slane %v1980, %v1990
    %v1992 = vlaneseq
    %v1993 = vshrl.u32 %v1992, 7
    %v1994 = vsub.s32 2, %v1993
    %v1995 = vrot.slane %v1980, %v1994
    %v1996 = vlaneseq
    %v1997 = vshrl.u32 %v1996, 7
    %v1998 = vsub.s32 3, %v1997
    %v1999 = vrot.slane %v1980, %v1998
    %v2000 = vlaneseq
    %v2001 = vshrl.u32 %v2000, 7
    %v2002 = vsub.s32 4, %v2001
    %v2003 = vrot.slane %v1980, %v2002
    %v2004 = vlaneseq
    %v2005 = vshrl.u32 %v2004, 7
    %v2006 = vsub.s32 5, %v2005
    %v2007 = vrot.slane %v1980, %v2006
    %v2008 = vlaneseq
    %v2009 = vshrl.u32 %v2008, 7
    %v2010 = vsub.s32 6, %v2009
    %v2011 = vrot.slane %v1980, %v2010
    %v2012 = vlaneseq
    %v2013 = vshrl.u32 %v2012, 7
    %v2014 = vsub.s32 7, %v2013
    %v2015 = vrot.slane %v1980, %v2014
    %v2016 = vlaneseq
    %v2017 = vshrl.u32 %v2016, 7
    %v2018 = vsub.s32 0, %v2017
    %v2019 = vrot.slane %v1981, %v2018
    %v2109 = vunpack.c.l.b16 %v1900
    %v2110 = vunpack.c.h.b16 %v1900
    %v2111 = vunpack.c.l.b16 %v1901
    %v2112 = vunpack.c.h.b16 %v1901
    %v2113 = vunpack.c.l.b16 %v1902
    %v2114 = vunpack.c.h.b16 %v1902
    %v2115 = vunpack.c.l.b16 %v1903
    %v2116 = vunpack.c.h.b16 %v1903
    %v2117 = vunpack.c.l.b16 %v1904
    %v2118 = vunpack.c.l.b16 %v1905
    %v2119 = vunpack.c.h.b16 %v1905
    %v2120 = vunpack.c.l.b16 %v1906
    %v2121 = vunpack.c.h.b16 %v1906
    %v2122 = vunpack.c.l.b16 %v1907
    %v2123 = vunpack.c.h.b16 %v1907
    %v2124 = vunpack.c.l.b16 %v1908
    %v2125 = vunpack.c.h.b16 %v1908
    %v2126 = vunpack.c.l.b16 %v1909
    %v2127 = vunpack.c.l.b16 %v1910
    %v2128 = vunpack.c.h.b16 %v1910
    %v2129 = vunpack.c.l.b16 %v1911
    %v2130 = vunpack.c.h.b16 %v1911
    %v2131 = vunpack.c.l.b16 %v1912
    %v2132 = vunpack.c.h.b16 %v1912
    %v2133 = vunpack.c.l.b16 %v1913
    %v2134 = vunpack.c.h.b16 %v1913
    %v2135 = vunpack.c.l.b16 %v1914
    %v2136 = vunpack.c.l.b16 %v1915
    %v2137 = vunpack.c.h.b16 %v1915
    %v2138 = vunpack.c.l.b16 %v1916
    %v2139 = vunpack.c.h.b16 %v1916
    %v2140 = vunpack.c.l.b16 %v1917
    %v2141 = vunpack.c.h.b16 %v1917
    %v2142 = vunpack.c.l.b16 %v1918
    %v2143 = vunpack.c.h.b16 %v1918
    %v2144 = vunpack.c.l.b16 %v1919
    %v2145 = vunpack.c.l.b16 %v1920
    %v2146 = vunpack.c.h.b16 %v1920
    %v2147 = vunpack.c.l.b16 %v1921
    %v2148 = vunpack.c.h.b16 %v1921
    %v2149 = vunpack.c.l.b16 %v1922
    %v2150 = vunpack.c.h.b16 %v1922
    %v2151 = vunpack.c.l.b16 %v1923
    %v2152 = vunpack.c.h.b16 %v1923
    %v2153 = vunpack.c.l.b16 %v1924
    %v2154 = vunpack.c.l.b16 %v1925
    %v2155 = vunpack.c.h.b16 %v1925
    %v2156 = vunpack.c.l.b16 %v1926
    %v2157 = vunpack.c.h.b16 %v1926
    %v2158 = vunpack.c.l.b16 %v1927
    %v2159 = vunpack.c.h.b16 %v1927
    %v2160 = vunpack.c.l.b16 %v1928
    %v2161 = vunpack.c.h.b16 %v1928
    %v2162 = vunpack.c.l.b16 %v1929
    %v2163 = vunpack.c.l.b16 %v1930
    %v2164 = vunpack.c.h.b16 %v1930
    %v2165 = vunpack.c.l.b16 %v1931
    %v2166 = vunpack.c.h.b16 %v1931
    %v2167 = vunpack.c.l.b16 %v1932
    %v2168 = vunpack.c.h.b16 %v1932
    %v2169 = vunpack.c.l.b16 %v1933
    %v2170 = vunpack.c.h.b16 %v1933
    %v2171 = vunpack.c.l.b16 %v1934
    %v2172 = vunpack.c.l.b16 %v1935
    %v2173 = vunpack.c.h.b16 %v1935
    %v2174 = vunpack.c.l.b16 %v1936
    %v2175 = vunpack.c.h.b16 %v1936
    %v2176 = vunpack.c.l.b16 %v1937
    %v2177 = vunpack.c.h.b16 %v1937
    %v2178 = vunpack.c.l.b16 %v1938
    %v2179 = vunpack.c.h.b16 %v1938
    %v2180 = vunpack.c.l.b16 %v1939
    %v2181 = vunpack.c.l.b16 %v1940
    %v2182 = vunpack.c.h.b16 %v1940
    %v2183 = vunpack.c.l.b16 %v1941
    %v2184 = vunpack.c.h.b16 %v1941
    %v2185 = vunpack.c.l.b16 %v1942
    %v2186 = vunpack.c.h.b16 %v1942
    %v2187 = vunpack.c.l.b16 %v1943
    %v2188 = vunpack.c.h.b16 %v1943
    %v2189 = vunpack.c.l.b16 %v1944
    %v2190 = vunpack.c.l.b16 %v1945
    %v2191 = vunpack.c.h.b16 %v1945
    %v2192 = vunpack.c.l.b16 %v1946
    %v2193 = vunpack.c.h.b16 %v1946
    %v2194 = vunpack.c.l.b16 %v1947
    %v2195 = vunpack.c.h.b16 %v1947
    %v2196 = vunpack.c.l.b16 %v1948
    %v2197 = vunpack.c.h.b16 %v1948
    %v2198 = vunpack.c.l.b16 %v1949
    %v2199 = vunpack.c.l.b16 %v1950
    %v2200 = vunpack.c.h.b16 %v1950
    %v2201 = vunpack.c.l.b16 %v1951
    %v2202 = vunpack.c.h.b16 %v1951
    %v2203 = vunpack.c.l.b16 %v1952
    %v2204 = vunpack.c.h.b16 %v1952
    %v2205 = vunpack.c.l.b16 %v1953
    %v2206 = vunpack.c.h.b16 %v1953
    %v2207 = vunpack.c.l.b16 %v1954
    %v2208 = vunpack.c.l.b16 %v1955
    %v2209 = vunpack.c.h.b16 %v1955
    %v2210 = vunpack.c.l.b16 %v1956
    %v2211 = vunpack.c.h.b16 %v1956
    %v2212 = vunpack.c.l.b16 %v1957
    %v2213 = vunpack.c.h.b16 %v1957
    %v2214 = vunpack.c.l.b16 %v1958
    %v2215 = vunpack.c.h.b16 %v1958
    %v2216 = vunpack.c.l.b16 %v1959
    %v2217 = vunpack.c.l.b16 %v1960
    %v2218 = vunpack.c.h.b16 %v1960
    %v2219 = vunpack.c.l.b16 %v1961
    %v2220 = vunpack.c.h.b16 %v1961
    %v2221 = vunpack.c.l.b16 %v1962
    %v2222 = vunpack.c.h.b16 %v1962
    %v2223 = vunpack.c.l.b16 %v1963
    %v2224 = vunpack.c.h.b16 %v1963
    %v2225 = vunpack.c.l.b16 %v1964
    %v2226 = vunpack.c.l.b16 %v1965
    %v2227 = vunpack.c.h.b16 %v1965
    %v2228 = vunpack.c.l.b16 %v1966
    %v2229 = vunpack.c.h.b16 %v1966
    %v2230 = vunpack.c.l.b16 %v1967
    %v2231 = vunpack.c.h.b16 %v1967
    %v2232 = vunpack.c.l.b16 %v1968
    %v2233 = vunpack.c.h.b16 %v1968
    %v2234 = vunpack.c.l.b16 %v1969
    %v2235 = vunpack.c.l.b16 %v1970
    %v2236 = vunpack.c.h.b16 %v1970
    %v2237 = vunpack.c.l.b16 %v1971
    %v2238 = vunpack.c.h.b16 %v1971
    %v2239 = vunpack.c.l.b16 %v1972
    %v2240 = vunpack.c.h.b16 %v1972
    %v2241 = vunpack.c.l.b16 %v1973
    %v2242 = vunpack.c.h.b16 %v1973
    %v2243 = vunpack.c.l.b16 %v1974
    %v2244 = vunpack.c.l.b16 %v1975
    %v2245 = vunpack.c.h.b16 %v1975
    %v2246 = vunpack.c.l.b16 %v1976
    %v2247 = vunpack.c.h.b16 %v1976
    %v2248 = vunpack.c.l.b16 %v1977
    %v2249 = vunpack.c.h.b16 %v1977
    %v2250 = vunpack.c.l.b16 %v1978
    %v2251 = vunpack.c.h.b16 %v1978
    %v2252 = vunpack.c.l.b16 %v1979
    %v2253 = vpack.c.b16 %v2118, %v2109
    %v2254 = vpack.c.b16 %v2119, %v2110
    %v2255 = vpack.c.b16 %v2120, %v2111
    %v2256 = vpack.c.b16 %v2121, %v2112
    %v2257 = vpack.c.b16 %v2122, %v2113
    %v2258 = vpack.c.b16 %v2123, %v2114
    %v2259 = vpack.c.b16 %v2124, %v2115
    %v2260 = vpack.c.b16 %v2125, %v2116
    %v2261 = vpack.c.b16 %v2126, %v2117
    %v2262 = vpack.c.b16 %v2136, %v2127
    %v2263 = vpack.c.b16 %v2137, %v2128
    %v2264 = vpack.c.b16 %v2138, %v2129
    %v2265 = vpack.c.b16 %v2139, %v2130
    %v2266 = vpack.c.b16 %v2140, %v2131
    %v2267 = vpack.c.b16 %v2141, %v2132
    %v2268 = vpack.c.b16 %v2142, %v2133
    %v2269 = vpack.c.b16 %v2143, %v2134
    %v2270 = vpack.c.b16 %v2144, %v2135
    %v2271 = vpack.c.b16 %v2154, %v2145
    %v2272 = vpack.c.b16 %v2155, %v2146
    %v2273 = vpack.c.b16 %v2156, %v2147
    %v2274 = vpack.c.b16 %v2157, %v2148
    %v2275 = vpack.c.b16 %v2158, %v2149
    %v2276 = vpack.c.b16 %v2159, %v2150
    %v2277 = vpack.c.b16 %v2160, %v2151
    %v2278 = vpack.c.b16 %v2161, %v2152
    %v2279 = vpack.c.b16 %v2162, %v2153
    %v2280 = vpack.c.b16 %v2172, %v2163
    %v2281 = vpack.c.b16 %v2173, %v2164
    %v2282 = vpack.c.b16 %v2174, %v2165
    %v2283 = vpack.c.b16 %v2175, %v2166
    %v2284 = vpack.c.b16 %v2176, %v2167
    %v2285 = vpack.c.b16 %v2177, %v2168
    %v2286 = vpack.c.b16 %v2178, %v2169
    %v2287 = vpack.c.b16 %v2179, %v2170
    %v2288 = vpack.c.b16 %v2180, %v2171
    %v2289 = vpack.c.b16 %v2190, %v2181
    %v2290 = vpack.c.b16 %v2191, %v2182
    %v2291 = vpack.c.b16 %v2192, %v2183
    %v2292 = vpack.c.b16 %v2193, %v2184
    %v2293 = vpack.c.b16 %v2194, %v2185
    %v2294 = vpack.c.b16 %v2195, %v2186
    %v2295 = vpack.c.b16 %v2196, %v2187
    %v2296 = vpack.c.b16 %v2197, %v2188
    %v2297 = vpack.c.b16 %v2198, %v2189
    %v2298 = vpack.c.b16 %v2208, %v2199
    %v2299 = vpack.c.b16 %v2209, %v2200
    %v2300 = vpack.c.b16 %v2210, %v2201
    %v2301 = vpack.c.b16 %v2211, %v2202
    %v2302 = vpack.c.b16 %v2212, %v2203
    %v2303 = vpack.c.b16 %v2213, %v2204
    %v2304 = vpack.c.b16 %v2214, %v2205
    %v2305 = vpack.c.b16 %v2215, %v2206
    %v2306 = vpack.c.b16 %v2216, %v2207
    %v2307 = vpack.c.b16 %v2226, %v2217
    %v2308 = vpack.c.b16 %v2227, %v2218
    %v2309 = vpack.c.b16 %v2228, %v2219
    %v2310 = vpack.c.b16 %v2229, %v2220
    %v2311 = vpack.c.b16 %v2230, %v2221
    %v2312 = vpack.c.b16 %v2231, %v2222
    %v2313 = vpack.c.b16 %v2232, %v2223
    %v2314 = vpack.c.b16 %v2233, %v2224
    %v2315 = vpack.c.b16 %v2234, %v2225
    %v2316 = vpack.c.b16 %v2244, %v2235
    %v2317 = vpack.c.b16 %v2245, %v2236
    %v2318 = vpack.c.b16 %v2246, %v2237
    %v2319 = vpack.c.b16 %v2247, %v2238
    %v2320 = vpack.c.b16 %v2248, %v2239
    %v2321 = vpack.c.b16 %v2249, %v2240
    %v2322 = vpack.c.b16 %v2250, %v2241
    %v2323 = vpack.c.b16 %v2251, %v2242
    %v2324 = vpack.c.b16 %v2252, %v2243
    %2397 = vmatprep.subr.bf16.mxu0 %v2254
    %2398 = vmatpush1.bf16.msra.mxu0 %v2253
    %2399 = vmatprep.subr.bf16.mxu0 %v2263
    %2400 = vmatpush1.bf16.msra.mxu0 %v2262
    %2401 = vmatprep.subr.bf16.mxu0 %v2272
    %2402 = vmatpush1.bf16.msra.mxu0 %v2271
    %2403 = vmatprep.subr.bf16.mxu0 %v2281
    %2404 = vmatpush1.bf16.msra.mxu0 %v2280
    %2405 = vmatprep.subr.bf16.mxu0 %v2290
    %2406 = vmatpush1.bf16.msra.mxu0 %v2289
    %2407 = vmatprep.subr.bf16.mxu0 %v2299
    %2408 = vmatpush1.bf16.msra.mxu0 %v2298
    %2409 = vmatprep.subr.bf16.mxu0 %v2308
    %2410 = vmatpush1.bf16.msra.mxu0 %v2307
    %2411 = vmatprep.subr.bf16.mxu0 %v2317
    %2412 = vmatpush1.bf16.msra.mxu0 %v2316
    %2413 = vmatprep.subr.bf16.mxu0 0
    %2414 = vmatpush1.bf16.msra.mxu0 0
    %2415 = vmatprep.subr.bf16.mxu0 0
    %2416 = vmatpush1.bf16.msra.mxu0 0
    %2417 = vmatprep.subr.bf16.mxu0 0
    %2418 = vmatpush1.bf16.msra.mxu0 0
    %2419 = vmatprep.subr.bf16.mxu0 0
    %2420 = vmatpush1.bf16.msra.mxu0 0
    %2421 = vmatprep.subr.bf16.mxu0 0
    %2422 = vmatpush1.bf16.msra.mxu0 0
    %2423 = vmatprep.subr.bf16.mxu0 0
    %2424 = vmatpush1.bf16.msra.mxu0 0
    %2425 = vmatprep.subr.bf16.mxu0 0
    %2426 = vmatpush1.bf16.msra.mxu0 0
    %2427 = vmatprep.subr.bf16.mxu0 0
    %2428 = vmatpush1.bf16.msra.mxu0 0
    %2429 = vmatprep.mubr.bf16.mxu0 0
    %2430 = vmatmul.mubr.bf16.gmra.mrb[0].mxu0 %v1899
    %v2431 = vpop.f32.mrb[0].mxu0
    %v2432 = vadd.f32 %v1987, %v2431
    %v2433 = vpop.f32.mrb[0].mxu0
    %v2434 = vadd.f32 %v1991, %v2433
    %v2435 = vpop.f32.mrb[0].mxu0
    %v2436 = vpop.f32.mrb[0].mxu0
    %2437 = vdwg.mxu0
    %2438 = vmatprep.subr.bf16.mxu0 %v2256
    %2439 = vmatpush1.bf16.msra.mxu0 %v2255
    %2440 = vmatprep.subr.bf16.mxu0 %v2265
    %2441 = vmatpush1.bf16.msra.mxu0 %v2264
    %2442 = vmatprep.subr.bf16.mxu0 %v2274
    %2443 = vmatpush1.bf16.msra.mxu0 %v2273
    %2444 = vmatprep.subr.bf16.mxu0 %v2283
    %2445 = vmatpush1.bf16.msra.mxu0 %v2282
    %2446 = vmatprep.subr.bf16.mxu0 %v2292
    %2447 = vmatpush1.bf16.msra.mxu0 %v2291
    %2448 = vmatprep.subr.bf16.mxu0 %v2301
    %2449 = vmatpush1.bf16.msra.mxu0 %v2300
    %2450 = vmatprep.subr.bf16.mxu0 %v2310
    %2451 = vmatpush1.bf16.msra.mxu0 %v2309
    %2452 = vmatprep.subr.bf16.mxu0 %v2319
    %2453 = vmatpush1.bf16.msra.mxu0 %v2318
    %2454 = vmatprep.subr.bf16.mxu0 0
    %2455 = vmatpush1.bf16.msra.mxu0 0
    %2456 = vmatprep.subr.bf16.mxu0 0
    %2457 = vmatpush1.bf16.msra.mxu0 0
    %2458 = vmatprep.subr.bf16.mxu0 0
    %2459 = vmatpush1.bf16.msra.mxu0 0
    %2460 = vmatprep.subr.bf16.mxu0 0
    %2461 = vmatpush1.bf16.msra.mxu0 0
    %2462 = vmatprep.subr.bf16.mxu0 0
    %2463 = vmatpush1.bf16.msra.mxu0 0
    %2464 = vmatprep.subr.bf16.mxu0 0
    %2465 = vmatpush1.bf16.msra.mxu0 0
    %2466 = vmatprep.subr.bf16.mxu0 0
    %2467 = vmatpush1.bf16.msra.mxu0 0
    %2468 = vmatprep.subr.bf16.mxu0 0
    %2469 = vmatpush1.bf16.msra.mxu0 0
    %2470 = vmatprep.mubr.bf16.mxu0 0
    %2471 = vmatmul.mubr.bf16.gmra.mrb[0].mxu0 %v1899
    %v2472 = vpop.f32.mrb[0].mxu0
    %v2473 = vadd.f32 %v1995, %v2472
    %v2474 = vpop.f32.mrb[0].mxu0
    %v2475 = vadd.f32 %v1999, %v2474
    %v2476 = vpop.f32.mrb[0].mxu0
    %v2477 = vpop.f32.mrb[0].mxu0
    %2478 = vdwg.mxu0
    %2479 = vmatprep.subr.bf16.mxu0 %v2258
    %2480 = vmatpush1.bf16.msra.mxu0 %v2257
    %2481 = vmatprep.subr.bf16.mxu0 %v2267
    %2482 = vmatpush1.bf16.msra.mxu0 %v2266
    %2483 = vmatprep.subr.bf16.mxu0 %v2276
    %2484 = vmatpush1.bf16.msra.mxu0 %v2275
    %2485 = vmatprep.subr.bf16.mxu0 %v2285
    %2486 = vmatpush1.bf16.msra.mxu0 %v2284
    %2487 = vmatprep.subr.bf16.mxu0 %v2294
    %2488 = vmatpush1.bf16.msra.mxu0 %v2293
    %2489 = vmatprep.subr.bf16.mxu0 %v2303
    %2490 = vmatpush1.bf16.msra.mxu0 %v2302
    %2491 = vmatprep.subr.bf16.mxu0 %v2312
    %2492 = vmatpush1.bf16.msra.mxu0 %v2311
    %2493 = vmatprep.subr.bf16.mxu0 %v2321
    %2494 = vmatpush1.bf16.msra.mxu0 %v2320
    %2495 = vmatprep.subr.bf16.mxu0 0
    %2496 = vmatpush1.bf16.msra.mxu0 0
    %2497 = vmatprep.subr.bf16.mxu0 0
    %2498 = vmatpush1.bf16.msra.mxu0 0
    %2499 = vmatprep.subr.bf16.mxu0 0
    %2500 = vmatpush1.bf16.msra.mxu0 0
    %2501 = vmatprep.subr.bf16.mxu0 0
    %2502 = vmatpush1.bf16.msra.mxu0 0
    %2503 = vmatprep.subr.bf16.mxu0 0
    %2504 = vmatpush1.bf16.msra.mxu0 0
    %2505 = vmatprep.subr.bf16.mxu0 0
    %2506 = vmatpush1.bf16.msra.mxu0 0
    %2507 = vmatprep.subr.bf16.mxu0 0
    %2508 = vmatpush1.bf16.msra.mxu0 0
    %2509 = vmatprep.subr.bf16.mxu0 0
    %2510 = vmatpush1.bf16.msra.mxu0 0
    %2511 = vmatprep.mubr.bf16.mxu0 0
    %2512 = vmatmul.mubr.bf16.gmra.mrb[0].mxu0 %v1899
    %v2513 = vpop.f32.mrb[0].mxu0
    %v2514 = vadd.f32 %v2003, %v2513
    %v2515 = vpop.f32.mrb[0].mxu0
    %v2516 = vadd.f32 %v2007, %v2515
    %v2517 = vpop.f32.mrb[0].mxu0
    %v2518 = vpop.f32.mrb[0].mxu0
    %2519 = vdwg.mxu0
    %2520 = vmatprep.subr.bf16.mxu0 %v2260
    %2521 = vmatpush1.bf16.msra.mxu0 %v2259
    %2522 = vmatprep.subr.bf16.mxu0 %v2269
    %2523 = vmatpush1.bf16.msra.mxu0 %v2268
    %2524 = vmatprep.subr.bf16.mxu0 %v2278
    %2525 = vmatpush1.bf16.msra.mxu0 %v2277
    %2526 = vmatprep.subr.bf16.mxu0 %v2287
    %2527 = vmatpush1.bf16.msra.mxu0 %v2286
    %2528 = vmatprep.subr.bf16.mxu0 %v2296
    %2529 = vmatpush1.bf16.msra.mxu0 %v2295
    %2530 = vmatprep.subr.bf16.mxu0 %v2305
    %2531 = vmatpush1.bf16.msra.mxu0 %v2304
    %2532 = vmatprep.subr.bf16.mxu0 %v2314
    %2533 = vmatpush1.bf16.msra.mxu0 %v2313
    %2534 = vmatprep.subr.bf16.mxu0 %v2323
    %2535 = vmatpush1.bf16.msra.mxu0 %v2322
    %2536 = vmatprep.subr.bf16.mxu0 0
    %2537 = vmatpush1.bf16.msra.mxu0 0
    %2538 = vmatprep.subr.bf16.mxu0 0
    %2539 = vmatpush1.bf16.msra.mxu0 0
    %2540 = vmatprep.subr.bf16.mxu0 0
    %2541 = vmatpush1.bf16.msra.mxu0 0
    %2542 = vmatprep.subr.bf16.mxu0 0
    %2543 = vmatpush1.bf16.msra.mxu0 0
    %2544 = vmatprep.subr.bf16.mxu0 0
    %2545 = vmatpush1.bf16.msra.mxu0 0
    %2546 = vmatprep.subr.bf16.mxu0 0
    %2547 = vmatpush1.bf16.msra.mxu0 0
    %2548 = vmatprep.subr.bf16.mxu0 0
    %2549 = vmatpush1.bf16.msra.mxu0 0
    %2550 = vmatprep.subr.bf16.mxu0 0
    %2551 = vmatpush1.bf16.msra.mxu0 0
    %2552 = vmatprep.mubr.bf16.mxu0 0
    %2553 = vmatmul.mubr.bf16.gmra.mrb[0].mxu0 %v1899
    %v2554 = vpop.f32.mrb[0].mxu0
    %v2555 = vadd.f32 %v2011, %v2554
    %v2556 = vpop.f32.mrb[0].mxu0
    %v2557 = vadd.f32 %v2015, %v2556
    %v2558 = vpop.f32.mrb[0].mxu0
    %v2559 = vpop.f32.mrb[0].mxu0
    %2560 = vdwg.mxu0
    %2561 = vmatprep.subr.bf16.mxu0 0
    %2562 = vmatpush1.bf16.msra.mxu0 %v2261
    %2563 = vmatprep.subr.bf16.mxu0 0
    %2564 = vmatpush1.bf16.msra.mxu0 %v2270
    %2565 = vmatprep.subr.bf16.mxu0 0
    %2566 = vmatpush1.bf16.msra.mxu0 %v2279
    %2567 = vmatprep.subr.bf16.mxu0 0
    %2568 = vmatpush1.bf16.msra.mxu0 %v2288
    %2569 = vmatprep.subr.bf16.mxu0 0
    %2570 = vmatpush1.bf16.msra.mxu0 %v2297
    %2571 = vmatprep.subr.bf16.mxu0 0
    %2572 = vmatpush1.bf16.msra.mxu0 %v2306
    %2573 = vmatprep.subr.bf16.mxu0 0
    %2574 = vmatpush1.bf16.msra.mxu0 %v2315
    %2575 = vmatprep.subr.bf16.mxu0 0
    %2576 = vmatpush1.bf16.msra.mxu0 %v2324
    %2577 = vmatprep.subr.bf16.mxu0 0
    %2578 = vmatpush1.bf16.msra.mxu0 0
    %2579 = vmatprep.subr.bf16.mxu0 0
    %2580 = vmatpush1.bf16.msra.mxu0 0
    %2581 = vmatprep.subr.bf16.mxu0 0
    %2582 = vmatpush1.bf16.msra.mxu0 0
    %2583 = vmatprep.subr.bf16.mxu0 0
    %2584 = vmatpush1.bf16.msra.mxu0 0
    %2585 = vmatprep.subr.bf16.mxu0 0
    %2586 = vmatpush1.bf16.msra.mxu0 0
    %2587 = vmatprep.subr.bf16.mxu0 0
    %2588 = vmatpush1.bf16.msra.mxu0 0
    %2589 = vmatprep.subr.bf16.mxu0 0
    %2590 = vmatpush1.bf16.msra.mxu0 0
    %2591 = vmatprep.subr.bf16.mxu0 0
    %2592 = vmatpush1.bf16.msra.mxu0 0
    %2593 = vmatprep.mubr.bf16.mxu0 0
    %2594 = vmatmul.mubr.bf16.gmra.mrb[0].mxu0 %v1899
    %v2595 = vpop.f32.mrb[0].mxu0
    %v2596 = vadd.f32 %v2019, %v2595
    %v2597 = vpop.f32.mrb[0].mxu0
    %v2598 = vpop.f32.mrb[0].mxu0
    %v2599 = vpop.f32.mrb[0].mxu0
    %2600 = vdwg.mxu0
    %v2601 = vtanh.pop %v2432
    %v2602 = vtanh.pop %v2434
    %v2603 = vtanh.pop %v2473
    %v2604 = vtanh.pop %v2475
    %v2605 = vtanh.pop %v2514
    %v2606 = vtanh.pop %v2516
    %v2607 = vtanh.pop %v2555
    %v2608 = vtanh.pop %v2557
    %v2609 = vtanh.pop %v2596
    %vm2610 = vcmask 17408
    %v2611 = vsel %vm2610, %v2609, -inf
    %2612 = vmax.xlane.f32.xlu0 %v2611
    %v2613 = vpop.xlane.xlu0 %2612
    %v2614 = vsub.f32 %v2609, %v2613
    %v2615 = vmul.f32 %v2614, 1.442695
    %v2616 = vpow.pop %v2615
    %v2617 = vsel %vm2610, %v2616, 0.0
    %2618 = vadd.xlane.f32.xlu0 %v2617
    %v2619 = vpop.xlane.xlu0 %2618
    %v2620 = vrcp.pop %v2619
    %v2621 = vmul.f32 %v2616, %v2620
    %vm2622 = vcmask 16384
    %2623 = vst.msk [vmem:[#allocation2] sm:$0x1] %vm2622, %v2621
    %2625 = vrot.lane.b32.xlu0 %v2609, 125
    %v2626 = vpop.permute.xlu0 %2625
    %vm2628 = vcmask 8192
    %2629 = vst.msk [vmem:[#allocation4] sm:$0x1] %vm2628, %v2626
    %s2630 = scalar_lea.vmem [#allocation2], 1
    %vm2631 = vcmask 17409
    %2632 = vst.msk [vmem:[%s2630 - $0x1] sm:$0x2] %vm2631, %v2621
    %s2633 = scalar_lea.vmem [#allocation4], 1
    %vm2634 = vcmask 9217
    %2635 = vst.msk [vmem:[%s2633 - $0x1] sm:$0x2] %vm2634, %v2626
    %v2636 = vpack.c.bf16 %v2601, %v2601
    %v2637 = vpack.c.bf16 %v2602, %v2602
    %v2638 = vpack.c.bf16 %v2603, %v2603
    %v2639 = vpack.c.bf16 %v2604, %v2604
    %v2640 = vpack.c.bf16 %v2605, %v2605
    %v2641 = vpack.c.bf16 %v2606, %v2606
    %v2642 = vpack.c.bf16 %v2607, %v2607
    %v2643 = vpack.c.bf16 %v2608, %v2608
    %v2645 = vrot.slane %v2636, 6
    %v2647 = vshll.u32 %v2637, 16
    %v2649 = vrot.slane %v2647, 6
    %v2652 = vrot.slane %v2638, 5
    %v2654 = vshll.u32 %v2639, 16
    %v2656 = vrot.slane %v2654, 5
    %v2659 = vrot.slane %v2640, 4
    %v2661 = vshll.u32 %v2641, 16
    %v2663 = vrot.slane %v2661, 4
    %v2666 = vrot.slane %v2642, 3
    %v2668 = vshll.u32 %v2643, 16
    %v2670 = vrot.slane %v2668, 3
    %v2674 = vsel %vm126, 0, %v2645
    %vm2676 = vcmask 1042432
    %vm2677 = vsmask.f32 2304
    %vm2678 = vmand %vm2676, %vm2677
    %v2679 = vsel %vm2678, %v2674, %v2649
    %v2682 = vsel %vm1102, %v2679, %v2652
    %vm2684 = vcmask 1043456
    %vm2685 = vsmask.f32 3328
    %vm2686 = vmand %vm2684, %vm2685
    %v2687 = vsel %vm2686, %v2682, %v2656
    %v2690 = vsel %vm1103, %v2687, %v2659
    %vm2692 = vcmask 1044480
    %vm2693 = vsmask.f32 4352
    %vm2694 = vmand %vm2692, %vm2693
    %v2695 = vsel %vm2694, %v2690, %v2663
    %vm2696 = vcmask 1044480
    %v2699 = vsel %vm2696, %v2695, %v2666
    %vm2701 = vcmask 1045504
    %vm2702 = vsmask.f32 5376
    %vm2703 = vmand %vm2701, %vm2702
    %v2704 = vsel %vm2703, %v2699, %v2670
    %vm2705 = vcmask 1045504
    %v2707 = vsel %vm2705, %v2704, 0
    %v2709 = vld [vmem:[%s15] sm:$0xf]
    %v2710 = vld [vmem:[%s15 + $0x4] sm:$0xf]
    %v2711 = vld [vmem:[%s15 + $0x8] sm:$0xf]
    %v2712 = vld [vmem:[%s15 + $0xc] sm:$0xf]
    %v2713 = vld [vmem:[%s15 + $0x10] sm:$0xf]
    %v2714 = vld [vmem:[%s15 + $0x14] sm:$0xf]
    %v2715 = vld [vmem:[%s15 + $0x18] sm:$0xf]
    %v2716 = vld [vmem:[%s15 + $0x1c] sm:$0xf]
    %v2717 = vld [vmem:[%s15 + $0x20] sm:$0xf]
    %v2718 = vld [vmem:[%s15 + $0x24] sm:$0xf]
    %v2719 = vld [vmem:[%s15 + $0x28] sm:$0xf]
    %v2720 = vld [vmem:[%s15 + $0x2c] sm:$0xf]
    %v2721 = vld [vmem:[%s15 + $0x30] sm:$0xf]
    %v2722 = vld [vmem:[%s15 + $0x34] sm:$0xf]
    %v2723 = vld [vmem:[%s15 + $0x38] sm:$0xf]
    %v2724 = vld [vmem:[%s15 + $0x3c] sm:$0xf]
    %s2725 = scalar_lea.vmem %s15, 64
    %v2726 = vld [vmem:[%s2725] sm:$0xf]
    %v2727 = vld [vmem:[%s2725 + $0x4] sm:$0xf]
    %v2728 = vld [vmem:[%s2725 + $0x8] sm:$0xf]
    %v2729 = vld [vmem:[%s2725 + $0xc] sm:$0xf]
    %v2730 = vld [vmem:[%s2725 + $0x10] sm:$0xf]
    %v2731 = vld [vmem:[%s2725 + $0x14] sm:$0xf]
    %v2732 = vld [vmem:[%s2725 + $0x18] sm:$0xf]
    %v2733 = vld [vmem:[%s2725 + $0x1c] sm:$0xf]
    %v2734 = vld [vmem:[%s2725 + $0x20] sm:$0xf]
    %v2735 = vld [vmem:[%s2725 + $0x24] sm:$0xf]
    %v2736 = vld [vmem:[%s2725 + $0x28] sm:$0xf]
    %v2737 = vld [vmem:[%s2725 + $0x2c] sm:$0xf]
    %v2738 = vld [vmem:[%s2725 + $0x30] sm:$0xf]
    %v2739 = vld [vmem:[%s2725 + $0x34] sm:$0xf]
    %v2740 = vld [vmem:[%s2725 + $0x38] sm:$0xf]
    %v2741 = vld [vmem:[%s2725 + $0x3c] sm:$0xf]
    %v2742 = vshrl.u32 %v2707, 16
    %v2744 = vshll.u32 %v2707, 16
    %v2746 = vrot.slane %v2744, 1
    %v2747 = vor.u32 %v2742, %v2746
    %v2765 = vunpack.c.l.b16 %v2726
    %v2766 = vunpack.c.l.b16 %v2727
    %v2767 = vunpack.c.l.b16 %v2728
    %v2768 = vunpack.c.l.b16 %v2729
    %v2769 = vunpack.c.l.b16 %v2730
    %v2770 = vunpack.c.l.b16 %v2731
    %v2771 = vunpack.c.l.b16 %v2732
    %v2772 = vunpack.c.l.b16 %v2733
    %v2773 = vunpack.c.l.b16 %v2734
    %v2774 = vunpack.c.l.b16 %v2735
    %v2775 = vunpack.c.l.b16 %v2736
    %v2776 = vunpack.c.l.b16 %v2737
    %v2777 = vunpack.c.l.b16 %v2738
    %v2778 = vunpack.c.l.b16 %v2739
    %v2779 = vunpack.c.l.b16 %v2740
    %v2780 = vunpack.c.l.b16 %v2741
    %v2781 = vpack.c.b16 %v2766, %v2765
    %v2782 = vpack.c.b16 %v2768, %v2767
    %v2783 = vpack.c.b16 %v2770, %v2769
    %v2784 = vpack.c.b16 %v2772, %v2771
    %v2785 = vpack.c.b16 %v2774, %v2773
    %v2786 = vpack.c.b16 %v2776, %v2775
    %v2787 = vpack.c.b16 %v2778, %v2777
    %v2788 = vpack.c.b16 %v2780, %v2779
    %2797 = vmatprep.subr.bf16.mxu0 0
    %2798 = vmatpush1.bf16.msra.mxu0 %v2781
    %2799 = vmatprep.subr.bf16.mxu0 0
    %2800 = vmatpush1.bf16.msra.mxu0 %v2782
    %2801 = vmatprep.subr.bf16.mxu0 0
    %2802 = vmatpush1.bf16.msra.mxu0 %v2783
    %2803 = vmatprep.subr.bf16.mxu0 0
    %2804 = vmatpush1.bf16.msra.mxu0 %v2784
    %2805 = vmatprep.subr.bf16.mxu0 0
    %2806 = vmatpush1.bf16.msra.mxu0 %v2785
    %2807 = vmatprep.subr.bf16.mxu0 0
    %2808 = vmatpush1.bf16.msra.mxu0 %v2786
    %2809 = vmatprep.subr.bf16.mxu0 0
    %2810 = vmatpush1.bf16.msra.mxu0 %v2787
    %2811 = vmatprep.subr.bf16.mxu0 0
    %2812 = vmatpush1.bf16.msra.mxu0 %v2788
    %2813 = vmatprep.subr.bf16.mxu0 0
    %2814 = vmatpush1.bf16.msra.mxu0 0
    %2815 = vmatprep.subr.bf16.mxu0 0
    %2816 = vmatpush1.bf16.msra.mxu0 0
    %2817 = vmatprep.subr.bf16.mxu0 0
    %2818 = vmatpush1.bf16.msra.mxu0 0
    %2819 = vmatprep.subr.bf16.mxu0 0
    %2820 = vmatpush1.bf16.msra.mxu0 0
    %2821 = vmatprep.subr.bf16.mxu0 0
    %2822 = vmatpush1.bf16.msra.mxu0 0
    %2823 = vmatprep.subr.bf16.mxu0 0
    %2824 = vmatpush1.bf16.msra.mxu0 0
    %2825 = vmatprep.subr.bf16.mxu0 0
    %2826 = vmatpush1.bf16.msra.mxu0 0
    %2827 = vmatprep.subr.bf16.mxu0 0
    %2828 = vmatpush1.bf16.msra.mxu0 0
    %2829 = vmatprep.mubr.bf16.mxu0 0
    %2830 = vmatmul.mubr.bf16.gmra.mrb[0].mxu0 %v2747
    %v2831 = vpop.f32.mrb[0].mxu0
    %v2832 = vadd.f32 0.0, %v2831
    %v2833 = vpop.f32.mrb[0].mxu0
    %v2834 = vpop.f32.mrb[0].mxu0
    %v2835 = vadd.f32 0.0, %v2834
    %v2836 = vpop.f32.mrb[0].mxu0
    %2837 = vdwg.mxu0
    %v2854 = vunpack.c.l.b16 %v2709
    %v2855 = vunpack.c.l.b16 %v2710
    %v2856 = vunpack.c.l.b16 %v2711
    %v2857 = vunpack.c.l.b16 %v2712
    %v2858 = vunpack.c.l.b16 %v2713
    %v2859 = vunpack.c.l.b16 %v2714
    %v2860 = vunpack.c.l.b16 %v2715
    %v2861 = vunpack.c.l.b16 %v2716
    %v2862 = vunpack.c.l.b16 %v2717
    %v2863 = vunpack.c.l.b16 %v2718
    %v2864 = vunpack.c.l.b16 %v2719
    %v2865 = vunpack.c.l.b16 %v2720
    %v2866 = vunpack.c.l.b16 %v2721
    %v2867 = vunpack.c.l.b16 %v2722
    %v2868 = vunpack.c.l.b16 %v2723
    %v2869 = vunpack.c.l.b16 %v2724
    %v2870 = vpack.c.b16 %v2855, %v2854
    %v2871 = vpack.c.b16 %v2857, %v2856
    %v2872 = vpack.c.b16 %v2859, %v2858
    %v2873 = vpack.c.b16 %v2861, %v2860
    %v2874 = vpack.c.b16 %v2863, %v2862
    %v2875 = vpack.c.b16 %v2865, %v2864
    %v2876 = vpack.c.b16 %v2867, %v2866
    %v2877 = vpack.c.b16 %v2869, %v2868
    %2886 = vmatprep.subr.bf16.mxu0 0
    %2887 = vmatpush1.bf16.msra.mxu0 %v2870
    %2888 = vmatprep.subr.bf16.mxu0 0
    %2889 = vmatpush1.bf16.msra.mxu0 %v2871
    %2890 = vmatprep.subr.bf16.mxu0 0
    %2891 = vmatpush1.bf16.msra.mxu0 %v2872
    %2892 = vmatprep.subr.bf16.mxu0 0
    %2893 = vmatpush1.bf16.msra.mxu0 %v2873
    %2894 = vmatprep.subr.bf16.mxu0 0
    %2895 = vmatpush1.bf16.msra.mxu0 %v2874
    %2896 = vmatprep.subr.bf16.mxu0 0
    %2897 = vmatpush1.bf16.msra.mxu0 %v2875
    %2898 = vmatprep.subr.bf16.mxu0 0
    %2899 = vmatpush1.bf16.msra.mxu0 %v2876
    %2900 = vmatprep.subr.bf16.mxu0 0
    %2901 = vmatpush1.bf16.msra.mxu0 %v2877
    %2902 = vmatprep.subr.bf16.mxu0 0
    %2903 = vmatpush1.bf16.msra.mxu0 0
    %2904 = vmatprep.subr.bf16.mxu0 0
    %2905 = vmatpush1.bf16.msra.mxu0 0
    %2906 = vmatprep.subr.bf16.mxu0 0
    %2907 = vmatpush1.bf16.msra.mxu0 0
    %2908 = vmatprep.subr.bf16.mxu0 0
    %2909 = vmatpush1.bf16.msra.mxu0 0
    %2910 = vmatprep.subr.bf16.mxu0 0
    %2911 = vmatpush1.bf16.msra.mxu0 0
    %2912 = vmatprep.subr.bf16.mxu0 0
    %2913 = vmatpush1.bf16.msra.mxu0 0
    %2914 = vmatprep.subr.bf16.mxu0 0
    %2915 = vmatpush1.bf16.msra.mxu0 0
    %2916 = vmatprep.subr.bf16.mxu0 0
    %2917 = vmatpush1.bf16.msra.mxu0 0
    %2918 = vmatprep.mubr.bf16.mxu0 0
    %2919 = vmatmul.mubr.bf16.gmra.mrb[0].mxu0 %v2707
    %v2920 = vpop.f32.mrb[0].mxu0
    %v2921 = vadd.f32 %v2832, %v2920
    %v2922 = vpop.f32.mrb[0].mxu0
    %v2923 = vpop.f32.mrb[0].mxu0
    %v2924 = vadd.f32 %v2835, %v2923
    %v2925 = vpop.f32.mrb[0].mxu0
    %2926 = vdwg.mxu0
    %s2927 = scalar_lea.vmem %s15, 128
    %v2928 = vld [vmem:[%s2927] sm:$0xf]
    %v2929 = vld [vmem:[%s2927 + $0x4] sm:$0xf]
    %v2930 = vld [vmem:[%s2927 + $0x8] sm:$0xf]
    %v2931 = vld [vmem:[%s2927 + $0xc] sm:$0xf]
    %v2932 = vld [vmem:[%s2927 + $0x10] sm:$0xf]
    %v2933 = vld [vmem:[%s2927 + $0x14] sm:$0xf]
    %v2934 = vld [vmem:[%s2927 + $0x18] sm:$0xf]
    %v2935 = vld [vmem:[%s2927 + $0x1c] sm:$0xf]
    %v2936 = vld [vmem:[%s2927 + $0x20] sm:$0xf]
    %v2937 = vld [vmem:[%s2927 + $0x24] sm:$0xf]
    %v2938 = vld [vmem:[%s2927 + $0x28] sm:$0xf]
    %v2939 = vld [vmem:[%s2927 + $0x2c] sm:$0xf]
    %v2940 = vld [vmem:[%s2927 + $0x30] sm:$0xf]
    %v2941 = vld [vmem:[%s2927 + $0x34] sm:$0xf]
    %v2942 = vld [vmem:[%s2927 + $0x38] sm:$0xf]
    %v2943 = vld [vmem:[%s2927 + $0x3c] sm:$0xf]
    %v2945 = vrot.slane %v2707, 1
    %v2963 = vunpack.c.l.b16 %v2928
    %v2964 = vunpack.c.l.b16 %v2929
    %v2965 = vunpack.c.l.b16 %v2930
    %v2966 = vunpack.c.l.b16 %v2931
    %v2967 = vunpack.c.l.b16 %v2932
    %v2968 = vunpack.c.l.b16 %v2933
    %v2969 = vunpack.c.l.b16 %v2934
    %v2970 = vunpack.c.l.b16 %v2935
    %v2971 = vunpack.c.l.b16 %v2936
    %v2972 = vunpack.c.l.b16 %v2937
    %v2973 = vunpack.c.l.b16 %v2938
    %v2974 = vunpack.c.l.b16 %v2939
    %v2975 = vunpack.c.l.b16 %v2940
    %v2976 = vunpack.c.l.b16 %v2941
    %v2977 = vunpack.c.l.b16 %v2942
    %v2978 = vunpack.c.l.b16 %v2943
    %v2979 = vpack.c.b16 %v2964, %v2963
    %v2980 = vpack.c.b16 %v2966, %v2965
    %v2981 = vpack.c.b16 %v2968, %v2967
    %v2982 = vpack.c.b16 %v2970, %v2969
    %v2983 = vpack.c.b16 %v2972, %v2971
    %v2984 = vpack.c.b16 %v2974, %v2973
    %v2985 = vpack.c.b16 %v2976, %v2975
    %v2986 = vpack.c.b16 %v2978, %v2977
    %2995 = vmatprep.subr.bf16.mxu0 0
    %2996 = vmatpush1.bf16.msra.mxu0 %v2979
    %2997 = vmatprep.subr.bf16.mxu0 0
    %2998 = vmatpush1.bf16.msra.mxu0 %v2980
    %2999 = vmatprep.subr.bf16.mxu0 0
    %3000 = vmatpush1.bf16.msra.mxu0 %v2981
    %3001 = vmatprep.subr.bf16.mxu0 0
    %3002 = vmatpush1.bf16.msra.mxu0 %v2982
    %3003 = vmatprep.subr.bf16.mxu0 0
    %3004 = vmatpush1.bf16.msra.mxu0 %v2983
    %3005 = vmatprep.subr.bf16.mxu0 0
    %3006 = vmatpush1.bf16.msra.mxu0 %v2984
    %3007 = vmatprep.subr.bf16.mxu0 0
    %3008 = vmatpush1.bf16.msra.mxu0 %v2985
    %3009 = vmatprep.subr.bf16.mxu0 0
    %3010 = vmatpush1.bf16.msra.mxu0 %v2986
    %3011 = vmatprep.subr.bf16.mxu0 0
    %3012 = vmatpush1.bf16.msra.mxu0 0
    %3013 = vmatprep.subr.bf16.mxu0 0
    %3014 = vmatpush1.bf16.msra.mxu0 0
    %3015 = vmatprep.subr.bf16.mxu0 0
    %3016 = vmatpush1.bf16.msra.mxu0 0
    %3017 = vmatprep.subr.bf16.mxu0 0
    %3018 = vmatpush1.bf16.msra.mxu0 0
    %3019 = vmatprep.subr.bf16.mxu0 0
    %3020 = vmatpush1.bf16.msra.mxu0 0
    %3021 = vmatprep.subr.bf16.mxu0 0
    %3022 = vmatpush1.bf16.msra.mxu0 0
    %3023 = vmatprep.subr.bf16.mxu0 0
    %3024 = vmatpush1.bf16.msra.mxu0 0
    %3025 = vmatprep.subr.bf16.mxu0 0
    %3026 = vmatpush1.bf16.msra.mxu0 0
    %3027 = vmatprep.mubr.bf16.mxu0 0
    %3028 = vmatmul.mubr.bf16.gmra.mrb[0].mxu0 %v2945
    %v3029 = vpop.f32.mrb[0].mxu0
    %v3030 = vadd.f32 0.0, %v3029
    %v3031 = vpop.f32.mrb[0].mxu0
    %v3032 = vpop.f32.mrb[0].mxu0
    %v3033 = vadd.f32 0.0, %v3032
    %v3034 = vpop.f32.mrb[0].mxu0
    %3035 = vdwg.mxu0
    %v3036 = vadd.f32 %v2921, %v3030
    %v3037 = vadd.f32 %v2924, %v3033
    %s3038 = scalar_lea.vmem %s15, 192
    %v3039 = vld [vmem:[%s3038] sm:$0xf]
    %v3040 = vld [vmem:[%s3038 + $0x4] sm:$0xf]
    %v3041 = vld [vmem:[%s3038 + $0x8] sm:$0xf]
    %v3042 = vld [vmem:[%s3038 + $0xc] sm:$0xf]
    %v3043 = vld [vmem:[%s3038 + $0x10] sm:$0xf]
    %v3044 = vld [vmem:[%s3038 + $0x14] sm:$0xf]
    %v3045 = vld [vmem:[%s3038 + $0x18] sm:$0xf]
    %v3046 = vld [vmem:[%s3038 + $0x1c] sm:$0xf]
    %v3047 = vld [vmem:[%s3038 + $0x20] sm:$0xf]
    %v3048 = vld [vmem:[%s3038 + $0x24] sm:$0xf]
    %v3049 = vld [vmem:[%s3038 + $0x28] sm:$0xf]
    %v3050 = vld [vmem:[%s3038 + $0x2c] sm:$0xf]
    %v3051 = vld [vmem:[%s3038 + $0x30] sm:$0xf]
    %v3052 = vld [vmem:[%s3038 + $0x34] sm:$0xf]
    %v3053 = vld [vmem:[%s3038 + $0x38] sm:$0xf]
    %v3054 = vld [vmem:[%s3038 + $0x3c] sm:$0xf]
    %v3055 = vrot.slane %v2742, 1
    %v3056 = vrot.slane %v2744, 2
    %v3057 = vor.u32 %v3055, %v3056
    %v3075 = vunpack.c.l.b16 %v3039
    %v3076 = vunpack.c.l.b16 %v3040
    %v3077 = vunpack.c.l.b16 %v3041
    %v3078 = vunpack.c.l.b16 %v3042
    %v3079 = vunpack.c.l.b16 %v3043
    %v3080 = vunpack.c.l.b16 %v3044
    %v3081 = vunpack.c.l.b16 %v3045
    %v3082 = vunpack.c.l.b16 %v3046
    %v3083 = vunpack.c.l.b16 %v3047
    %v3084 = vunpack.c.l.b16 %v3048
    %v3085 = vunpack.c.l.b16 %v3049
    %v3086 = vunpack.c.l.b16 %v3050
    %v3087 = vunpack.c.l.b16 %v3051
    %v3088 = vunpack.c.l.b16 %v3052
    %v3089 = vunpack.c.l.b16 %v3053
    %v3090 = vunpack.c.l.b16 %v3054
    %v3091 = vpack.c.b16 %v3076, %v3075
    %v3092 = vpack.c.b16 %v3078, %v3077
    %v3093 = vpack.c.b16 %v3080, %v3079
    %v3094 = vpack.c.b16 %v3082, %v3081
    %v3095 = vpack.c.b16 %v3084, %v3083
    %v3096 = vpack.c.b16 %v3086, %v3085
    %v3097 = vpack.c.b16 %v3088, %v3087
    %v3098 = vpack.c.b16 %v3090, %v3089
    %3107 = vmatprep.subr.bf16.mxu0 0
    %3108 = vmatpush1.bf16.msra.mxu0 %v3091
    %3109 = vmatprep.subr.bf16.mxu0 0
    %3110 = vmatpush1.bf16.msra.mxu0 %v3092
    %3111 = vmatprep.subr.bf16.mxu0 0
    %3112 = vmatpush1.bf16.msra.mxu0 %v3093
    %3113 = vmatprep.subr.bf16.mxu0 0
    %3114 = vmatpush1.bf16.msra.mxu0 %v3094
    %3115 = vmatprep.subr.bf16.mxu0 0
    %3116 = vmatpush1.bf16.msra.mxu0 %v3095
    %3117 = vmatprep.subr.bf16.mxu0 0
    %3118 = vmatpush1.bf16.msra.mxu0 %v3096
    %3119 = vmatprep.subr.bf16.mxu0 0
    %3120 = vmatpush1.bf16.msra.mxu0 %v3097
    %3121 = vmatprep.subr.bf16.mxu0 0
    %3122 = vmatpush1.bf16.msra.mxu0 %v3098
    %3123 = vmatprep.subr.bf16.mxu0 0
    %3124 = vmatpush1.bf16.msra.mxu0 0
    %3125 = vmatprep.subr.bf16.mxu0 0
    %3126 = vmatpush1.bf16.msra.mxu0 0
    %3127 = vmatprep.subr.bf16.mxu0 0
    %3128 = vmatpush1.bf16.msra.mxu0 0
    %3129 = vmatprep.subr.bf16.mxu0 0
    %3130 = vmatpush1.bf16.msra.mxu0 0
    %3131 = vmatprep.subr.bf16.mxu0 0
    %3132 = vmatpush1.bf16.msra.mxu0 0
    %3133 = vmatprep.subr.bf16.mxu0 0
    %3134 = vmatpush1.bf16.msra.mxu0 0
    %3135 = vmatprep.subr.bf16.mxu0 0
    %3136 = vmatpush1.bf16.msra.mxu0 0
    %3137 = vmatprep.subr.bf16.mxu0 0
    %3138 = vmatpush1.bf16.msra.mxu0 0
    %3139 = vmatprep.mubr.bf16.mxu0 0
    %3140 = vmatmul.mubr.bf16.gmra.mrb[0].mxu0 %v3057
    %v3141 = vpop.f32.mrb[0].mxu0
    %v3142 = vadd.f32 0.0, %v3141
    %v3143 = vpop.f32.mrb[0].mxu0
    %v3144 = vpop.f32.mrb[0].mxu0
    %v3145 = vadd.f32 0.0, %v3144
    %v3146 = vpop.f32.mrb[0].mxu0
    %3147 = vdwg.mxu0
    %v3148 = vadd.f32 %v3036, %v3142
    %v3149 = vadd.f32 %v3037, %v3145
    %s3150 = scalar_lea.vmem %s15, 256
    %v3151 = vld [vmem:[%s3150] sm:$0xf]
    %v3152 = vld [vmem:[%s3150 + $0x4] sm:$0xf]
    %v3153 = vld [vmem:[%s3150 + $0x8] sm:$0xf]
    %v3154 = vld [vmem:[%s3150 + $0xc] sm:$0xf]
    %v3155 = vld [vmem:[%s3150 + $0x10] sm:$0xf]
    %v3156 = vld [vmem:[%s3150 + $0x14] sm:$0xf]
    %v3157 = vld [vmem:[%s3150 + $0x18] sm:$0xf]
    %v3158 = vld [vmem:[%s3150 + $0x1c] sm:$0xf]
    %v3159 = vld [vmem:[%s3150 + $0x20] sm:$0xf]
    %v3160 = vld [vmem:[%s3150 + $0x24] sm:$0xf]
    %v3161 = vld [vmem:[%s3150 + $0x28] sm:$0xf]
    %v3162 = vld [vmem:[%s3150 + $0x2c] sm:$0xf]
    %v3163 = vld [vmem:[%s3150 + $0x30] sm:$0xf]
    %v3164 = vld [vmem:[%s3150 + $0x34] sm:$0xf]
    %v3165 = vld [vmem:[%s3150 + $0x38] sm:$0xf]
    %v3166 = vld [vmem:[%s3150 + $0x3c] sm:$0xf]
    %v3167 = vrot.slane %v2707, 2
    %v3185 = vunpack.c.l.b16 %v3151
    %v3186 = vunpack.c.l.b16 %v3152
    %v3187 = vunpack.c.l.b16 %v3153
    %v3188 = vunpack.c.l.b16 %v3154
    %v3189 = vunpack.c.l.b16 %v3155
    %v3190 = vunpack.c.l.b16 %v3156
    %v3191 = vunpack.c.l.b16 %v3157
    %v3192 = vunpack.c.l.b16 %v3158
    %v3193 = vunpack.c.l.b16 %v3159
    %v3194 = vunpack.c.l.b16 %v3160
    %v3195 = vunpack.c.l.b16 %v3161
    %v3196 = vunpack.c.l.b16 %v3162
    %v3197 = vunpack.c.l.b16 %v3163
    %v3198 = vunpack.c.l.b16 %v3164
    %v3199 = vunpack.c.l.b16 %v3165
    %v3200 = vunpack.c.l.b16 %v3166
    %v3201 = vpack.c.b16 %v3186, %v3185
    %v3202 = vpack.c.b16 %v3188, %v3187
    %v3203 = vpack.c.b16 %v3190, %v3189
    %v3204 = vpack.c.b16 %v3192, %v3191
    %v3205 = vpack.c.b16 %v3194, %v3193
    %v3206 = vpack.c.b16 %v3196, %v3195
    %v3207 = vpack.c.b16 %v3198, %v3197
    %v3208 = vpack.c.b16 %v3200, %v3199
    %3217 = vmatprep.subr.bf16.mxu0 0
    %3218 = vmatpush1.bf16.msra.mxu0 %v3201
    %3219 = vmatprep.subr.bf16.mxu0 0
    %3220 = vmatpush1.bf16.msra.mxu0 %v3202
    %3221 = vmatprep.subr.bf16.mxu0 0
    %3222 = vmatpush1.bf16.msra.mxu0 %v3203
    %3223 = vmatprep.subr.bf16.mxu0 0
    %3224 = vmatpush1.bf16.msra.mxu0 %v3204
    %3225 = vmatprep.subr.bf16.mxu0 0
    %3226 = vmatpush1.bf16.msra.mxu0 %v3205
    %3227 = vmatprep.subr.bf16.mxu0 0
    %3228 = vmatpush1.bf16.msra.mxu0 %v3206
    %3229 = vmatprep.subr.bf16.mxu0 0
    %3230 = vmatpush1.bf16.msra.mxu0 %v3207
    %3231 = vmatprep.subr.bf16.mxu0 0
    %3232 = vmatpush1.bf16.msra.mxu0 %v3208
    %3233 = vmatprep.subr.bf16.mxu0 0
    %3234 = vmatpush1.bf16.msra.mxu0 0
    %3235 = vmatprep.subr.bf16.mxu0 0
    %3236 = vmatpush1.bf16.msra.mxu0 0
    %3237 = vmatprep.subr.bf16.mxu0 0
    %3238 = vmatpush1.bf16.msra.mxu0 0
    %3239 = vmatprep.subr.bf16.mxu0 0
    %3240 = vmatpush1.bf16.msra.mxu0 0
    %3241 = vmatprep.subr.bf16.mxu0 0
    %3242 = vmatpush1.bf16.msra.mxu0 0
    %3243 = vmatprep.subr.bf16.mxu0 0
    %3244 = vmatpush1.bf16.msra.mxu0 0
    %3245 = vmatprep.subr.bf16.mxu0 0
    %3246 = vmatpush1.bf16.msra.mxu0 0
    %3247 = vmatprep.subr.bf16.mxu0 0
    %3248 = vmatpush1.bf16.msra.mxu0 0
    %3249 = vmatprep.mubr.bf16.mxu0 0
    %3250 = vmatmul.mubr.bf16.gmra.mrb[0].mxu0 %v3167
    %v3251 = vpop.f32.mrb[0].mxu0
    %v3252 = vadd.f32 0.0, %v3251
    %v3253 = vpop.f32.mrb[0].mxu0
    %v3254 = vpop.f32.mrb[0].mxu0
    %v3255 = vadd.f32 0.0, %v3254
    %v3256 = vpop.f32.mrb[0].mxu0
    %3257 = vdwg.mxu0
    %v3258 = vadd.f32 %v3148, %v3252
    %v3259 = vadd.f32 %v3149, %v3255
    %v3260 = vld [vmem:[%s16] sm:$0x1]
    %v3262 = vlaneseq
    %v3263 = vshrl.u32 %v3262, 7
    %v3264 = vsub.s32 0, %v3263
    %v3265 = vrot.slane %v3260, %v3264
    %v3267 = vadd.f32 %v3258, %v3265
    %v3268 = vadd.f32 %v3259, %v3265
    %v3269 = vpack.c.bf16 %v3268, %v3267
    %v3271 = vrot.slane %v3269, 6
    %v3273 = vsel %vm126, 0, %v3271
    %v3274 = vld [vmem:[%s17] sm:$0xf]
    %v3275 = vld [vmem:[%s17 + $0x4] sm:$0xf]
    %v3276 = vld [vmem:[%s17 + $0x8] sm:$0xf]
    %v3277 = vld [vmem:[%s17 + $0xc] sm:$0xf]
    %v3278 = vld [vmem:[%s17 + $0x10] sm:$0xf]
    %v3279 = vld [vmem:[%s17 + $0x14] sm:$0xf]
    %v3280 = vld [vmem:[%s17 + $0x18] sm:$0xf]
    %v3281 = vld [vmem:[%s17 + $0x1c] sm:$0xf]
    %s3282 = scalar_lea.vmem %s17, 32
    %v3283 = vld [vmem:[%s3282] sm:$0xf]
    %v3284 = vld [vmem:[%s3282 + $0x4] sm:$0xf]
    %v3285 = vld [vmem:[%s3282 + $0x8] sm:$0xf]
    %v3286 = vld [vmem:[%s3282 + $0xc] sm:$0xf]
    %v3287 = vld [vmem:[%s3282 + $0x10] sm:$0xf]
    %v3288 = vld [vmem:[%s3282 + $0x14] sm:$0xf]
    %v3289 = vld [vmem:[%s3282 + $0x18] sm:$0xf]
    %v3290 = vld [vmem:[%s3282 + $0x1c] sm:$0xf]
    %vm3291 = vsmask.f32 7424
    %v3292 = vshrl.u32 %v3273, 16
    %v3294 = vshll.u32 %v3273, 16
    %v3296 = vrot.slane %v3294, 1
    %v3297 = vor.u32 %v3292, %v3296
    %v3298 = vshll.u32 0, 16
    %v3300 = vrot.slane %v3298, 1
    %v3301 = vsel %vm3291, %v3297, %v3300
    %v3310 = vunpack.c.l.b16 %v3283
    %v3311 = vunpack.c.l.b16 %v3284
    %v3312 = vunpack.c.l.b16 %v3285
    %v3313 = vunpack.c.l.b16 %v3286
    %v3314 = vunpack.c.l.b16 %v3287
    %v3315 = vunpack.c.l.b16 %v3288
    %v3316 = vunpack.c.l.b16 %v3289
    %v3317 = vunpack.c.l.b16 %v3290
    %v3318 = vpack.c.b16 %v3311, %v3310
    %v3319 = vpack.c.b16 %v3313, %v3312
    %v3320 = vpack.c.b16 %v3315, %v3314
    %v3321 = vpack.c.b16 %v3317, %v3316
    %v3327 = vsel %vm220, %v3301, 0
    %3329 = vmatprep.subr.bf16.mxu0 0
    %3330 = vmatpush1.bf16.msra.mxu0 %v3318
    %3331 = vmatprep.subr.bf16.mxu0 0
    %3332 = vmatpush1.bf16.msra.mxu0 %v3319
    %3333 = vmatprep.subr.bf16.mxu0 0
    %3334 = vmatpush1.bf16.msra.mxu0 %v3320
    %3335 = vmatprep.subr.bf16.mxu0 0
    %3336 = vmatpush1.bf16.msra.mxu0 %v3321
    %3337 = vmatprep.subr.bf16.mxu0 0
    %3338 = vmatpush1.bf16.msra.mxu0 0
    %3339 = vmatprep.subr.bf16.mxu0 0
    %3340 = vmatpush1.bf16.msra.mxu0 0
    %3341 = vmatprep.subr.bf16.mxu0 0
    %3342 = vmatpush1.bf16.msra.mxu0 0
    %3343 = vmatprep.subr.bf16.mxu0 0
    %3344 = vmatpush1.bf16.msra.mxu0 0
    %3345 = vmatprep.subr.bf16.mxu0 0
    %3346 = vmatpush1.bf16.msra.mxu0 0
    %3347 = vmatprep.subr.bf16.mxu0 0
    %3348 = vmatpush1.bf16.msra.mxu0 0
    %3349 = vmatprep.subr.bf16.mxu0 0
    %3350 = vmatpush1.bf16.msra.mxu0 0
    %3351 = vmatprep.subr.bf16.mxu0 0
    %3352 = vmatpush1.bf16.msra.mxu0 0
    %3353 = vmatprep.subr.bf16.mxu0 0
    %3354 = vmatpush1.bf16.msra.mxu0 0
    %3355 = vmatprep.subr.bf16.mxu0 0
    %3356 = vmatpush1.bf16.msra.mxu0 0
    %3357 = vmatprep.subr.bf16.mxu0 0
    %3358 = vmatpush1.bf16.msra.mxu0 0
    %3359 = vmatprep.subr.bf16.mxu0 0
    %3360 = vmatpush1.bf16.msra.mxu0 0
    %3361 = vmatprep.mubr.bf16.mxu0 0
    %3362 = vmatmul.mubr.bf16.gmra.mrb[0].mxu0 %v3327
    %v3363 = vpop.f32.mrb[0].mxu0
    %v3364 = vadd.f32 0.0, %v3363
    %v3365 = vpop.f32.mrb[0].mxu0
    %v3366 = vpop.f32.mrb[0].mxu0
    %v3367 = vadd.f32 0.0, %v3366
    %v3368 = vpop.f32.mrb[0].mxu0
    %3369 = vdwg.mxu0
    %v3378 = vunpack.c.l.b16 %v3274
    %v3379 = vunpack.c.l.b16 %v3275
    %v3380 = vunpack.c.l.b16 %v3276
    %v3381 = vunpack.c.l.b16 %v3277
    %v3382 = vunpack.c.l.b16 %v3278
    %v3383 = vunpack.c.l.b16 %v3279
    %v3384 = vunpack.c.l.b16 %v3280
    %v3385 = vunpack.c.l.b16 %v3281
    %v3386 = vpack.c.b16 %v3379, %v3378
    %v3387 = vpack.c.b16 %v3381, %v3380
    %v3388 = vpack.c.b16 %v3383, %v3382
    %v3389 = vpack.c.b16 %v3385, %v3384
    %v3394 = vsel %vm220, %v3273, 0
    %3396 = vmatprep.subr.bf16.mxu0 0
    %3397 = vmatpush1.bf16.msra.mxu0 %v3386
    %3398 = vmatprep.subr.bf16.mxu0 0
    %3399 = vmatpush1.bf16.msra.mxu0 %v3387
    %3400 = vmatprep.subr.bf16.mxu0 0
    %3401 = vmatpush1.bf16.msra.mxu0 %v3388
    %3402 = vmatprep.subr.bf16.mxu0 0
    %3403 = vmatpush1.bf16.msra.mxu0 %v3389
    %3404 = vmatprep.subr.bf16.mxu0 0
    %3405 = vmatpush1.bf16.msra.mxu0 0
    %3406 = vmatprep.subr.bf16.mxu0 0
    %3407 = vmatpush1.bf16.msra.mxu0 0
    %3408 = vmatprep.subr.bf16.mxu0 0
    %3409 = vmatpush1.bf16.msra.mxu0 0
    %3410 = vmatprep.subr.bf16.mxu0 0
    %3411 = vmatpush1.bf16.msra.mxu0 0
    %3412 = vmatprep.subr.bf16.mxu0 0
    %3413 = vmatpush1.bf16.msra.mxu0 0
    %3414 = vmatprep.subr.bf16.mxu0 0
    %3415 = vmatpush1.bf16.msra.mxu0 0
    %3416 = vmatprep.subr.bf16.mxu0 0
    %3417 = vmatpush1.bf16.msra.mxu0 0
    %3418 = vmatprep.subr.bf16.mxu0 0
    %3419 = vmatpush1.bf16.msra.mxu0 0
    %3420 = vmatprep.subr.bf16.mxu0 0
    %3421 = vmatpush1.bf16.msra.mxu0 0
    %3422 = vmatprep.subr.bf16.mxu0 0
    %3423 = vmatpush1.bf16.msra.mxu0 0
    %3424 = vmatprep.subr.bf16.mxu0 0
    %3425 = vmatpush1.bf16.msra.mxu0 0
    %3426 = vmatprep.subr.bf16.mxu0 0
    %3427 = vmatpush1.bf16.msra.mxu0 0
    %3428 = vmatprep.mubr.bf16.mxu0 0
    %3429 = vmatmul.mubr.bf16.gmra.mrb[0].mxu0 %v3394
    %v3430 = vpop.f32.mrb[0].mxu0
    %v3431 = vadd.f32 %v3364, %v3430
    %v3432 = vpop.f32.mrb[0].mxu0
    %v3433 = vpop.f32.mrb[0].mxu0
    %v3434 = vadd.f32 %v3367, %v3433
    %v3435 = vpop.f32.mrb[0].mxu0
    %3436 = vdwg.mxu0
    %s3437 = scalar_lea.vmem %s17, 64
    %v3438 = vld [vmem:[%s3437] sm:$0xf]
    %v3439 = vld [vmem:[%s3437 + $0x4] sm:$0xf]
    %v3440 = vld [vmem:[%s3437 + $0x8] sm:$0xf]
    %v3441 = vld [vmem:[%s3437 + $0xc] sm:$0xf]
    %v3442 = vld [vmem:[%s3437 + $0x10] sm:$0xf]
    %v3443 = vld [vmem:[%s3437 + $0x14] sm:$0xf]
    %v3444 = vld [vmem:[%s3437 + $0x18] sm:$0xf]
    %v3445 = vld [vmem:[%s3437 + $0x1c] sm:$0xf]
    %vm3448 = vcmask 1046528
    %v3449 = vrot.slane %v3273, 1
    %v3450 = vrot.slane 0, 1
    %v3451 = vsel %vm3448, %v3449, %v3450
    %v3460 = vunpack.c.l.b16 %v3438
    %v3461 = vunpack.c.l.b16 %v3439
    %v3462 = vunpack.c.l.b16 %v3440
    %v3463 = vunpack.c.l.b16 %v3441
    %v3464 = vunpack.c.l.b16 %v3442
    %v3465 = vunpack.c.l.b16 %v3443
    %v3466 = vunpack.c.l.b16 %v3444
    %v3467 = vunpack.c.l.b16 %v3445
    %v3468 = vpack.c.b16 %v3461, %v3460
    %v3469 = vpack.c.b16 %v3463, %v3462
    %v3470 = vpack.c.b16 %v3465, %v3464
    %v3471 = vpack.c.b16 %v3467, %v3466
    %v3477 = vsel %vm220, %v3451, 0
    %3479 = vmatprep.subr.bf16.mxu0 0
    %3480 = vmatpush1.bf16.msra.mxu0 %v3468
    %3481 = vmatprep.subr.bf16.mxu0 0
    %3482 = vmatpush1.bf16.msra.mxu0 %v3469
    %3483 = vmatprep.subr.bf16.mxu0 0
    %3484 = vmatpush1.bf16.msra.mxu0 %v3470
    %3485 = vmatprep.subr.bf16.mxu0 0
    %3486 = vmatpush1.bf16.msra.mxu0 %v3471
    %3487 = vmatprep.subr.bf16.mxu0 0
    %3488 = vmatpush1.bf16.msra.mxu0 0
    %3489 = vmatprep.subr.bf16.mxu0 0
    %3490 = vmatpush1.bf16.msra.mxu0 0
    %3491 = vmatprep.subr.bf16.mxu0 0
    %3492 = vmatpush1.bf16.msra.mxu0 0
    %3493 = vmatprep.subr.bf16.mxu0 0
    %3494 = vmatpush1.bf16.msra.mxu0 0
    %3495 = vmatprep.subr.bf16.mxu0 0
    %3496 = vmatpush1.bf16.msra.mxu0 0
    %3497 = vmatprep.subr.bf16.mxu0 0
    %3498 = vmatpush1.bf16.msra.mxu0 0
    %3499 = vmatprep.subr.bf16.mxu0 0
    %3500 = vmatpush1.bf16.msra.mxu0 0
    %3501 = vmatprep.subr.bf16.mxu0 0
    %3502 = vmatpush1.bf16.msra.mxu0 0
    %3503 = vmatprep.subr.bf16.mxu0 0
    %3504 = vmatpush1.bf16.msra.mxu0 0
    %3505 = vmatprep.subr.bf16.mxu0 0
    %3506 = vmatpush1.bf16.msra.mxu0 0
    %3507 = vmatprep.subr.bf16.mxu0 0
    %3508 = vmatpush1.bf16.msra.mxu0 0
    %3509 = vmatprep.subr.bf16.mxu0 0
    %3510 = vmatpush1.bf16.msra.mxu0 0
    %3511 = vmatprep.mubr.bf16.mxu0 0
    %3512 = vmatmul.mubr.bf16.gmra.mrb[0].mxu0 %v3477
    %v3513 = vpop.f32.mrb[0].mxu0
    %v3514 = vadd.f32 0.0, %v3513
    %v3515 = vpop.f32.mrb[0].mxu0
    %v3516 = vpop.f32.mrb[0].mxu0
    %v3517 = vadd.f32 0.0, %v3516
    %v3518 = vpop.f32.mrb[0].mxu0
    %3519 = vdwg.mxu0
    %v3520 = vadd.f32 %v3431, %v3514
    %v3521 = vadd.f32 %v3434, %v3517
    %s3522 = scalar_lea.vmem %s17, 96
    %v3523 = vld [vmem:[%s3522] sm:$0xf]
    %v3524 = vld [vmem:[%s3522 + $0x4] sm:$0xf]
    %v3525 = vld [vmem:[%s3522 + $0x8] sm:$0xf]
    %v3526 = vld [vmem:[%s3522 + $0xc] sm:$0xf]
    %v3527 = vld [vmem:[%s3522 + $0x10] sm:$0xf]
    %v3528 = vld [vmem:[%s3522 + $0x14] sm:$0xf]
    %v3529 = vld [vmem:[%s3522 + $0x18] sm:$0xf]
    %v3530 = vld [vmem:[%s3522 + $0x1c] sm:$0xf]
    %vm3531 = vsmask.f32 6400
    %v3532 = vrot.slane %v3292, 1
    %v3533 = vrot.slane %v3294, 2
    %v3534 = vor.u32 %v3532, %v3533
    %v3535 = vshrl.u32 0, 16
    %v3537 = vrot.slane %v3535, 1
    %v3538 = vrot.slane %v3298, 2
    %v3539 = vor.u32 %v3537, %v3538
    %v3540 = vsel %vm3531, %v3534, %v3539
    %v3549 = vunpack.c.l.b16 %v3523
    %v3550 = vunpack.c.l.b16 %v3524
    %v3551 = vunpack.c.l.b16 %v3525
    %v3552 = vunpack.c.l.b16 %v3526
    %v3553 = vunpack.c.l.b16 %v3527
    %v3554 = vunpack.c.l.b16 %v3528
    %v3555 = vunpack.c.l.b16 %v3529
    %v3556 = vunpack.c.l.b16 %v3530
    %v3557 = vpack.c.b16 %v3550, %v3549
    %v3558 = vpack.c.b16 %v3552, %v3551
    %v3559 = vpack.c.b16 %v3554, %v3553
    %v3560 = vpack.c.b16 %v3556, %v3555
    %v3566 = vsel %vm220, %v3540, 0
    %3568 = vmatprep.subr.bf16.mxu0 0
    %3569 = vmatpush1.bf16.msra.mxu0 %v3557
    %3570 = vmatprep.subr.bf16.mxu0 0
    %3571 = vmatpush1.bf16.msra.mxu0 %v3558
    %3572 = vmatprep.subr.bf16.mxu0 0
    %3573 = vmatpush1.bf16.msra.mxu0 %v3559
    %3574 = vmatprep.subr.bf16.mxu0 0
    %3575 = vmatpush1.bf16.msra.mxu0 %v3560
    %3576 = vmatprep.subr.bf16.mxu0 0
    %3577 = vmatpush1.bf16.msra.mxu0 0
    %3578 = vmatprep.subr.bf16.mxu0 0
    %3579 = vmatpush1.bf16.msra.mxu0 0
    %3580 = vmatprep.subr.bf16.mxu0 0
    %3581 = vmatpush1.bf16.msra.mxu0 0
    %3582 = vmatprep.subr.bf16.mxu0 0
    %3583 = vmatpush1.bf16.msra.mxu0 0
    %3584 = vmatprep.subr.bf16.mxu0 0
    %3585 = vmatpush1.bf16.msra.mxu0 0
    %3586 = vmatprep.subr.bf16.mxu0 0
    %3587 = vmatpush1.bf16.msra.mxu0 0
    %3588 = vmatprep.subr.bf16.mxu0 0
    %3589 = vmatpush1.bf16.msra.mxu0 0
    %3590 = vmatprep.subr.bf16.mxu0 0
    %3591 = vmatpush1.bf16.msra.mxu0 0
    %3592 = vmatprep.subr.bf16.mxu0 0
    %3593 = vmatpush1.bf16.msra.mxu0 0
    %3594 = vmatprep.subr.bf16.mxu0 0
    %3595 = vmatpush1.bf16.msra.mxu0 0
    %3596 = vmatprep.subr.bf16.mxu0 0
    %3597 = vmatpush1.bf16.msra.mxu0 0
    %3598 = vmatprep.subr.bf16.mxu0 0
    %3599 = vmatpush1.bf16.msra.mxu0 0
    %3600 = vmatprep.mubr.bf16.mxu0 0
    %3601 = vmatmul.mubr.bf16.gmra.mrb[0].mxu0 %v3566
    %v3602 = vpop.f32.mrb[0].mxu0
    %v3603 = vadd.f32 0.0, %v3602
    %v3604 = vpop.f32.mrb[0].mxu0
    %v3605 = vpop.f32.mrb[0].mxu0
    %v3606 = vadd.f32 0.0, %v3605
    %v3607 = vpop.f32.mrb[0].mxu0
    %3608 = vdwg.mxu0
    %v3609 = vadd.f32 %v3520, %v3603
    %v3610 = vadd.f32 %v3521, %v3606
    %s3611 = scalar_lea.vmem %s17, 128
    %v3612 = vld [vmem:[%s3611] sm:$0xf]
    %v3613 = vld [vmem:[%s3611 + $0x4] sm:$0xf]
    %v3614 = vld [vmem:[%s3611 + $0x8] sm:$0xf]
    %v3615 = vld [vmem:[%s3611 + $0xc] sm:$0xf]
    %v3616 = vld [vmem:[%s3611 + $0x10] sm:$0xf]
    %v3617 = vld [vmem:[%s3611 + $0x14] sm:$0xf]
    %v3618 = vld [vmem:[%s3611 + $0x18] sm:$0xf]
    %v3619 = vld [vmem:[%s3611 + $0x1c] sm:$0xf]
    %v3620 = vrot.slane %v3273, 2
    %v3621 = vrot.slane 0, 2
    %v3622 = vsel %vm2701, %v3620, %v3621
    %v3631 = vunpack.c.l.b16 %v3612
    %v3632 = vunpack.c.l.b16 %v3613
    %v3633 = vunpack.c.l.b16 %v3614
    %v3634 = vunpack.c.l.b16 %v3615
    %v3635 = vunpack.c.l.b16 %v3616
    %v3636 = vunpack.c.l.b16 %v3617
    %v3637 = vunpack.c.l.b16 %v3618
    %v3638 = vunpack.c.l.b16 %v3619
    %v3639 = vpack.c.b16 %v3632, %v3631
    %v3640 = vpack.c.b16 %v3634, %v3633
    %v3641 = vpack.c.b16 %v3636, %v3635
    %v3642 = vpack.c.b16 %v3638, %v3637
    %v3648 = vsel %vm220, %v3622, 0
    %3650 = vmatprep.subr.bf16.mxu0 0
    %3651 = vmatpush1.bf16.msra.mxu0 %v3639
    %3652 = vmatprep.subr.bf16.mxu0 0
    %3653 = vmatpush1.bf16.msra.mxu0 %v3640
    %3654 = vmatprep.subr.bf16.mxu0 0
    %3655 = vmatpush1.bf16.msra.mxu0 %v3641
    %3656 = vmatprep.subr.bf16.mxu0 0
    %3657 = vmatpush1.bf16.msra.mxu0 %v3642
    %3658 = vmatprep.subr.bf16.mxu0 0
    %3659 = vmatpush1.bf16.msra.mxu0 0
    %3660 = vmatprep.subr.bf16.mxu0 0
    %3661 = vmatpush1.bf16.msra.mxu0 0
    %3662 = vmatprep.subr.bf16.mxu0 0
    %3663 = vmatpush1.bf16.msra.mxu0 0
    %3664 = vmatprep.subr.bf16.mxu0 0
    %3665 = vmatpush1.bf16.msra.mxu0 0
    %3666 = vmatprep.subr.bf16.mxu0 0
    %3667 = vmatpush1.bf16.msra.mxu0 0
    %3668 = vmatprep.subr.bf16.mxu0 0
    %3669 = vmatpush1.bf16.msra.mxu0 0
    %3670 = vmatprep.subr.bf16.mxu0 0
    %3671 = vmatpush1.bf16.msra.mxu0 0
    %3672 = vmatprep.subr.bf16.mxu0 0
    %3673 = vmatpush1.bf16.msra.mxu0 0
    %3674 = vmatprep.subr.bf16.mxu0 0
    %3675 = vmatpush1.bf16.msra.mxu0 0
    %3676 = vmatprep.subr.bf16.mxu0 0
    %3677 = vmatpush1.bf16.msra.mxu0 0
    %3678 = vmatprep.subr.bf16.mxu0 0
    %3679 = vmatpush1.bf16.msra.mxu0 0
    %3680 = vmatprep.subr.bf16.mxu0 0
    %3681 = vmatpush1.bf16.msra.mxu0 0
    %3682 = vmatprep.mubr.bf16.mxu0 0
    %3683 = vmatmul.mubr.bf16.gmra.mrb[0].mxu0 %v3648
    %v3684 = vpop.f32.mrb[0].mxu0
    %v3685 = vadd.f32 0.0, %v3684
    %v3686 = vpop.f32.mrb[0].mxu0
    %v3687 = vpop.f32.mrb[0].mxu0
    %v3688 = vadd.f32 0.0, %v3687
    %v3689 = vpop.f32.mrb[0].mxu0
    %3690 = vdwg.mxu0
    %v3691 = vadd.f32 %v3609, %v3685
    %v3692 = vadd.f32 %v3610, %v3688
    %v3693 = vld [vmem:[%s18] sm:$0x1]
    %v3695 = vlaneseq
    %v3696 = vshrl.u32 %v3695, 7
    %v3697 = vsub.s32 0, %v3696
    %v3698 = vrot.slane %v3693, %v3697
    %v3700 = vadd.f32 %v3691, %v3698
    %v3701 = vadd.f32 %v3692, %v3698
    %3702 = vst.msk [vmem:[%s19] sm:$0xff] %vm92, %v3700
    %3703 = vst.msk [vmem:[%s19 + $0x8] sm:$0xff] %vm92, %v3701
    %v3705 = vshrl.u32 %v2636, 16
    %v3707 = vrot.slane %v3705, 6
    %v3709 = vrot.slane %v2637, 6
    %v3712 = vshrl.u32 %v2638, 16
    %v3714 = vrot.slane %v3712, 5
    %v3716 = vrot.slane %v2639, 5
    %v3719 = vshrl.u32 %v2640, 16
    %v3721 = vrot.slane %v3719, 4
    %v3723 = vrot.slane %v2641, 4
    %v3726 = vshrl.u32 %v2642, 16
    %v3728 = vrot.slane %v3726, 3
    %v3730 = vrot.slane %v2643, 3
    %v3733 = vsel %vm126, 0, %v3707
    %v3735 = vsel %vm2678, %v3733, %v3709
    %v3738 = vsel %vm1102, %v3735, %v3714
    %v3740 = vsel %vm2686, %v3738, %v3716
    %v3743 = vsel %vm1103, %v3740, %v3721
    %v3745 = vsel %vm2694, %v3743, %v3723
    %v3748 = vsel %vm2696, %v3745, %v3728
    %v3750 = vsel %vm2703, %v3748, %v3730
    %v3752 = vsel %vm2705, %v3750, 0
    %v3754 = vld [vmem:[%s15] sm:$0xf]
    %v3755 = vld [vmem:[%s15 + $0x4] sm:$0xf]
    %v3756 = vld [vmem:[%s15 + $0x8] sm:$0xf]
    %v3757 = vld [vmem:[%s15 + $0xc] sm:$0xf]
    %v3758 = vld [vmem:[%s15 + $0x10] sm:$0xf]
    %v3759 = vld [vmem:[%s15 + $0x14] sm:$0xf]
    %v3760 = vld [vmem:[%s15 + $0x18] sm:$0xf]
    %v3761 = vld [vmem:[%s15 + $0x1c] sm:$0xf]
    %v3762 = vld [vmem:[%s15 + $0x20] sm:$0xf]
    %v3763 = vld [vmem:[%s15 + $0x24] sm:$0xf]
    %v3764 = vld [vmem:[%s15 + $0x28] sm:$0xf]
    %v3765 = vld [vmem:[%s15 + $0x2c] sm:$0xf]
    %v3766 = vld [vmem:[%s15 + $0x30] sm:$0xf]
    %v3767 = vld [vmem:[%s15 + $0x34] sm:$0xf]
    %v3768 = vld [vmem:[%s15 + $0x38] sm:$0xf]
    %v3769 = vld [vmem:[%s15 + $0x3c] sm:$0xf]
    %v3770 = vld [vmem:[%s2725] sm:$0xf]
    %v3771 = vld [vmem:[%s2725 + $0x4] sm:$0xf]
    %v3772 = vld [vmem:[%s2725 + $0x8] sm:$0xf]
    %v3773 = vld [vmem:[%s2725 + $0xc] sm:$0xf]
    %v3774 = vld [vmem:[%s2725 + $0x10] sm:$0xf]
    %v3775 = vld [vmem:[%s2725 + $0x14] sm:$0xf]
    %v3776 = vld [vmem:[%s2725 + $0x18] sm:$0xf]
    %v3777 = vld [vmem:[%s2725 + $0x1c] sm:$0xf]
    %v3778 = vld [vmem:[%s2725 + $0x20] sm:$0xf]
    %v3779 = vld [vmem:[%s2725 + $0x24] sm:$0xf]
    %v3780 = vld [vmem:[%s2725 + $0x28] sm:$0xf]
    %v3781 = vld [vmem:[%s2725 + $0x2c] sm:$0xf]
    %v3782 = vld [vmem:[%s2725 + $0x30] sm:$0xf]
    %v3783 = vld [vmem:[%s2725 + $0x34] sm:$0xf]
    %v3784 = vld [vmem:[%s2725 + $0x38] sm:$0xf]
    %v3785 = vld [vmem:[%s2725 + $0x3c] sm:$0xf]
    %v3786 = vshrl.u32 %v3752, 16
    %v3788 = vshll.u32 %v3752, 16
    %v3790 = vrot.slane %v3788, 1
    %v3791 = vor.u32 %v3786, %v3790
    %v3809 = vunpack.c.l.b16 %v3770
    %v3810 = vunpack.c.l.b16 %v3771
    %v3811 = vunpack.c.l.b16 %v3772
    %v3812 = vunpack.c.l.b16 %v3773
    %v3813 = vunpack.c.l.b16 %v3774
    %v3814 = vunpack.c.l.b16 %v3775
    %v3815 = vunpack.c.l.b16 %v3776
    %v3816 = vunpack.c.l.b16 %v3777
    %v3817 = vunpack.c.l.b16 %v3778
    %v3818 = vunpack.c.l.b16 %v3779
    %v3819 = vunpack.c.l.b16 %v3780
    %v3820 = vunpack.c.l.b16 %v3781
    %v3821 = vunpack.c.l.b16 %v3782
    %v3822 = vunpack.c.l.b16 %v3783
    %v3823 = vunpack.c.l.b16 %v3784
    %v3824 = vunpack.c.l.b16 %v3785
    %v3825 = vpack.c.b16 %v3810, %v3809
    %v3826 = vpack.c.b16 %v3812, %v3811
    %v3827 = vpack.c.b16 %v3814, %v3813
    %v3828 = vpack.c.b16 %v3816, %v3815
    %v3829 = vpack.c.b16 %v3818, %v3817
    %v3830 = vpack.c.b16 %v3820, %v3819
    %v3831 = vpack.c.b16 %v3822, %v3821
    %v3832 = vpack.c.b16 %v3824, %v3823
    %3841 = vmatprep.subr.bf16.mxu0 0
    %3842 = vmatpush1.bf16.msra.mxu0 %v3825
    %3843 = vmatprep.subr.bf16.mxu0 0
    %3844 = vmatpush1.bf16.msra.mxu0 %v3826
    %3845 = vmatprep.subr.bf16.mxu0 0
    %3846 = vmatpush1.bf16.msra.mxu0 %v3827
    %3847 = vmatprep.subr.bf16.mxu0 0
    %3848 = vmatpush1.bf16.msra.mxu0 %v3828
    %3849 = vmatprep.subr.bf16.mxu0 0
    %3850 = vmatpush1.bf16.msra.mxu0 %v3829
    %3851 = vmatprep.subr.bf16.mxu0 0
    %3852 = vmatpush1.bf16.msra.mxu0 %v3830
    %3853 = vmatprep.subr.bf16.mxu0 0
    %3854 = vmatpush1.bf16.msra.mxu0 %v3831
    %3855 = vmatprep.subr.bf16.mxu0 0
    %3856 = vmatpush1.bf16.msra.mxu0 %v3832
    %3857 = vmatprep.subr.bf16.mxu0 0
    %3858 = vmatpush1.bf16.msra.mxu0 0
    %3859 = vmatprep.subr.bf16.mxu0 0
    %3860 = vmatpush1.bf16.msra.mxu0 0
    %3861 = vmatprep.subr.bf16.mxu0 0
    %3862 = vmatpush1.bf16.msra.mxu0 0
    %3863 = vmatprep.subr.bf16.mxu0 0
    %3864 = vmatpush1.bf16.msra.mxu0 0
    %3865 = vmatprep.subr.bf16.mxu0 0
    %3866 = vmatpush1.bf16.msra.mxu0 0
    %3867 = vmatprep.subr.bf16.mxu0 0
    %3868 = vmatpush1.bf16.msra.mxu0 0
    %3869 = vmatprep.subr.bf16.mxu0 0
    %3870 = vmatpush1.bf16.msra.mxu0 0
    %3871 = vmatprep.subr.bf16.mxu0 0
    %3872 = vmatpush1.bf16.msra.mxu0 0
    %3873 = vmatprep.mubr.bf16.mxu0 0
    %3874 = vmatmul.mubr.bf16.gmra.mrb[0].mxu0 %v3791
    %v3875 = vpop.f32.mrb[0].mxu0
    %v3876 = vadd.f32 0.0, %v3875
    %v3877 = vpop.f32.mrb[0].mxu0
    %v3878 = vpop.f32.mrb[0].mxu0
    %v3879 = vadd.f32 0.0, %v3878
    %v3880 = vpop.f32.mrb[0].mxu0
    %3881 = vdwg.mxu0
    %v3898 = vunpack.c.l.b16 %v3754
    %v3899 = vunpack.c.l.b16 %v3755
    %v3900 = vunpack.c.l.b16 %v3756
    %v3901 = vunpack.c.l.b16 %v3757
    %v3902 = vunpack.c.l.b16 %v3758
    %v3903 = vunpack.c.l.b16 %v3759
    %v3904 = vunpack.c.l.b16 %v3760
    %v3905 = vunpack.c.l.b16 %v3761
    %v3906 = vunpack.c.l.b16 %v3762
    %v3907 = vunpack.c.l.b16 %v3763
    %v3908 = vunpack.c.l.b16 %v3764
    %v3909 = vunpack.c.l.b16 %v3765
    %v3910 = vunpack.c.l.b16 %v3766
    %v3911 = vunpack.c.l.b16 %v3767
    %v3912 = vunpack.c.l.b16 %v3768
    %v3913 = vunpack.c.l.b16 %v3769
    %v3914 = vpack.c.b16 %v3899, %v3898
    %v3915 = vpack.c.b16 %v3901, %v3900
    %v3916 = vpack.c.b16 %v3903, %v3902
    %v3917 = vpack.c.b16 %v3905, %v3904
    %v3918 = vpack.c.b16 %v3907, %v3906
    %v3919 = vpack.c.b16 %v3909, %v3908
    %v3920 = vpack.c.b16 %v3911, %v3910
    %v3921 = vpack.c.b16 %v3913, %v3912
    %3930 = vmatprep.subr.bf16.mxu0 0
    %3931 = vmatpush1.bf16.msra.mxu0 %v3914
    %3932 = vmatprep.subr.bf16.mxu0 0
    %3933 = vmatpush1.bf16.msra.mxu0 %v3915
    %3934 = vmatprep.subr.bf16.mxu0 0
    %3935 = vmatpush1.bf16.msra.mxu0 %v3916
    %3936 = vmatprep.subr.bf16.mxu0 0
    %3937 = vmatpush1.bf16.msra.mxu0 %v3917
    %3938 = vmatprep.subr.bf16.mxu0 0
    %3939 = vmatpush1.bf16.msra.mxu0 %v3918
    %3940 = vmatprep.subr.bf16.mxu0 0
    %3941 = vmatpush1.bf16.msra.mxu0 %v3919
    %3942 = vmatprep.subr.bf16.mxu0 0
    %3943 = vmatpush1.bf16.msra.mxu0 %v3920
    %3944 = vmatprep.subr.bf16.mxu0 0
    %3945 = vmatpush1.bf16.msra.mxu0 %v3921
    %3946 = vmatprep.subr.bf16.mxu0 0
    %3947 = vmatpush1.bf16.msra.mxu0 0
    %3948 = vmatprep.subr.bf16.mxu0 0
    %3949 = vmatpush1.bf16.msra.mxu0 0
    %3950 = vmatprep.subr.bf16.mxu0 0
    %3951 = vmatpush1.bf16.msra.mxu0 0
    %3952 = vmatprep.subr.bf16.mxu0 0
    %3953 = vmatpush1.bf16.msra.mxu0 0
    %3954 = vmatprep.subr.bf16.mxu0 0
    %3955 = vmatpush1.bf16.msra.mxu0 0
    %3956 = vmatprep.subr.bf16.mxu0 0
    %3957 = vmatpush1.bf16.msra.mxu0 0
    %3958 = vmatprep.subr.bf16.mxu0 0
    %3959 = vmatpush1.bf16.msra.mxu0 0
    %3960 = vmatprep.subr.bf16.mxu0 0
    %3961 = vmatpush1.bf16.msra.mxu0 0
    %3962 = vmatprep.mubr.bf16.mxu0 0
    %3963 = vmatmul.mubr.bf16.gmra.mrb[0].mxu0 %v3752
    %v3964 = vpop.f32.mrb[0].mxu0
    %v3965 = vadd.f32 %v3876, %v3964
    %v3966 = vpop.f32.mrb[0].mxu0
    %v3967 = vpop.f32.mrb[0].mxu0
    %v3968 = vadd.f32 %v3879, %v3967
    %v3969 = vpop.f32.mrb[0].mxu0
    %3970 = vdwg.mxu0
    %v3971 = vld [vmem:[%s2927] sm:$0xf]
    %v3972 = vld [vmem:[%s2927 + $0x4] sm:$0xf]
    %v3973 = vld [vmem:[%s2927 + $0x8] sm:$0xf]
    %v3974 = vld [vmem:[%s2927 + $0xc] sm:$0xf]
    %v3975 = vld [vmem:[%s2927 + $0x10] sm:$0xf]
    %v3976 = vld [vmem:[%s2927 + $0x14] sm:$0xf]
    %v3977 = vld [vmem:[%s2927 + $0x18] sm:$0xf]
    %v3978 = vld [vmem:[%s2927 + $0x1c] sm:$0xf]
    %v3979 = vld [vmem:[%s2927 + $0x20] sm:$0xf]
    %v3980 = vld [vmem:[%s2927 + $0x24] sm:$0xf]
    %v3981 = vld [vmem:[%s2927 + $0x28] sm:$0xf]
    %v3982 = vld [vmem:[%s2927 + $0x2c] sm:$0xf]
    %v3983 = vld [vmem:[%s2927 + $0x30] sm:$0xf]
    %v3984 = vld [vmem:[%s2927 + $0x34] sm:$0xf]
    %v3985 = vld [vmem:[%s2927 + $0x38] sm:$0xf]
    %v3986 = vld [vmem:[%s2927 + $0x3c] sm:$0xf]
    %v3988 = vrot.slane %v3752, 1
    %v4006 = vunpack.c.l.b16 %v3971
    %v4007 = vunpack.c.l.b16 %v3972
    %v4008 = vunpack.c.l.b16 %v3973
    %v4009 = vunpack.c.l.b16 %v3974
    %v4010 = vunpack.c.l.b16 %v3975
    %v4011 = vunpack.c.l.b16 %v3976
    %v4012 = vunpack.c.l.b16 %v3977
    %v4013 = vunpack.c.l.b16 %v3978
    %v4014 = vunpack.c.l.b16 %v3979
    %v4015 = vunpack.c.l.b16 %v3980
    %v4016 = vunpack.c.l.b16 %v3981
    %v4017 = vunpack.c.l.b16 %v3982
    %v4018 = vunpack.c.l.b16 %v3983
    %v4019 = vunpack.c.l.b16 %v3984
    %v4020 = vunpack.c.l.b16 %v3985
    %v4021 = vunpack.c.l.b16 %v3986
    %v4022 = vpack.c.b16 %v4007, %v4006
    %v4023 = vpack.c.b16 %v4009, %v4008
    %v4024 = vpack.c.b16 %v4011, %v4010
    %v4025 = vpack.c.b16 %v4013, %v4012
    %v4026 = vpack.c.b16 %v4015, %v4014
    %v4027 = vpack.c.b16 %v4017, %v4016
    %v4028 = vpack.c.b16 %v4019, %v4018
    %v4029 = vpack.c.b16 %v4021, %v4020
    %4038 = vmatprep.subr.bf16.mxu0 0
    %4039 = vmatpush1.bf16.msra.mxu0 %v4022
    %4040 = vmatprep.subr.bf16.mxu0 0
    %4041 = vmatpush1.bf16.msra.mxu0 %v4023
    %4042 = vmatprep.subr.bf16.mxu0 0
    %4043 = vmatpush1.bf16.msra.mxu0 %v4024
    %4044 = vmatprep.subr.bf16.mxu0 0
    %4045 = vmatpush1.bf16.msra.mxu0 %v4025
    %4046 = vmatprep.subr.bf16.mxu0 0
    %4047 = vmatpush1.bf16.msra.mxu0 %v4026
    %4048 = vmatprep.subr.bf16.mxu0 0
    %4049 = vmatpush1.bf16.msra.mxu0 %v4027
    %4050 = vmatprep.subr.bf16.mxu0 0
    %4051 = vmatpush1.bf16.msra.mxu0 %v4028
    %4052 = vmatprep.subr.bf16.mxu0 0
    %4053 = vmatpush1.bf16.msra.mxu0 %v4029
    %4054 = vmatprep.subr.bf16.mxu0 0
    %4055 = vmatpush1.bf16.msra.mxu0 0
    %4056 = vmatprep.subr.bf16.mxu0 0
    %4057 = vmatpush1.bf16.msra.mxu0 0
    %4058 = vmatprep.subr.bf16.mxu0 0
    %4059 = vmatpush1.bf16.msra.mxu0 0
    %4060 = vmatprep.subr.bf16.mxu0 0
    %4061 = vmatpush1.bf16.msra.mxu0 0
    %4062 = vmatprep.subr.bf16.mxu0 0
    %4063 = vmatpush1.bf16.msra.mxu0 0
    %4064 = vmatprep.subr.bf16.mxu0 0
    %4065 = vmatpush1.bf16.msra.mxu0 0
    %4066 = vmatprep.subr.bf16.mxu0 0
    %4067 = vmatpush1.bf16.msra.mxu0 0
    %4068 = vmatprep.subr.bf16.mxu0 0
    %4069 = vmatpush1.bf16.msra.mxu0 0
    %4070 = vmatprep.mubr.bf16.mxu0 0
    %4071 = vmatmul.mubr.bf16.gmra.mrb[0].mxu0 %v3988
    %v4072 = vpop.f32.mrb[0].mxu0
    %v4073 = vadd.f32 0.0, %v4072
    %v4074 = vpop.f32.mrb[0].mxu0
    %v4075 = vpop.f32.mrb[0].mxu0
    %v4076 = vadd.f32 0.0, %v4075
    %v4077 = vpop.f32.mrb[0].mxu0
    %4078 = vdwg.mxu0
    %v4079 = vadd.f32 %v3965, %v4073
    %v4080 = vadd.f32 %v3968, %v4076
    %v4081 = vld [vmem:[%s3038] sm:$0xf]
    %v4082 = vld [vmem:[%s3038 + $0x4] sm:$0xf]
    %v4083 = vld [vmem:[%s3038 + $0x8] sm:$0xf]
    %v4084 = vld [vmem:[%s3038 + $0xc] sm:$0xf]
    %v4085 = vld [vmem:[%s3038 + $0x10] sm:$0xf]
    %v4086 = vld [vmem:[%s3038 + $0x14] sm:$0xf]
    %v4087 = vld [vmem:[%s3038 + $0x18] sm:$0xf]
    %v4088 = vld [vmem:[%s3038 + $0x1c] sm:$0xf]
    %v4089 = vld [vmem:[%s3038 + $0x20] sm:$0xf]
    %v4090 = vld [vmem:[%s3038 + $0x24] sm:$0xf]
    %v4091 = vld [vmem:[%s3038 + $0x28] sm:$0xf]
    %v4092 = vld [vmem:[%s3038 + $0x2c] sm:$0xf]
    %v4093 = vld [vmem:[%s3038 + $0x30] sm:$0xf]
    %v4094 = vld [vmem:[%s3038 + $0x34] sm:$0xf]
    %v4095 = vld [vmem:[%s3038 + $0x38] sm:$0xf]
    %v4096 = vld [vmem:[%s3038 + $0x3c] sm:$0xf]
    %v4097 = vrot.slane %v3786, 1
    %v4098 = vrot.slane %v3788, 2
    %v4099 = vor.u32 %v4097, %v4098
    %v4117 = vunpack.c.l.b16 %v4081
    %v4118 = vunpack.c.l.b16 %v4082
    %v4119 = vunpack.c.l.b16 %v4083
    %v4120 = vunpack.c.l.b16 %v4084
    %v4121 = vunpack.c.l.b16 %v4085
    %v4122 = vunpack.c.l.b16 %v4086
    %v4123 = vunpack.c.l.b16 %v4087
    %v4124 = vunpack.c.l.b16 %v4088
    %v4125 = vunpack.c.l.b16 %v4089
    %v4126 = vunpack.c.l.b16 %v4090
    %v4127 = vunpack.c.l.b16 %v4091
    %v4128 = vunpack.c.l.b16 %v4092
    %v4129 = vunpack.c.l.b16 %v4093
    %v4130 = vunpack.c.l.b16 %v4094
    %v4131 = vunpack.c.l.b16 %v4095
    %v4132 = vunpack.c.l.b16 %v4096
    %v4133 = vpack.c.b16 %v4118, %v4117
    %v4134 = vpack.c.b16 %v4120, %v4119
    %v4135 = vpack.c.b16 %v4122, %v4121
    %v4136 = vpack.c.b16 %v4124, %v4123
    %v4137 = vpack.c.b16 %v4126, %v4125
    %v4138 = vpack.c.b16 %v4128, %v4127
    %v4139 = vpack.c.b16 %v4130, %v4129
    %v4140 = vpack.c.b16 %v4132, %v4131
    %4149 = vmatprep.subr.bf16.mxu0 0
    %4150 = vmatpush1.bf16.msra.mxu0 %v4133
    %4151 = vmatprep.subr.bf16.mxu0 0
    %4152 = vmatpush1.bf16.msra.mxu0 %v4134
    %4153 = vmatprep.subr.bf16.mxu0 0
    %4154 = vmatpush1.bf16.msra.mxu0 %v4135
    %4155 = vmatprep.subr.bf16.mxu0 0
    %4156 = vmatpush1.bf16.msra.mxu0 %v4136
    %4157 = vmatprep.subr.bf16.mxu0 0
    %4158 = vmatpush1.bf16.msra.mxu0 %v4137
    %4159 = vmatprep.subr.bf16.mxu0 0
    %4160 = vmatpush1.bf16.msra.mxu0 %v4138
    %4161 = vmatprep.subr.bf16.mxu0 0
    %4162 = vmatpush1.bf16.msra.mxu0 %v4139
    %4163 = vmatprep.subr.bf16.mxu0 0
    %4164 = vmatpush1.bf16.msra.mxu0 %v4140
    %4165 = vmatprep.subr.bf16.mxu0 0
    %4166 = vmatpush1.bf16.msra.mxu0 0
    %4167 = vmatprep.subr.bf16.mxu0 0
    %4168 = vmatpush1.bf16.msra.mxu0 0
    %4169 = vmatprep.subr.bf16.mxu0 0
    %4170 = vmatpush1.bf16.msra.mxu0 0
    %4171 = vmatprep.subr.bf16.mxu0 0
    %4172 = vmatpush1.bf16.msra.mxu0 0
    %4173 = vmatprep.subr.bf16.mxu0 0
    %4174 = vmatpush1.bf16.msra.mxu0 0
    %4175 = vmatprep.subr.bf16.mxu0 0
    %4176 = vmatpush1.bf16.msra.mxu0 0
    %4177 = vmatprep.subr.bf16.mxu0 0
    %4178 = vmatpush1.bf16.msra.mxu0 0
    %4179 = vmatprep.subr.bf16.mxu0 0
    %4180 = vmatpush1.bf16.msra.mxu0 0
    %4181 = vmatprep.mubr.bf16.mxu0 0
    %4182 = vmatmul.mubr.bf16.gmra.mrb[0].mxu0 %v4099
    %v4183 = vpop.f32.mrb[0].mxu0
    %v4184 = vadd.f32 0.0, %v4183
    %v4185 = vpop.f32.mrb[0].mxu0
    %v4186 = vpop.f32.mrb[0].mxu0
    %v4187 = vadd.f32 0.0, %v4186
    %v4188 = vpop.f32.mrb[0].mxu0
    %4189 = vdwg.mxu0
    %v4190 = vadd.f32 %v4079, %v4184
    %v4191 = vadd.f32 %v4080, %v4187
    %v4192 = vld [vmem:[%s3150] sm:$0xf]
    %v4193 = vld [vmem:[%s3150 + $0x4] sm:$0xf]
    %v4194 = vld [vmem:[%s3150 + $0x8] sm:$0xf]
    %v4195 = vld [vmem:[%s3150 + $0xc] sm:$0xf]
    %v4196 = vld [vmem:[%s3150 + $0x10] sm:$0xf]
    %v4197 = vld [vmem:[%s3150 + $0x14] sm:$0xf]
    %v4198 = vld [vmem:[%s3150 + $0x18] sm:$0xf]
    %v4199 = vld [vmem:[%s3150 + $0x1c] sm:$0xf]
    %v4200 = vld [vmem:[%s3150 + $0x20] sm:$0xf]
    %v4201 = vld [vmem:[%s3150 + $0x24] sm:$0xf]
    %v4202 = vld [vmem:[%s3150 + $0x28] sm:$0xf]
    %v4203 = vld [vmem:[%s3150 + $0x2c] sm:$0xf]
    %v4204 = vld [vmem:[%s3150 + $0x30] sm:$0xf]
    %v4205 = vld [vmem:[%s3150 + $0x34] sm:$0xf]
    %v4206 = vld [vmem:[%s3150 + $0x38] sm:$0xf]
    %v4207 = vld [vmem:[%s3150 + $0x3c] sm:$0xf]
    %v4208 = vrot.slane %v3752, 2
    %v4226 = vunpack.c.l.b16 %v4192
    %v4227 = vunpack.c.l.b16 %v4193
    %v4228 = vunpack.c.l.b16 %v4194
    %v4229 = vunpack.c.l.b16 %v4195
    %v4230 = vunpack.c.l.b16 %v4196
    %v4231 = vunpack.c.l.b16 %v4197
    %v4232 = vunpack.c.l.b16 %v4198
    %v4233 = vunpack.c.l.b16 %v4199
    %v4234 = vunpack.c.l.b16 %v4200
    %v4235 = vunpack.c.l.b16 %v4201
    %v4236 = vunpack.c.l.b16 %v4202
    %v4237 = vunpack.c.l.b16 %v4203
    %v4238 = vunpack.c.l.b16 %v4204
    %v4239 = vunpack.c.l.b16 %v4205
    %v4240 = vunpack.c.l.b16 %v4206
    %v4241 = vunpack.c.l.b16 %v4207
    %v4242 = vpack.c.b16 %v4227, %v4226
    %v4243 = vpack.c.b16 %v4229, %v4228
    %v4244 = vpack.c.b16 %v4231, %v4230
    %v4245 = vpack.c.b16 %v4233, %v4232
    %v4246 = vpack.c.b16 %v4235, %v4234
    %v4247 = vpack.c.b16 %v4237, %v4236
    %v4248 = vpack.c.b16 %v4239, %v4238
    %v4249 = vpack.c.b16 %v4241, %v4240
    %4258 = vmatprep.subr.bf16.mxu0 0
    %4259 = vmatpush1.bf16.msra.mxu0 %v4242
    %4260 = vmatprep.subr.bf16.mxu0 0
    %4261 = vmatpush1.bf16.msra.mxu0 %v4243
    %4262 = vmatprep.subr.bf16.mxu0 0
    %4263 = vmatpush1.bf16.msra.mxu0 %v4244
    %4264 = vmatprep.subr.bf16.mxu0 0
    %4265 = vmatpush1.bf16.msra.mxu0 %v4245
    %4266 = vmatprep.subr.bf16.mxu0 0
    %4267 = vmatpush1.bf16.msra.mxu0 %v4246
    %4268 = vmatprep.subr.bf16.mxu0 0
    %4269 = vmatpush1.bf16.msra.mxu0 %v4247
    %4270 = vmatprep.subr.bf16.mxu0 0
    %4271 = vmatpush1.bf16.msra.mxu0 %v4248
    %4272 = vmatprep.subr.bf16.mxu0 0
    %4273 = vmatpush1.bf16.msra.mxu0 %v4249
    %4274 = vmatprep.subr.bf16.mxu0 0
    %4275 = vmatpush1.bf16.msra.mxu0 0
    %4276 = vmatprep.subr.bf16.mxu0 0
    %4277 = vmatpush1.bf16.msra.mxu0 0
    %4278 = vmatprep.subr.bf16.mxu0 0
    %4279 = vmatpush1.bf16.msra.mxu0 0
    %4280 = vmatprep.subr.bf16.mxu0 0
    %4281 = vmatpush1.bf16.msra.mxu0 0
    %4282 = vmatprep.subr.bf16.mxu0 0
    %4283 = vmatpush1.bf16.msra.mxu0 0
    %4284 = vmatprep.subr.bf16.mxu0 0
    %4285 = vmatpush1.bf16.msra.mxu0 0
    %4286 = vmatprep.subr.bf16.mxu0 0
    %4287 = vmatpush1.bf16.msra.mxu0 0
    %4288 = vmatprep.subr.bf16.mxu0 0
    %4289 = vmatpush1.bf16.msra.mxu0 0
    %4290 = vmatprep.mubr.bf16.mxu0 0
    %4291 = vmatmul.mubr.bf16.gmra.mrb[0].mxu0 %v4208
    %v4292 = vpop.f32.mrb[0].mxu0
    %v4293 = vadd.f32 0.0, %v4292
    %v4294 = vpop.f32.mrb[0].mxu0
    %v4295 = vpop.f32.mrb[0].mxu0
    %v4296 = vadd.f32 0.0, %v4295
    %v4297 = vpop.f32.mrb[0].mxu0
    %4298 = vdwg.mxu0
    %v4299 = vadd.f32 %v4190, %v4293
    %v4300 = vadd.f32 %v4191, %v4296
    %v4301 = vld [vmem:[%s16] sm:$0x1]
    %v4303 = vlaneseq
    %v4304 = vshrl.u32 %v4303, 7
    %v4305 = vsub.s32 0, %v4304
    %v4306 = vrot.slane %v4301, %v4305
    %v4308 = vadd.f32 %v4299, %v4306
    %v4309 = vadd.f32 %v4300, %v4306
    %v4310 = vpack.c.bf16 %v4309, %v4308
    %v4312 = vrot.slane %v4310, 6
    %v4314 = vsel %vm126, 0, %v4312
    %v4315 = vld [vmem:[%s17] sm:$0xf]
    %v4316 = vld [vmem:[%s17 + $0x4] sm:$0xf]
    %v4317 = vld [vmem:[%s17 + $0x8] sm:$0xf]
    %v4318 = vld [vmem:[%s17 + $0xc] sm:$0xf]
    %v4319 = vld [vmem:[%s17 + $0x10] sm:$0xf]
    %v4320 = vld [vmem:[%s17 + $0x14] sm:$0xf]
    %v4321 = vld [vmem:[%s17 + $0x18] sm:$0xf]
    %v4322 = vld [vmem:[%s17 + $0x1c] sm:$0xf]
    %v4323 = vld [vmem:[%s3282] sm:$0xf]
    %v4324 = vld [vmem:[%s3282 + $0x4] sm:$0xf]
    %v4325 = vld [vmem:[%s3282 + $0x8] sm:$0xf]
    %v4326 = vld [vmem:[%s3282 + $0xc] sm:$0xf]
    %v4327 = vld [vmem:[%s3282 + $0x10] sm:$0xf]
    %v4328 = vld [vmem:[%s3282 + $0x14] sm:$0xf]
    %v4329 = vld [vmem:[%s3282 + $0x18] sm:$0xf]
    %v4330 = vld [vmem:[%s3282 + $0x1c] sm:$0xf]
    %v4331 = vshrl.u32 %v4314, 16
    %v4333 = vshll.u32 %v4314, 16
    %v4335 = vrot.slane %v4333, 1
    %v4336 = vor.u32 %v4331, %v4335
    %v4337 = vsel %vm3291, %v4336, %v3300
    %v4346 = vunpack.c.l.b16 %v4323
    %v4347 = vunpack.c.l.b16 %v4324
    %v4348 = vunpack.c.l.b16 %v4325
    %v4349 = vunpack.c.l.b16 %v4326
    %v4350 = vunpack.c.l.b16 %v4327
    %v4351 = vunpack.c.l.b16 %v4328
    %v4352 = vunpack.c.l.b16 %v4329
    %v4353 = vunpack.c.l.b16 %v4330
    %v4354 = vpack.c.b16 %v4347, %v4346
    %v4355 = vpack.c.b16 %v4349, %v4348
    %v4356 = vpack.c.b16 %v4351, %v4350
    %v4357 = vpack.c.b16 %v4353, %v4352
    %v4363 = vsel %vm220, %v4337, 0
    %4365 = vmatprep.subr.bf16.mxu0 0
    %4366 = vmatpush1.bf16.msra.mxu0 %v4354
    %4367 = vmatprep.subr.bf16.mxu0 0
    %4368 = vmatpush1.bf16.msra.mxu0 %v4355
    %4369 = vmatprep.subr.bf16.mxu0 0
    %4370 = vmatpush1.bf16.msra.mxu0 %v4356
    %4371 = vmatprep.subr.bf16.mxu0 0
    %4372 = vmatpush1.bf16.msra.mxu0 %v4357
    %4373 = vmatprep.subr.bf16.mxu0 0
    %4374 = vmatpush1.bf16.msra.mxu0 0
    %4375 = vmatprep.subr.bf16.mxu0 0
    %4376 = vmatpush1.bf16.msra.mxu0 0
    %4377 = vmatprep.subr.bf16.mxu0 0
    %4378 = vmatpush1.bf16.msra.mxu0 0
    %4379 = vmatprep.subr.bf16.mxu0 0
    %4380 = vmatpush1.bf16.msra.mxu0 0
    %4381 = vmatprep.subr.bf16.mxu0 0
    %4382 = vmatpush1.bf16.msra.mxu0 0
    %4383 = vmatprep.subr.bf16.mxu0 0
    %4384 = vmatpush1.bf16.msra.mxu0 0
    %4385 = vmatprep.subr.bf16.mxu0 0
    %4386 = vmatpush1.bf16.msra.mxu0 0
    %4387 = vmatprep.subr.bf16.mxu0 0
    %4388 = vmatpush1.bf16.msra.mxu0 0
    %4389 = vmatprep.subr.bf16.mxu0 0
    %4390 = vmatpush1.bf16.msra.mxu0 0
    %4391 = vmatprep.subr.bf16.mxu0 0
    %4392 = vmatpush1.bf16.msra.mxu0 0
    %4393 = vmatprep.subr.bf16.mxu0 0
    %4394 = vmatpush1.bf16.msra.mxu0 0
    %4395 = vmatprep.subr.bf16.mxu0 0
    %4396 = vmatpush1.bf16.msra.mxu0 0
    %4397 = vmatprep.mubr.bf16.mxu0 0
    %4398 = vmatmul.mubr.bf16.gmra.mrb[0].mxu0 %v4363
    %v4399 = vpop.f32.mrb[0].mxu0
    %v4400 = vadd.f32 0.0, %v4399
    %v4401 = vpop.f32.mrb[0].mxu0
    %v4402 = vpop.f32.mrb[0].mxu0
    %v4403 = vadd.f32 0.0, %v4402
    %v4404 = vpop.f32.mrb[0].mxu0
    %4405 = vdwg.mxu0
    %v4414 = vunpack.c.l.b16 %v4315
    %v4415 = vunpack.c.l.b16 %v4316
    %v4416 = vunpack.c.l.b16 %v4317
    %v4417 = vunpack.c.l.b16 %v4318
    %v4418 = vunpack.c.l.b16 %v4319
    %v4419 = vunpack.c.l.b16 %v4320
    %v4420 = vunpack.c.l.b16 %v4321
    %v4421 = vunpack.c.l.b16 %v4322
    %v4422 = vpack.c.b16 %v4415, %v4414
    %v4423 = vpack.c.b16 %v4417, %v4416
    %v4424 = vpack.c.b16 %v4419, %v4418
    %v4425 = vpack.c.b16 %v4421, %v4420
    %v4430 = vsel %vm220, %v4314, 0
    %4432 = vmatprep.subr.bf16.mxu0 0
    %4433 = vmatpush1.bf16.msra.mxu0 %v4422
    %4434 = vmatprep.subr.bf16.mxu0 0
    %4435 = vmatpush1.bf16.msra.mxu0 %v4423
    %4436 = vmatprep.subr.bf16.mxu0 0
    %4437 = vmatpush1.bf16.msra.mxu0 %v4424
    %4438 = vmatprep.subr.bf16.mxu0 0
    %4439 = vmatpush1.bf16.msra.mxu0 %v4425
    %4440 = vmatprep.subr.bf16.mxu0 0
    %4441 = vmatpush1.bf16.msra.mxu0 0
    %4442 = vmatprep.subr.bf16.mxu0 0
    %4443 = vmatpush1.bf16.msra.mxu0 0
    %4444 = vmatprep.subr.bf16.mxu0 0
    %4445 = vmatpush1.bf16.msra.mxu0 0
    %4446 = vmatprep.subr.bf16.mxu0 0
    %4447 = vmatpush1.bf16.msra.mxu0 0
    %4448 = vmatprep.subr.bf16.mxu0 0
    %4449 = vmatpush1.bf16.msra.mxu0 0
    %4450 = vmatprep.subr.bf16.mxu0 0
    %4451 = vmatpush1.bf16.msra.mxu0 0
    %4452 = vmatprep.subr.bf16.mxu0 0
    %4453 = vmatpush1.bf16.msra.mxu0 0
    %4454 = vmatprep.subr.bf16.mxu0 0
    %4455 = vmatpush1.bf16.msra.mxu0 0
    %4456 = vmatprep.subr.bf16.mxu0 0
    %4457 = vmatpush1.bf16.msra.mxu0 0
    %4458 = vmatprep.subr.bf16.mxu0 0
    %4459 = vmatpush1.bf16.msra.mxu0 0
    %4460 = vmatprep.subr.bf16.mxu0 0
    %4461 = vmatpush1.bf16.msra.mxu0 0
    %4462 = vmatprep.subr.bf16.mxu0 0
    %4463 = vmatpush1.bf16.msra.mxu0 0
    %4464 = vmatprep.mubr.bf16.mxu0 0
    %4465 = vmatmul.mubr.bf16.gmra.mrb[0].mxu0 %v4430
    %v4466 = vpop.f32.mrb[0].mxu0
    %v4467 = vadd.f32 %v4400, %v4466
    %v4468 = vpop.f32.mrb[0].mxu0
    %v4469 = vpop.f32.mrb[0].mxu0
    %v4470 = vadd.f32 %v4403, %v4469
    %v4471 = vpop.f32.mrb[0].mxu0
    %4472 = vdwg.mxu0
    %v4473 = vld [vmem:[%s3437] sm:$0xf]
    %v4474 = vld [vmem:[%s3437 + $0x4] sm:$0xf]
    %v4475 = vld [vmem:[%s3437 + $0x8] sm:$0xf]
    %v4476 = vld [vmem:[%s3437 + $0xc] sm:$0xf]
    %v4477 = vld [vmem:[%s3437 + $0x10] sm:$0xf]
    %v4478 = vld [vmem:[%s3437 + $0x14] sm:$0xf]
    %v4479 = vld [vmem:[%s3437 + $0x18] sm:$0xf]
    %v4480 = vld [vmem:[%s3437 + $0x1c] sm:$0xf]
    %v4482 = vrot.slane %v4314, 1
    %v4483 = vsel %vm3448, %v4482, %v3450
    %v4492 = vunpack.c.l.b16 %v4473
    %v4493 = vunpack.c.l.b16 %v4474
    %v4494 = vunpack.c.l.b16 %v4475
    %v4495 = vunpack.c.l.b16 %v4476
    %v4496 = vunpack.c.l.b16 %v4477
    %v4497 = vunpack.c.l.b16 %v4478
    %v4498 = vunpack.c.l.b16 %v4479
    %v4499 = vunpack.c.l.b16 %v4480
    %v4500 = vpack.c.b16 %v4493, %v4492
    %v4501 = vpack.c.b16 %v4495, %v4494
    %v4502 = vpack.c.b16 %v4497, %v4496
    %v4503 = vpack.c.b16 %v4499, %v4498
    %v4509 = vsel %vm220, %v4483, 0
    %4511 = vmatprep.subr.bf16.mxu0 0
    %4512 = vmatpush1.bf16.msra.mxu0 %v4500
    %4513 = vmatprep.subr.bf16.mxu0 0
    %4514 = vmatpush1.bf16.msra.mxu0 %v4501
    %4515 = vmatprep.subr.bf16.mxu0 0
    %4516 = vmatpush1.bf16.msra.mxu0 %v4502
    %4517 = vmatprep.subr.bf16.mxu0 0
    %4518 = vmatpush1.bf16.msra.mxu0 %v4503
    %4519 = vmatprep.subr.bf16.mxu0 0
    %4520 = vmatpush1.bf16.msra.mxu0 0
    %4521 = vmatprep.subr.bf16.mxu0 0
    %4522 = vmatpush1.bf16.msra.mxu0 0
    %4523 = vmatprep.subr.bf16.mxu0 0
    %4524 = vmatpush1.bf16.msra.mxu0 0
    %4525 = vmatprep.subr.bf16.mxu0 0
    %4526 = vmatpush1.bf16.msra.mxu0 0
    %4527 = vmatprep.subr.bf16.mxu0 0
    %4528 = vmatpush1.bf16.msra.mxu0 0
    %4529 = vmatprep.subr.bf16.mxu0 0
    %4530 = vmatpush1.bf16.msra.mxu0 0
    %4531 = vmatprep.subr.bf16.mxu0 0
    %4532 = vmatpush1.bf16.msra.mxu0 0
    %4533 = vmatprep.subr.bf16.mxu0 0
    %4534 = vmatpush1.bf16.msra.mxu0 0
    %4535 = vmatprep.subr.bf16.mxu0 0
    %4536 = vmatpush1.bf16.msra.mxu0 0
    %4537 = vmatprep.subr.bf16.mxu0 0
    %4538 = vmatpush1.bf16.msra.mxu0 0
    %4539 = vmatprep.subr.bf16.mxu0 0
    %4540 = vmatpush1.bf16.msra.mxu0 0
    %4541 = vmatprep.subr.bf16.mxu0 0
    %4542 = vmatpush1.bf16.msra.mxu0 0
    %4543 = vmatprep.mubr.bf16.mxu0 0
    %4544 = vmatmul.mubr.bf16.gmra.mrb[0].mxu0 %v4509
    %v4545 = vpop.f32.mrb[0].mxu0
    %v4546 = vadd.f32 0.0, %v4545
    %v4547 = vpop.f32.mrb[0].mxu0
    %v4548 = vpop.f32.mrb[0].mxu0
    %v4549 = vadd.f32 0.0, %v4548
    %v4550 = vpop.f32.mrb[0].mxu0
    %4551 = vdwg.mxu0
    %v4552 = vadd.f32 %v4467, %v4546
    %v4553 = vadd.f32 %v4470, %v4549
    %v4554 = vld [vmem:[%s3522] sm:$0xf]
    %v4555 = vld [vmem:[%s3522 + $0x4] sm:$0xf]
    %v4556 = vld [vmem:[%s3522 + $0x8] sm:$0xf]
    %v4557 = vld [vmem:[%s3522 + $0xc] sm:$0xf]
    %v4558 = vld [vmem:[%s3522 + $0x10] sm:$0xf]
    %v4559 = vld [vmem:[%s3522 + $0x14] sm:$0xf]
    %v4560 = vld [vmem:[%s3522 + $0x18] sm:$0xf]
    %v4561 = vld [vmem:[%s3522 + $0x1c] sm:$0xf]
    %v4562 = vrot.slane %v4331, 1
    %v4563 = vrot.slane %v4333, 2
    %v4564 = vor.u32 %v4562, %v4563
    %v4565 = vsel %vm3531, %v4564, %v3539
    %v4574 = vunpack.c.l.b16 %v4554
    %v4575 = vunpack.c.l.b16 %v4555
    %v4576 = vunpack.c.l.b16 %v4556
    %v4577 = vunpack.c.l.b16 %v4557
    %v4578 = vunpack.c.l.b16 %v4558
    %v4579 = vunpack.c.l.b16 %v4559
    %v4580 = vunpack.c.l.b16 %v4560
    %v4581 = vunpack.c.l.b16 %v4561
    %v4582 = vpack.c.b16 %v4575, %v4574
    %v4583 = vpack.c.b16 %v4577, %v4576
    %v4584 = vpack.c.b16 %v4579, %v4578
    %v4585 = vpack.c.b16 %v4581, %v4580
    %v4591 = vsel %vm220, %v4565, 0
    %4593 = vmatprep.subr.bf16.mxu0 0
    %4594 = vmatpush1.bf16.msra.mxu0 %v4582
    %4595 = vmatprep.subr.bf16.mxu0 0
    %4596 = vmatpush1.bf16.msra.mxu0 %v4583
    %4597 = vmatprep.subr.bf16.mxu0 0
    %4598 = vmatpush1.bf16.msra.mxu0 %v4584
    %4599 = vmatprep.subr.bf16.mxu0 0
    %4600 = vmatpush1.bf16.msra.mxu0 %v4585
    %4601 = vmatprep.subr.bf16.mxu0 0
    %4602 = vmatpush1.bf16.msra.mxu0 0
    %4603 = vmatprep.subr.bf16.mxu0 0
    %4604 = vmatpush1.bf16.msra.mxu0 0
    %4605 = vmatprep.subr.bf16.mxu0 0
    %4606 = vmatpush1.bf16.msra.mxu0 0
    %4607 = vmatprep.subr.bf16.mxu0 0
    %4608 = vmatpush1.bf16.msra.mxu0 0
    %4609 = vmatprep.subr.bf16.mxu0 0
    %4610 = vmatpush1.bf16.msra.mxu0 0
    %4611 = vmatprep.subr.bf16.mxu0 0
    %4612 = vmatpush1.bf16.msra.mxu0 0
    %4613 = vmatprep.subr.bf16.mxu0 0
    %4614 = vmatpush1.bf16.msra.mxu0 0
    %4615 = vmatprep.subr.bf16.mxu0 0
    %4616 = vmatpush1.bf16.msra.mxu0 0
    %4617 = vmatprep.subr.bf16.mxu0 0
    %4618 = vmatpush1.bf16.msra.mxu0 0
    %4619 = vmatprep.subr.bf16.mxu0 0
    %4620 = vmatpush1.bf16.msra.mxu0 0
    %4621 = vmatprep.subr.bf16.mxu0 0
    %4622 = vmatpush1.bf16.msra.mxu0 0
    %4623 = vmatprep.subr.bf16.mxu0 0
    %4624 = vmatpush1.bf16.msra.mxu0 0
    %4625 = vmatprep.mubr.bf16.mxu0 0
    %4626 = vmatmul.mubr.bf16.gmra.mrb[0].mxu0 %v4591
    %v4627 = vpop.f32.mrb[0].mxu0
    %v4628 = vadd.f32 0.0, %v4627
    %v4629 = vpop.f32.mrb[0].mxu0
    %v4630 = vpop.f32.mrb[0].mxu0
    %v4631 = vadd.f32 0.0, %v4630
    %v4632 = vpop.f32.mrb[0].mxu0
    %4633 = vdwg.mxu0
    %v4634 = vadd.f32 %v4552, %v4628
    %v4635 = vadd.f32 %v4553, %v4631
    %v4636 = vld [vmem:[%s3611] sm:$0xf]
    %v4637 = vld [vmem:[%s3611 + $0x4] sm:$0xf]
    %v4638 = vld [vmem:[%s3611 + $0x8] sm:$0xf]
    %v4639 = vld [vmem:[%s3611 + $0xc] sm:$0xf]
    %v4640 = vld [vmem:[%s3611 + $0x10] sm:$0xf]
    %v4641 = vld [vmem:[%s3611 + $0x14] sm:$0xf]
    %v4642 = vld [vmem:[%s3611 + $0x18] sm:$0xf]
    %v4643 = vld [vmem:[%s3611 + $0x1c] sm:$0xf]
    %v4644 = vrot.slane %v4314, 2
    %v4645 = vsel %vm2701, %v4644, %v3621
    %v4654 = vunpack.c.l.b16 %v4636
    %v4655 = vunpack.c.l.b16 %v4637
    %v4656 = vunpack.c.l.b16 %v4638
    %v4657 = vunpack.c.l.b16 %v4639
    %v4658 = vunpack.c.l.b16 %v4640
    %v4659 = vunpack.c.l.b16 %v4641
    %v4660 = vunpack.c.l.b16 %v4642
    %v4661 = vunpack.c.l.b16 %v4643
    %v4662 = vpack.c.b16 %v4655, %v4654
    %v4663 = vpack.c.b16 %v4657, %v4656
    %v4664 = vpack.c.b16 %v4659, %v4658
    %v4665 = vpack.c.b16 %v4661, %v4660
    %v4671 = vsel %vm220, %v4645, 0
    %4673 = vmatprep.subr.bf16.mxu0 0
    %4674 = vmatpush1.bf16.msra.mxu0 %v4662
    %4675 = vmatprep.subr.bf16.mxu0 0
    %4676 = vmatpush1.bf16.msra.mxu0 %v4663
    %4677 = vmatprep.subr.bf16.mxu0 0
    %4678 = vmatpush1.bf16.msra.mxu0 %v4664
    %4679 = vmatprep.subr.bf16.mxu0 0
    %4680 = vmatpush1.bf16.msra.mxu0 %v4665
    %4681 = vmatprep.subr.bf16.mxu0 0
    %4682 = vmatpush1.bf16.msra.mxu0 0
    %4683 = vmatprep.subr.bf16.mxu0 0
    %4684 = vmatpush1.bf16.msra.mxu0 0
    %4685 = vmatprep.subr.bf16.mxu0 0
    %4686 = vmatpush1.bf16.msra.mxu0 0
    %4687 = vmatprep.subr.bf16.mxu0 0
    %4688 = vmatpush1.bf16.msra.mxu0 0
    %4689 = vmatprep.subr.bf16.mxu0 0
    %4690 = vmatpush1.bf16.msra.mxu0 0
    %4691 = vmatprep.subr.bf16.mxu0 0
    %4692 = vmatpush1.bf16.msra.mxu0 0
    %4693 = vmatprep.subr.bf16.mxu0 0
    %4694 = vmatpush1.bf16.msra.mxu0 0
    %4695 = vmatprep.subr.bf16.mxu0 0
    %4696 = vmatpush1.bf16.msra.mxu0 0
    %4697 = vmatprep.subr.bf16.mxu0 0
    %4698 = vmatpush1.bf16.msra.mxu0 0
    %4699 = vmatprep.subr.bf16.mxu0 0
    %4700 = vmatpush1.bf16.msra.mxu0 0
    %4701 = vmatprep.subr.bf16.mxu0 0
    %4702 = vmatpush1.bf16.msra.mxu0 0
    %4703 = vmatprep.subr.bf16.mxu0 0
    %4704 = vmatpush1.bf16.msra.mxu0 0
    %4705 = vmatprep.mubr.bf16.mxu0 0
    %4706 = vmatmul.mubr.bf16.gmra.mrb[0].mxu0 %v4671
    %v4707 = vpop.f32.mrb[0].mxu0
    %v4708 = vadd.f32 0.0, %v4707
    %v4709 = vpop.f32.mrb[0].mxu0
    %v4710 = vpop.f32.mrb[0].mxu0
    %v4711 = vadd.f32 0.0, %v4710
    %v4712 = vpop.f32.mrb[0].mxu0
    %4713 = vdwg.mxu0
    %v4714 = vadd.f32 %v4634, %v4708
    %v4715 = vadd.f32 %v4635, %v4711
    %v4716 = vld [vmem:[%s18] sm:$0x1]
    %v4718 = vlaneseq
    %v4719 = vshrl.u32 %v4718, 7
    %v4720 = vsub.s32 0, %v4719
    %v4721 = vrot.slane %v4716, %v4720
    %v4723 = vadd.f32 %v4714, %v4721
    %v4724 = vadd.f32 %v4715, %v4721
    %s4725 = scalar_lea.vmem %s19, 16
    %4726 = vst.msk [vmem:[%s4725] sm:$0xff] %vm92, %v4723
    %4727 = vst.msk [vmem:[%s4725 + $0x8] sm:$0xff] %vm92, %v4724
    // Predicated region
    $region78: #{_lambda_.1} parent=1 // pred_check
      _
    $region79: #{_lambda_.1} parent=1 // pred_check_branch
      %4729 = sbr.rel (0) target = $region81
    $region80: #{_lambda_.1} parent=1 // pred_region
      _
    $region81: #{_lambda_.1} parent=1 // pred_fallthru
      _
    // Predicated region
    $region82: #{_lambda_.1} parent=1 // pred_check
      _
    $region83: #{_lambda_.1} parent=1 // pred_check_branch
      %4731 = sbr.rel (0) target = $region85
    $region84: #{_lambda_.1} parent=1 // pred_region
      %s4733 = ssub.s32 32, 32
      %4734 = vsyncadd [#allocation3], %s4733
      %s4735 = sshll.u32 [#allocation2], 4
      %s4736 = int_to_ptr.vmem [resolvable:$true] %s4735
      %4741 = dma.vmem_to_hbm [thread:$0]  %s4736, 32, %s20, [#allocation3], 16, 16, 1
    $region85: #{_lambda_.1} parent=1 // pred_fallthru
      _
    // Predicated region
    $region86: #{_lambda_.1} parent=1 // pred_check
      _
    $region87: #{_lambda_.1} parent=1 // pred_check_branch
      %4743 = sbr.rel (0) target = $region89
    $region88: #{_lambda_.1} parent=1 // pred_region
      %s4745 = ssub.s32 32, 32
      %4746 = vsyncadd [#allocation5], %s4745
      %s4747 = sshll.u32 [#allocation4], 4
      %s4748 = int_to_ptr.vmem [resolvable:$true] %s4747
      %4753 = dma.vmem_to_hbm [thread:$0]  %s4748, 32, %s21, [#allocation5], 16, 16, 1
    $region89: #{_lambda_.1} parent=1 // pred_fallthru
      _
    // Predicated region
    $region90: #{_lambda_.1} parent=1 // pred_check
      _
    $region91: #{_lambda_.1} parent=1 // pred_check_branch
      %4755 = sbr.rel (0) target = $region93
    $region92: #{_lambda_.1} parent=1 // pred_region
      _
    $region93: #{_lambda_.1} parent=1 // pred_fallthru
      _
    // Predicated region
    $region94: #{_lambda_.1} parent=1 // pred_check
      _
    $region95: #{_lambda_.1} parent=1 // pred_check_branch
      %4757 = sbr.rel (0) target = $region97
    $region96: #{_lambda_.1} parent=1 // pred_region
      %4758 = dma.done [#allocation3], 32
    $region97: #{_lambda_.1} parent=1 // pred_fallthru
      _
    // Predicated region
    $region98: #{_lambda_.1} parent=1 // pred_check
      _
    $region99: #{_lambda_.1} parent=1 // pred_check_branch
      %4760 = sbr.rel (0) target = $region101
    $region100: #{_lambda_.1} parent=1 // pred_region
      %4761 = dma.done [#allocation5], 32
    $region101: #{_lambda_.1} parent=1 // pred_fallthru
      _
    %4762 = vsyncpa [#allocation3], 1
    %4763 = vsyncpa [#allocation5], 1

</llo_original>
